<compile_context>
chip_gen: v6e
topology: v6e:2x2x1
jax: 0.10.0
libtpu: 0.0.40
codegen_flags: <defaults>
</compile_context>

<pallas_src>
import functools

import jax
import jax.numpy as jnp
from jax.experimental import pallas as pl
from jax.experimental.pallas import tpu as pltpu


# ------------------------------ fused kernel -------------------------------

def _generator_kernel(z_ref,
                      m1_ref, s1_ref,
                      m2_ref, s2_ref,
                      m3_ref, s3_ref,
                      m4_ref,
                      o_ref, *, alpha):
    """One batch tile (B rows) per grid step; whole generator is VMEM-resident.

    Activations are a Python list of per-image-row matrices, each (B, OW*C)
    channel-minor.  Since the matmul row dim is the batch, the stride-2 row
    overlap-add of ConvTranspose2d(k=4,s=2,p=1) is pure trace-time indexing.
    """
    f32 = jnp.float32
    bf16 = jnp.bfloat16

    def lrelu(v):
        return jnp.where(v >= 0.0, v, alpha * v)

    def up_conv(groups, mcat, wc):
        # ConvT(k=4, s=2, p=1) rows:  out[2m]   = kh1(in[m]) + kh3(in[m-1])
        #                             out[2m+1] = kh2(in[m]) + kh0(in[m+1])
        # mcat = [M_kh0 | M_kh1 | M_kh2 | M_kh3], each (W*Cin, wc=OW*Cout).
        t = [jnp.dot(g, mcat, preferred_element_type=f32) for g in groups]
        h = len(groups)
        out = []
        for m in range(h):
            even = t[m][:, wc:2 * wc]
            if m > 0:
                even = even + t[m - 1][:, 3 * wc:4 * wc]
            odd = t[m][:, 2 * wc:3 * wc]
            if m + 1 < h:
                odd = odd + t[m + 1][:, 0:wc]
            out.append(even)
            out.append(odd)
        return out

    # layer 1: ConvT(nz -> 4*ngf, k=4, s=1, p=0) + BN + LeakyReLU -> 4 image rows
    wc1 = m1_ref.shape[1] // 4
    z = z_ref[...].astype(bf16)                                  # (B, nz)
    t1 = jnp.dot(z, m1_ref[...], preferred_element_type=f32)     # (B, 4*wc1)
    s1 = s1_ref[...]
    g = [lrelu(t1[:, r * wc1:(r + 1) * wc1] + s1).astype(bf16) for r in range(4)]

    # layer 2: ConvT + BN + LeakyReLU -> 8 image rows of (B, 8*2*ngf)
    s2 = s2_ref[...]
    g = [lrelu(v + s2).astype(bf16)
         for v in up_conv(g, m2_ref[...], m2_ref.shape[1] // 4)]

    # layer 3: ConvT + BN + LeakyReLU -> 16 image rows of (B, 16*ngf)
    s3 = s3_ref[...]
    g = [lrelu(v + s3).astype(bf16)
         for v in up_conv(g, m3_ref[...], m3_ref.shape[1] // 4)]

    # layer 4: ConvT + Tanh -> 32 image rows of (B, 32*nc), stored lane-dense
    pre = up_conv(g, m4_ref[...], m4_ref.shape[1] // 4)
    o_ref[...] = jnp.tanh(jnp.concatenate(pre, axis=1))          # (B, 32*32*nc)


# ----------------------- one-time operand preparation -----------------------

def _fold_bn(bn, eps=1e-5):
    gamma, beta, mean, var = bn
    scale = gamma * jax.lax.rsqrt(var + eps)
    shift = beta - mean * scale
    return scale, shift


def _build_M(w, scale, kh, in_w, out_w, stride, pad):
    """Column/channel matrix (W*Cin, OW*Cout) for kernel row kh, BN scale folded.

    M[iw*Cin+ci, ow*Cout+co] = w[ci,co,kh,kw]*scale[co]  with  kw = ow - stride*iw + pad.
    """
    ci, co, _, kwid = w.shape
    wk = w[:, :, kh, :] * scale[None, :, None]                    # (Ci, Co, KW)
    iw = jnp.arange(in_w)[:, None]
    ow = jnp.arange(out_w)[None, :]
    kw = ow - stride * iw + pad                                   # (W, OW)
    valid = (kw >= 0) & (kw < kwid)
    tap = wk[:, :, jnp.clip(kw, 0, kwid - 1)]                     # (Ci, Co, W, OW)
    tap = tap * valid[None, None].astype(w.dtype)
    return jnp.transpose(tap, (2, 0, 3, 1)).reshape(in_w * ci, out_w * co)


def prepare_operands(params, nz, ngf, nc, eps=1e-5):
    """Fold eval-mode BN into bf16 MXU matrices; shifts stay f32 (epilogue)."""
    sc1, sh1 = _fold_bn(params["bn1"], eps)
    sc2, sh2 = _fold_bn(params["bn2"], eps)
    sc3, sh3 = _fold_bn(params["bn3"], eps)
    one = jnp.ones((nc,), jnp.float32)

    def cat_M(w, scale, in_w, out_w, stride, pad):
        m = jnp.concatenate(
            [_build_M(w, scale, kh, in_w, out_w, stride, pad) for kh in range(4)],
            axis=1)
        return m.astype(jnp.bfloat16)

    return dict(
        m1=cat_M(params["w1"], sc1, 1, 4, 1, 0),     # (nz, 4*4*4ngf)   kh == oh
        s1=jnp.tile(sh1, 4)[None, :],
        m2=cat_M(params["w2"], sc2, 4, 8, 2, 1),     # (4*4ngf, 4*8*2ngf)
        s2=jnp.tile(sh2, 8)[None, :],
        m3=cat_M(params["w3"], sc3, 8, 16, 2, 1),    # (8*2ngf, 4*16*ngf)
        s3=jnp.tile(sh3, 16)[None, :],
        m4=cat_M(params["w4"], one, 16, 32, 2, 1),   # (16*ngf, 4*32*nc)
    )


# -------------------------------- forward ----------------------------------

_W_ORDER = ("m1", "s1", "m2", "s2", "m3", "s3", "m4")


def generator_forward(ops, z_nchw, *, nz, nc, leakiness=0.2, b_tile=128):
    """z_nchw: (N, nz, 1, 1) -> (N, nc, 32, 32), matching PyTorch NCHW I/O.

    b_tile samples are processed per grid step (matmul row dim).  Use ~64-128
    on v5e, 128-256 on v6e/v7x; keep >= 2 grid steps on v7x for both cores.
    """
    n = z_nchw.shape[0]
    bt = max(8, (min(b_tile, ((n + 7) // 8) * 8) // 8) * 8)
    n_pad = ((n + bt - 1) // bt) * bt

    z2d = z_nchw.reshape(n, nz).astype(jnp.float32)
    if n_pad != n:
        z2d = jnp.pad(z2d, ((0, n_pad - n), (0, 0)))

    weights = [ops[k] for k in _W_ORDER]
    out_w = 32 * 32 * nc

    def full_spec(a):
        nd = a.ndim
        return pl.BlockSpec(a.shape, lambda b, _nd=nd: (0,) * _nd)

    # advisory cost estimate (per-sample input image rows per layer: 1,4,8,16)
    rows = {"m1": 1, "m2": 4, "m3": 8, "m4": 16}
    flops_per_sample = sum(2 * rows[k] * ops[k].shape[0] * ops[k].shape[1]
                           for k in ("m1", "m2", "m3", "m4"))
    bytes_acc = (sum(int(w.size) * w.dtype.itemsize for w in weights)
                 + int(z2d.size) * 4 + n_pad * out_w * 4)

    out2d = pl.pallas_call(
        functools.partial(_generator_kernel, alpha=float(leakiness)),
        out_shape=jax.ShapeDtypeStruct((n_pad, out_w), jnp.float32),
        grid=(n_pad // bt,),
        in_specs=[pl.BlockSpec((bt, nz), lambda b: (b, 0))]
                 + [full_spec(w) for w in weights],
        out_specs=pl.BlockSpec((bt, out_w), lambda b: (b, 0)),
        compiler_params=pltpu.CompilerParams(
            dimension_semantics=("parallel",),
            vmem_limit_bytes=32 * 1024 * 1024),
        cost_estimate=pl.CostEstimate(flops=int(n_pad * flops_per_sample),
                                      transcendentals=int(n_pad * out_w),
                                      bytes_accessed=int(bytes_acc)),
    )(z2d, *weights)

    img = out2d[:n].reshape(n, 32, 32, nc)       # per-sample flatten is (oh, ow, c)
    return jnp.transpose(img, (0, 3, 1, 2))      # NCHW


# ---------------------------- params & reference ----------------------------

def init_params(key, nz, ngf, nc):
    """DCGAN-style deterministic init: conv ~ N(0, 0.02), BN gamma ~ N(1, 0.02)."""
    ks = jax.random.split(key, 8)

    def conv_w(k, ci, co):
        return 0.02 * jax.random.normal(k, (ci, co, 4, 4), jnp.float32)

    def bn_p(k, c):
        gamma = 1.0 + 0.02 * jax.random.normal(k, (c,), jnp.float32)
        return (gamma, jnp.zeros((c,), jnp.float32),
                jnp.zeros((c,), jnp.float32), jnp.ones((c,), jnp.float32))

    return {
        "w1": conv_w(ks[0], nz, ngf * 4), "bn1": bn_p(ks[1], ngf * 4),
        "w2": conv_w(ks[2], ngf * 4, ngf * 2), "bn2": bn_p(ks[3], ngf * 2),
        "w3": conv_w(ks[4], ngf * 2, ngf), "bn3": bn_p(ks[5], ngf),
        "w4": conv_w(ks[6], ngf, nc),
    }


def _ref_conv_transpose_s2(x_nhwc, w):
    n, h, wdt, _ = x_nhwc.shape
    co = w.shape[1]
    patches = jnp.einsum('nhwc,cokl->nhwokl', x_nhwc, w)
    oh, ow = 2 * h, 2 * wdt
    out = jnp.zeros((n, oh + 2, ow + 2, co), jnp.float32)
    for kh in range(4):
        for kw in range(4):
            out = out.at[:, kh:kh + oh:2, kw:kw + ow:2, :].add(patches[..., kh, kw])
    return out[:, 1:oh + 1, 1:ow + 1, :]


def _ref_bn_lrelu(x, bn, alpha, eps=1e-5):
    gamma, beta, mean, var = bn
    scale = gamma * jax.lax.rsqrt(var + eps)
    shift = beta - mean * scale
    y = x * scale + shift
    return jnp.where(y >= 0.0, y, alpha * y)


def reference_forward(params, z_nchw, leakiness=0.2):
    n = z_nchw.shape[0]
    z = z_nchw.reshape(n, -1).astype(jnp.float32)
    x = jnp.einsum('ni,iokl->nklo', z, params["w1"])              # (N,4,4,C1) NHWC
    x = _ref_bn_lrelu(x, params["bn1"], leakiness)
    x = _ref_conv_transpose_s2(x, params["w2"])
    x = _ref_bn_lrelu(x, params["bn2"], leakiness)
    x = _ref_conv_transpose_s2(x, params["w3"])
    x = _ref_bn_lrelu(x, params["bn3"], leakiness)
    x = _ref_conv_transpose_s2(x, params["w4"])
    x = jnp.tanh(x)
    return jnp.transpose(x, (0, 3, 1, 2))


# ----------------------------------- main -----------------------------------

if __name__ == "__main__":
    nz, ngf, nc, ngpu = 32, 16, 1, 1
    leakiness = 0.2
    batch = 16          # small test; b_tile=8 -> 2 grid steps (exercises megacore path)

    key = jax.random.PRNGKey(0)
    params = init_params(key, nz, ngf, nc)
    z = jax.random.normal(jax.random.fold_in(key, 123),
                          (batch, nz, 1, 1), jnp.float32)

    ops = prepare_operands(params, nz, ngf, nc)   # one-time weight folding (bf16)

    fwd = jax.jit(functools.partial(generator_forward,
                                    nz=nz, nc=nc, leakiness=leakiness, b_tile=8))
    out = fwd(ops, z)
    jax.block_until_ready(out)

    ref = reference_forward(params, z, leakiness)
    err = float(jnp.max(jnp.abs(out - ref)))

    assert out.shape == (batch, nc, 32, 32), out.shape
    assert out.dtype == jnp.float32
    assert bool(jnp.all(jnp.isfinite(out)))
    assert bool(jnp.all(jnp.abs(out) <= 1.0 + 1e-6))   # tanh range
    assert err < 2e-3, f"max |pallas - reference| = {err}"
    print("KERNEL_OK")
</pallas_src>

<mosaic_0001>
module attributes {stable_mosaic.version = 11 : i64} {
  func.func @_generator_kernel(%arg0: i32, %arg1: memref<8x32xf32, #tpu.memory_space<vmem>>, %arg2: memref<32x1024xbf16, #tpu.memory_space<vmem>>, %arg3: memref<1x256xf32, #tpu.memory_space<vmem>>, %arg4: memref<256x1024xbf16, #tpu.memory_space<vmem>>, %arg5: memref<1x256xf32, #tpu.memory_space<vmem>>, %arg6: memref<256x1024xbf16, #tpu.memory_space<vmem>>, %arg7: memref<1x256xf32, #tpu.memory_space<vmem>>, %arg8: memref<256x128xbf16, #tpu.memory_space<vmem>>, %arg9: memref<8x1024xf32, #tpu.memory_space<vmem>>) attributes {dimension_semantics = [#tpu.dimension_semantics<parallel>], iteration_bounds = array<i64: 2>, scalar_prefetch = 0 : i64, scratch_operands = 0 : i64, tpu.core_type = #tpu.core_type<tc>, window_params = [{transform_indices = @transform_0, window_bounds = array<i64: 8, 32>}, {pipeline_mode = #tpu.pipeline_mode<synchronous>, transform_indices = @transform_1, window_bounds = array<i64: 32, 1024>}, {pipeline_mode = #tpu.pipeline_mode<synchronous>, transform_indices = @transform_2, window_bounds = array<i64: 1, 256>}, {pipeline_mode = #tpu.pipeline_mode<synchronous>, transform_indices = @transform_3, window_bounds = array<i64: 256, 1024>}, {pipeline_mode = #tpu.pipeline_mode<synchronous>, transform_indices = @transform_4, window_bounds = array<i64: 1, 256>}, {pipeline_mode = #tpu.pipeline_mode<synchronous>, transform_indices = @transform_5, window_bounds = array<i64: 256, 1024>}, {pipeline_mode = #tpu.pipeline_mode<synchronous>, transform_indices = @transform_6, window_bounds = array<i64: 1, 256>}, {pipeline_mode = #tpu.pipeline_mode<synchronous>, transform_indices = @transform_7, window_bounds = array<i64: 256, 128>}, {transform_indices = @transform_8, window_bounds = array<i64: 8, 1024>}]} {
    %c0 = arith.constant 0 : index
    %c0_0 = arith.constant 0 : index
    %0 = vector.load %arg1[%c0, %c0_0] : memref<8x32xf32, #tpu.memory_space<vmem>>, vector<8x32xf32>
    %1 = arith.truncf %0 : vector<8x32xf32> to vector<8x32xbf16>
    %c0_1 = arith.constant 0 : index
    %c0_2 = arith.constant 0 : index
    %2 = vector.load %arg2[%c0_1, %c0_2] : memref<32x1024xbf16, #tpu.memory_space<vmem>>, vector<32x1024xbf16>
    %cst = arith.constant dense<0.000000e+00> : vector<8x1024xf32>
    %3 = tpu.matmul %1, %2, %cst {dimension_numbers = #tpu.dot_dimension_numbers<[1], [0], [0], [1], [0, 0, 1, 1], [], []>} : vector<8x32xbf16>, vector<32x1024xbf16>, vector<8x1024xf32> -> vector<8x1024xf32>
    %c0_3 = arith.constant 0 : index
    %c0_4 = arith.constant 0 : index
    %4 = vector.load %arg3[%c0_3, %c0_4] : memref<1x256xf32, #tpu.memory_space<vmem>>, vector<1x256xf32>
    %5 = vector.extract_strided_slice %3 {offsets = [0, 0], sizes = [8, 256], strides = [1, 1]} : vector<8x1024xf32> to vector<8x256xf32>
    %6 = vector.broadcast %4 : vector<1x256xf32> to vector<8x256xf32>
    %7 = arith.addf %5, %6 : vector<8x256xf32>
    %cst_5 = arith.constant 0.000000e+00 : f32
    %8 = vector.broadcast %cst_5 : f32 to vector<8x256xf32>
    %9 = arith.cmpf oge, %7, %8 : vector<8x256xf32>
    %cst_6 = arith.constant 2.000000e-01 : f32
    %10 = vector.broadcast %cst_6 : f32 to vector<8x256xf32>
    %11 = arith.mulf %10, %7 : vector<8x256xf32>
    %12 = arith.select %9, %7, %11 : vector<8x256xi1>, vector<8x256xf32>
    %13 = arith.truncf %12 : vector<8x256xf32> to vector<8x256xbf16>
    %14 = vector.extract_strided_slice %3 {offsets = [0, 256], sizes = [8, 256], strides = [1, 1]} : vector<8x1024xf32> to vector<8x256xf32>
    %15 = vector.broadcast %4 : vector<1x256xf32> to vector<8x256xf32>
    %16 = arith.addf %14, %15 : vector<8x256xf32>
    %cst_7 = arith.constant 0.000000e+00 : f32
    %17 = vector.broadcast %cst_7 : f32 to vector<8x256xf32>
    %18 = arith.cmpf oge, %16, %17 : vector<8x256xf32>
    %cst_8 = arith.constant 2.000000e-01 : f32
    %19 = vector.broadcast %cst_8 : f32 to vector<8x256xf32>
    %20 = arith.mulf %19, %16 : vector<8x256xf32>
    %21 = arith.select %18, %16, %20 : vector<8x256xi1>, vector<8x256xf32>
    %22 = arith.truncf %21 : vector<8x256xf32> to vector<8x256xbf16>
    %23 = vector.extract_strided_slice %3 {offsets = [0, 512], sizes = [8, 256], strides = [1, 1]} : vector<8x1024xf32> to vector<8x256xf32>
    %24 = vector.broadcast %4 : vector<1x256xf32> to vector<8x256xf32>
    %25 = arith.addf %23, %24 : vector<8x256xf32>
    %cst_9 = arith.constant 0.000000e+00 : f32
    %26 = vector.broadcast %cst_9 : f32 to vector<8x256xf32>
    %27 = arith.cmpf oge, %25, %26 : vector<8x256xf32>
    %cst_10 = arith.constant 2.000000e-01 : f32
    %28 = vector.broadcast %cst_10 : f32 to vector<8x256xf32>
    %29 = arith.mulf %28, %25 : vector<8x256xf32>
    %30 = arith.select %27, %25, %29 : vector<8x256xi1>, vector<8x256xf32>
    %31 = arith.truncf %30 : vector<8x256xf32> to vector<8x256xbf16>
    %32 = vector.extract_strided_slice %3 {offsets = [0, 768], sizes = [8, 256], strides = [1, 1]} : vector<8x1024xf32> to vector<8x256xf32>
    %33 = vector.broadcast %4 : vector<1x256xf32> to vector<8x256xf32>
    %34 = arith.addf %32, %33 : vector<8x256xf32>
    %cst_11 = arith.constant 0.000000e+00 : f32
    %35 = vector.broadcast %cst_11 : f32 to vector<8x256xf32>
    %36 = arith.cmpf oge, %34, %35 : vector<8x256xf32>
    %cst_12 = arith.constant 2.000000e-01 : f32
    %37 = vector.broadcast %cst_12 : f32 to vector<8x256xf32>
    %38 = arith.mulf %37, %34 : vector<8x256xf32>
    %39 = arith.select %36, %34, %38 : vector<8x256xi1>, vector<8x256xf32>
    %40 = arith.truncf %39 : vector<8x256xf32> to vector<8x256xbf16>
    %c0_13 = arith.constant 0 : index
    %c0_14 = arith.constant 0 : index
    %41 = vector.load %arg5[%c0_13, %c0_14] : memref<1x256xf32, #tpu.memory_space<vmem>>, vector<1x256xf32>
    %c0_15 = arith.constant 0 : index
    %c0_16 = arith.constant 0 : index
    %42 = vector.load %arg4[%c0_15, %c0_16] : memref<256x1024xbf16, #tpu.memory_space<vmem>>, vector<256x1024xbf16>
    %cst_17 = arith.constant dense<0.000000e+00> : vector<8x1024xf32>
    %43 = tpu.matmul %13, %42, %cst_17 {dimension_numbers = #tpu.dot_dimension_numbers<[1], [0], [0], [1], [0, 0, 1, 1], [], []>} : vector<8x256xbf16>, vector<256x1024xbf16>, vector<8x1024xf32> -> vector<8x1024xf32>
    %cst_18 = arith.constant dense<0.000000e+00> : vector<8x1024xf32>
    %44 = tpu.matmul %22, %42, %cst_18 {dimension_numbers = #tpu.dot_dimension_numbers<[1], [0], [0], [1], [0, 0, 1, 1], [], []>} : vector<8x256xbf16>, vector<256x1024xbf16>, vector<8x1024xf32> -> vector<8x1024xf32>
    %cst_19 = arith.constant dense<0.000000e+00> : vector<8x1024xf32>
    %45 = tpu.matmul %31, %42, %cst_19 {dimension_numbers = #tpu.dot_dimension_numbers<[1], [0], [0], [1], [0, 0, 1, 1], [], []>} : vector<8x256xbf16>, vector<256x1024xbf16>, vector<8x1024xf32> -> vector<8x1024xf32>
    %cst_20 = arith.constant dense<0.000000e+00> : vector<8x1024xf32>
    %46 = tpu.matmul %40, %42, %cst_20 {dimension_numbers = #tpu.dot_dimension_numbers<[1], [0], [0], [1], [0, 0, 1, 1], [], []>} : vector<8x256xbf16>, vector<256x1024xbf16>, vector<8x1024xf32> -> vector<8x1024xf32>
    %47 = vector.extract_strided_slice %43 {offsets = [0, 256], sizes = [8, 256], strides = [1, 1]} : vector<8x1024xf32> to vector<8x256xf32>
    %48 = vector.extract_strided_slice %43 {offsets = [0, 512], sizes = [8, 256], strides = [1, 1]} : vector<8x1024xf32> to vector<8x256xf32>
    %49 = vector.extract_strided_slice %44 {offsets = [0, 0], sizes = [8, 256], strides = [1, 1]} : vector<8x1024xf32> to vector<8x256xf32>
    %50 = arith.addf %48, %49 : vector<8x256xf32>
    %51 = vector.extract_strided_slice %44 {offsets = [0, 256], sizes = [8, 256], strides = [1, 1]} : vector<8x1024xf32> to vector<8x256xf32>
    %52 = vector.extract_strided_slice %43 {offsets = [0, 768], sizes = [8, 256], strides = [1, 1]} : vector<8x1024xf32> to vector<8x256xf32>
    %53 = arith.addf %51, %52 : vector<8x256xf32>
    %54 = vector.extract_strided_slice %44 {offsets = [0, 512], sizes = [8, 256], strides = [1, 1]} : vector<8x1024xf32> to vector<8x256xf32>
    %55 = vector.extract_strided_slice %45 {offsets = [0, 0], sizes = [8, 256], strides = [1, 1]} : vector<8x1024xf32> to vector<8x256xf32>
    %56 = arith.addf %54, %55 : vector<8x256xf32>
    %57 = vector.extract_strided_slice %45 {offsets = [0, 256], sizes = [8, 256], strides = [1, 1]} : vector<8x1024xf32> to vector<8x256xf32>
    %58 = vector.extract_strided_slice %44 {offsets = [0, 768], sizes = [8, 256], strides = [1, 1]} : vector<8x1024xf32> to vector<8x256xf32>
    %59 = arith.addf %57, %58 : vector<8x256xf32>
    %60 = vector.extract_strided_slice %45 {offsets = [0, 512], sizes = [8, 256], strides = [1, 1]} : vector<8x1024xf32> to vector<8x256xf32>
    %61 = vector.extract_strided_slice %46 {offsets = [0, 0], sizes = [8, 256], strides = [1, 1]} : vector<8x1024xf32> to vector<8x256xf32>
    %62 = arith.addf %60, %61 : vector<8x256xf32>
    %63 = vector.extract_strided_slice %46 {offsets = [0, 256], sizes = [8, 256], strides = [1, 1]} : vector<8x1024xf32> to vector<8x256xf32>
    %64 = vector.extract_strided_slice %45 {offsets = [0, 768], sizes = [8, 256], strides = [1, 1]} : vector<8x1024xf32> to vector<8x256xf32>
    %65 = arith.addf %63, %64 : vector<8x256xf32>
    %66 = vector.extract_strided_slice %46 {offsets = [0, 512], sizes = [8, 256], strides = [1, 1]} : vector<8x1024xf32> to vector<8x256xf32>
    %67 = vector.broadcast %41 : vector<1x256xf32> to vector<8x256xf32>
    %68 = arith.addf %47, %67 : vector<8x256xf32>
    %cst_21 = arith.constant 0.000000e+00 : f32
    %69 = vector.broadcast %cst_21 : f32 to vector<8x256xf32>
    %70 = arith.cmpf oge, %68, %69 : vector<8x256xf32>
    %cst_22 = arith.constant 2.000000e-01 : f32
    %71 = vector.broadcast %cst_22 : f32 to vector<8x256xf32>
    %72 = arith.mulf %71, %68 : vector<8x256xf32>
    %73 = arith.select %70, %68, %72 : vector<8x256xi1>, vector<8x256xf32>
    %74 = arith.truncf %73 : vector<8x256xf32> to vector<8x256xbf16>
    %75 = vector.broadcast %41 : vector<1x256xf32> to vector<8x256xf32>
    %76 = arith.addf %50, %75 : vector<8x256xf32>
    %cst_23 = arith.constant 0.000000e+00 : f32
    %77 = vector.broadcast %cst_23 : f32 to vector<8x256xf32>
    %78 = arith.cmpf oge, %76, %77 : vector<8x256xf32>
    %cst_24 = arith.constant 2.000000e-01 : f32
    %79 = vector.broadcast %cst_24 : f32 to vector<8x256xf32>
    %80 = arith.mulf %79, %76 : vector<8x256xf32>
    %81 = arith.select %78, %76, %80 : vector<8x256xi1>, vector<8x256xf32>
    %82 = arith.truncf %81 : vector<8x256xf32> to vector<8x256xbf16>
    %83 = vector.broadcast %41 : vector<1x256xf32> to vector<8x256xf32>
    %84 = arith.addf %53, %83 : vector<8x256xf32>
    %cst_25 = arith.constant 0.000000e+00 : f32
    %85 = vector.broadcast %cst_25 : f32 to vector<8x256xf32>
    %86 = arith.cmpf oge, %84, %85 : vector<8x256xf32>
    %cst_26 = arith.constant 2.000000e-01 : f32
    %87 = vector.broadcast %cst_26 : f32 to vector<8x256xf32>
    %88 = arith.mulf %87, %84 : vector<8x256xf32>
    %89 = arith.select %86, %84, %88 : vector<8x256xi1>, vector<8x256xf32>
    %90 = arith.truncf %89 : vector<8x256xf32> to vector<8x256xbf16>
    %91 = vector.broadcast %41 : vector<1x256xf32> to vector<8x256xf32>
    %92 = arith.addf %56, %91 : vector<8x256xf32>
    %cst_27 = arith.constant 0.000000e+00 : f32
    %93 = vector.broadcast %cst_27 : f32 to vector<8x256xf32>
    %94 = arith.cmpf oge, %92, %93 : vector<8x256xf32>
    %cst_28 = arith.constant 2.000000e-01 : f32
    %95 = vector.broadcast %cst_28 : f32 to vector<8x256xf32>
    %96 = arith.mulf %95, %92 : vector<8x256xf32>
    %97 = arith.select %94, %92, %96 : vector<8x256xi1>, vector<8x256xf32>
    %98 = arith.truncf %97 : vector<8x256xf32> to vector<8x256xbf16>
    %99 = vector.broadcast %41 : vector<1x256xf32> to vector<8x256xf32>
    %100 = arith.addf %59, %99 : vector<8x256xf32>
    %cst_29 = arith.constant 0.000000e+00 : f32
    %101 = vector.broadcast %cst_29 : f32 to vector<8x256xf32>
    %102 = arith.cmpf oge, %100, %101 : vector<8x256xf32>
    %cst_30 = arith.constant 2.000000e-01 : f32
    %103 = vector.broadcast %cst_30 : f32 to vector<8x256xf32>
    %104 = arith.mulf %103, %100 : vector<8x256xf32>
    %105 = arith.select %102, %100, %104 : vector<8x256xi1>, vector<8x256xf32>
    %106 = arith.truncf %105 : vector<8x256xf32> to vector<8x256xbf16>
    %107 = vector.broadcast %41 : vector<1x256xf32> to vector<8x256xf32>
    %108 = arith.addf %62, %107 : vector<8x256xf32>
    %cst_31 = arith.constant 0.000000e+00 : f32
    %109 = vector.broadcast %cst_31 : f32 to vector<8x256xf32>
    %110 = arith.cmpf oge, %108, %109 : vector<8x256xf32>
    %cst_32 = arith.constant 2.000000e-01 : f32
    %111 = vector.broadcast %cst_32 : f32 to vector<8x256xf32>
    %112 = arith.mulf %111, %108 : vector<8x256xf32>
    %113 = arith.select %110, %108, %112 : vector<8x256xi1>, vector<8x256xf32>
    %114 = arith.truncf %113 : vector<8x256xf32> to vector<8x256xbf16>
    %115 = vector.broadcast %41 : vector<1x256xf32> to vector<8x256xf32>
    %116 = arith.addf %65, %115 : vector<8x256xf32>
    %cst_33 = arith.constant 0.000000e+00 : f32
    %117 = vector.broadcast %cst_33 : f32 to vector<8x256xf32>
    %118 = arith.cmpf oge, %116, %117 : vector<8x256xf32>
    %cst_34 = arith.constant 2.000000e-01 : f32
    %119 = vector.broadcast %cst_34 : f32 to vector<8x256xf32>
    %120 = arith.mulf %119, %116 : vector<8x256xf32>
    %121 = arith.select %118, %116, %120 : vector<8x256xi1>, vector<8x256xf32>
    %122 = arith.truncf %121 : vector<8x256xf32> to vector<8x256xbf16>
    %123 = vector.broadcast %41 : vector<1x256xf32> to vector<8x256xf32>
    %124 = arith.addf %66, %123 : vector<8x256xf32>
    %cst_35 = arith.constant 0.000000e+00 : f32
    %125 = vector.broadcast %cst_35 : f32 to vector<8x256xf32>
    %126 = arith.cmpf oge, %124, %125 : vector<8x256xf32>
    %cst_36 = arith.constant 2.000000e-01 : f32
    %127 = vector.broadcast %cst_36 : f32 to vector<8x256xf32>
    %128 = arith.mulf %127, %124 : vector<8x256xf32>
    %129 = arith.select %126, %124, %128 : vector<8x256xi1>, vector<8x256xf32>
    %130 = arith.truncf %129 : vector<8x256xf32> to vector<8x256xbf16>
    %c0_37 = arith.constant 0 : index
    %c0_38 = arith.constant 0 : index
    %131 = vector.load %arg7[%c0_37, %c0_38] : memref<1x256xf32, #tpu.memory_space<vmem>>, vector<1x256xf32>
    %c0_39 = arith.constant 0 : index
    %c0_40 = arith.constant 0 : index
    %132 = vector.load %arg6[%c0_39, %c0_40] : memref<256x1024xbf16, #tpu.memory_space<vmem>>, vector<256x1024xbf16>
    %cst_41 = arith.constant dense<0.000000e+00> : vector<8x1024xf32>
    %133 = tpu.matmul %74, %132, %cst_41 {dimension_numbers = #tpu.dot_dimension_numbers<[1], [0], [0], [1], [0, 0, 1, 1], [], []>} : vector<8x256xbf16>, vector<256x1024xbf16>, vector<8x1024xf32> -> vector<8x1024xf32>
    %cst_42 = arith.constant dense<0.000000e+00> : vector<8x1024xf32>
    %134 = tpu.matmul %82, %132, %cst_42 {dimension_numbers = #tpu.dot_dimension_numbers<[1], [0], [0], [1], [0, 0, 1, 1], [], []>} : vector<8x256xbf16>, vector<256x1024xbf16>, vector<8x1024xf32> -> vector<8x1024xf32>
    %cst_43 = arith.constant dense<0.000000e+00> : vector<8x1024xf32>
    %135 = tpu.matmul %90, %132, %cst_43 {dimension_numbers = #tpu.dot_dimension_numbers<[1], [0], [0], [1], [0, 0, 1, 1], [], []>} : vector<8x256xbf16>, vector<256x1024xbf16>, vector<8x1024xf32> -> vector<8x1024xf32>
    %cst_44 = arith.constant dense<0.000000e+00> : vector<8x1024xf32>
    %136 = tpu.matmul %98, %132, %cst_44 {dimension_numbers = #tpu.dot_dimension_numbers<[1], [0], [0], [1], [0, 0, 1, 1], [], []>} : vector<8x256xbf16>, vector<256x1024xbf16>, vector<8x1024xf32> -> vector<8x1024xf32>
    %cst_45 = arith.constant dense<0.000000e+00> : vector<8x1024xf32>
    %137 = tpu.matmul %106, %132, %cst_45 {dimension_numbers = #tpu.dot_dimension_numbers<[1], [0], [0], [1], [0, 0, 1, 1], [], []>} : vector<8x256xbf16>, vector<256x1024xbf16>, vector<8x1024xf32> -> vector<8x1024xf32>
    %cst_46 = arith.constant dense<0.000000e+00> : vector<8x1024xf32>
    %138 = tpu.matmul %114, %132, %cst_46 {dimension_numbers = #tpu.dot_dimension_numbers<[1], [0], [0], [1], [0, 0, 1, 1], [], []>} : vector<8x256xbf16>, vector<256x1024xbf16>, vector<8x1024xf32> -> vector<8x1024xf32>
    %cst_47 = arith.constant dense<0.000000e+00> : vector<8x1024xf32>
    %139 = tpu.matmul %122, %132, %cst_47 {dimension_numbers = #tpu.dot_dimension_numbers<[1], [0], [0], [1], [0, 0, 1, 1], [], []>} : vector<8x256xbf16>, vector<256x1024xbf16>, vector<8x1024xf32> -> vector<8x1024xf32>
    %cst_48 = arith.constant dense<0.000000e+00> : vector<8x1024xf32>
    %140 = tpu.matmul %130, %132, %cst_48 {dimension_numbers = #tpu.dot_dimension_numbers<[1], [0], [0], [1], [0, 0, 1, 1], [], []>} : vector<8x256xbf16>, vector<256x1024xbf16>, vector<8x1024xf32> -> vector<8x1024xf32>
    %141 = vector.extract_strided_slice %133 {offsets = [0, 256], sizes = [8, 256], strides = [1, 1]} : vector<8x1024xf32> to vector<8x256xf32>
    %142 = vector.extract_strided_slice %133 {offsets = [0, 512], sizes = [8, 256], strides = [1, 1]} : vector<8x1024xf32> to vector<8x256xf32>
    %143 = vector.extract_strided_slice %134 {offsets = [0, 0], sizes = [8, 256], strides = [1, 1]} : vector<8x1024xf32> to vector<8x256xf32>
    %144 = arith.addf %142, %143 : vector<8x256xf32>
    %145 = vector.extract_strided_slice %134 {offsets = [0, 256], sizes = [8, 256], strides = [1, 1]} : vector<8x1024xf32> to vector<8x256xf32>
    %146 = vector.extract_strided_slice %133 {offsets = [0, 768], sizes = [8, 256], strides = [1, 1]} : vector<8x1024xf32> to vector<8x256xf32>
    %147 = arith.addf %145, %146 : vector<8x256xf32>
    %148 = vector.extract_strided_slice %134 {offsets = [0, 512], sizes = [8, 256], strides = [1, 1]} : vector<8x1024xf32> to vector<8x256xf32>
    %149 = vector.extract_strided_slice %135 {offsets = [0, 0], sizes = [8, 256], strides = [1, 1]} : vector<8x1024xf32> to vector<8x256xf32>
    %150 = arith.addf %148, %149 : vector<8x256xf32>
    %151 = vector.extract_strided_slice %135 {offsets = [0, 256], sizes = [8, 256], strides = [1, 1]} : vector<8x1024xf32> to vector<8x256xf32>
    %152 = vector.extract_strided_slice %134 {offsets = [0, 768], sizes = [8, 256], strides = [1, 1]} : vector<8x1024xf32> to vector<8x256xf32>
    %153 = arith.addf %151, %152 : vector<8x256xf32>
    %154 = vector.extract_strided_slice %135 {offsets = [0, 512], sizes = [8, 256], strides = [1, 1]} : vector<8x1024xf32> to vector<8x256xf32>
    %155 = vector.extract_strided_slice %136 {offsets = [0, 0], sizes = [8, 256], strides = [1, 1]} : vector<8x1024xf32> to vector<8x256xf32>
    %156 = arith.addf %154, %155 : vector<8x256xf32>
    %157 = vector.extract_strided_slice %136 {offsets = [0, 256], sizes = [8, 256], strides = [1, 1]} : vector<8x1024xf32> to vector<8x256xf32>
    %158 = vector.extract_strided_slice %135 {offsets = [0, 768], sizes = [8, 256], strides = [1, 1]} : vector<8x1024xf32> to vector<8x256xf32>
    %159 = arith.addf %157, %158 : vector<8x256xf32>
    %160 = vector.extract_strided_slice %136 {offsets = [0, 512], sizes = [8, 256], strides = [1, 1]} : vector<8x1024xf32> to vector<8x256xf32>
    %161 = vector.extract_strided_slice %137 {offsets = [0, 0], sizes = [8, 256], strides = [1, 1]} : vector<8x1024xf32> to vector<8x256xf32>
    %162 = arith.addf %160, %161 : vector<8x256xf32>
    %163 = vector.extract_strided_slice %137 {offsets = [0, 256], sizes = [8, 256], strides = [1, 1]} : vector<8x1024xf32> to vector<8x256xf32>
    %164 = vector.extract_strided_slice %136 {offsets = [0, 768], sizes = [8, 256], strides = [1, 1]} : vector<8x1024xf32> to vector<8x256xf32>
    %165 = arith.addf %163, %164 : vector<8x256xf32>
    %166 = vector.extract_strided_slice %137 {offsets = [0, 512], sizes = [8, 256], strides = [1, 1]} : vector<8x1024xf32> to vector<8x256xf32>
    %167 = vector.extract_strided_slice %138 {offsets = [0, 0], sizes = [8, 256], strides = [1, 1]} : vector<8x1024xf32> to vector<8x256xf32>
    %168 = arith.addf %166, %167 : vector<8x256xf32>
    %169 = vector.extract_strided_slice %138 {offsets = [0, 256], sizes = [8, 256], strides = [1, 1]} : vector<8x1024xf32> to vector<8x256xf32>
    %170 = vector.extract_strided_slice %137 {offsets = [0, 768], sizes = [8, 256], strides = [1, 1]} : vector<8x1024xf32> to vector<8x256xf32>
    %171 = arith.addf %169, %170 : vector<8x256xf32>
    %172 = vector.extract_strided_slice %138 {offsets = [0, 512], sizes = [8, 256], strides = [1, 1]} : vector<8x1024xf32> to vector<8x256xf32>
    %173 = vector.extract_strided_slice %139 {offsets = [0, 0], sizes = [8, 256], strides = [1, 1]} : vector<8x1024xf32> to vector<8x256xf32>
    %174 = arith.addf %172, %173 : vector<8x256xf32>
    %175 = vector.extract_strided_slice %139 {offsets = [0, 256], sizes = [8, 256], strides = [1, 1]} : vector<8x1024xf32> to vector<8x256xf32>
    %176 = vector.extract_strided_slice %138 {offsets = [0, 768], sizes = [8, 256], strides = [1, 1]} : vector<8x1024xf32> to vector<8x256xf32>
    %177 = arith.addf %175, %176 : vector<8x256xf32>
    %178 = vector.extract_strided_slice %139 {offsets = [0, 512], sizes = [8, 256], strides = [1, 1]} : vector<8x1024xf32> to vector<8x256xf32>
    %179 = vector.extract_strided_slice %140 {offsets = [0, 0], sizes = [8, 256], strides = [1, 1]} : vector<8x1024xf32> to vector<8x256xf32>
    %180 = arith.addf %178, %179 : vector<8x256xf32>
    %181 = vector.extract_strided_slice %140 {offsets = [0, 256], sizes = [8, 256], strides = [1, 1]} : vector<8x1024xf32> to vector<8x256xf32>
    %182 = vector.extract_strided_slice %139 {offsets = [0, 768], sizes = [8, 256], strides = [1, 1]} : vector<8x1024xf32> to vector<8x256xf32>
    %183 = arith.addf %181, %182 : vector<8x256xf32>
    %184 = vector.extract_strided_slice %140 {offsets = [0, 512], sizes = [8, 256], strides = [1, 1]} : vector<8x1024xf32> to vector<8x256xf32>
    %185 = vector.broadcast %131 : vector<1x256xf32> to vector<8x256xf32>
    %186 = arith.addf %141, %185 : vector<8x256xf32>
    %cst_49 = arith.constant 0.000000e+00 : f32
    %187 = vector.broadcast %cst_49 : f32 to vector<8x256xf32>
    %188 = arith.cmpf oge, %186, %187 : vector<8x256xf32>
    %cst_50 = arith.constant 2.000000e-01 : f32
    %189 = vector.broadcast %cst_50 : f32 to vector<8x256xf32>
    %190 = arith.mulf %189, %186 : vector<8x256xf32>
    %191 = arith.select %188, %186, %190 : vector<8x256xi1>, vector<8x256xf32>
    %192 = arith.truncf %191 : vector<8x256xf32> to vector<8x256xbf16>
    %193 = vector.broadcast %131 : vector<1x256xf32> to vector<8x256xf32>
    %194 = arith.addf %144, %193 : vector<8x256xf32>
    %cst_51 = arith.constant 0.000000e+00 : f32
    %195 = vector.broadcast %cst_51 : f32 to vector<8x256xf32>
    %196 = arith.cmpf oge, %194, %195 : vector<8x256xf32>
    %cst_52 = arith.constant 2.000000e-01 : f32
    %197 = vector.broadcast %cst_52 : f32 to vector<8x256xf32>
    %198 = arith.mulf %197, %194 : vector<8x256xf32>
    %199 = arith.select %196, %194, %198 : vector<8x256xi1>, vector<8x256xf32>
    %200 = arith.truncf %199 : vector<8x256xf32> to vector<8x256xbf16>
    %201 = vector.broadcast %131 : vector<1x256xf32> to vector<8x256xf32>
    %202 = arith.addf %147, %201 : vector<8x256xf32>
    %cst_53 = arith.constant 0.000000e+00 : f32
    %203 = vector.broadcast %cst_53 : f32 to vector<8x256xf32>
    %204 = arith.cmpf oge, %202, %203 : vector<8x256xf32>
    %cst_54 = arith.constant 2.000000e-01 : f32
    %205 = vector.broadcast %cst_54 : f32 to vector<8x256xf32>
    %206 = arith.mulf %205, %202 : vector<8x256xf32>
    %207 = arith.select %204, %202, %206 : vector<8x256xi1>, vector<8x256xf32>
    %208 = arith.truncf %207 : vector<8x256xf32> to vector<8x256xbf16>
    %209 = vector.broadcast %131 : vector<1x256xf32> to vector<8x256xf32>
    %210 = arith.addf %150, %209 : vector<8x256xf32>
    %cst_55 = arith.constant 0.000000e+00 : f32
    %211 = vector.broadcast %cst_55 : f32 to vector<8x256xf32>
    %212 = arith.cmpf oge, %210, %211 : vector<8x256xf32>
    %cst_56 = arith.constant 2.000000e-01 : f32
    %213 = vector.broadcast %cst_56 : f32 to vector<8x256xf32>
    %214 = arith.mulf %213, %210 : vector<8x256xf32>
    %215 = arith.select %212, %210, %214 : vector<8x256xi1>, vector<8x256xf32>
    %216 = arith.truncf %215 : vector<8x256xf32> to vector<8x256xbf16>
    %217 = vector.broadcast %131 : vector<1x256xf32> to vector<8x256xf32>
    %218 = arith.addf %153, %217 : vector<8x256xf32>
    %cst_57 = arith.constant 0.000000e+00 : f32
    %219 = vector.broadcast %cst_57 : f32 to vector<8x256xf32>
    %220 = arith.cmpf oge, %218, %219 : vector<8x256xf32>
    %cst_58 = arith.constant 2.000000e-01 : f32
    %221 = vector.broadcast %cst_58 : f32 to vector<8x256xf32>
    %222 = arith.mulf %221, %218 : vector<8x256xf32>
    %223 = arith.select %220, %218, %222 : vector<8x256xi1>, vector<8x256xf32>
    %224 = arith.truncf %223 : vector<8x256xf32> to vector<8x256xbf16>
    %225 = vector.broadcast %131 : vector<1x256xf32> to vector<8x256xf32>
    %226 = arith.addf %156, %225 : vector<8x256xf32>
    %cst_59 = arith.constant 0.000000e+00 : f32
    %227 = vector.broadcast %cst_59 : f32 to vector<8x256xf32>
    %228 = arith.cmpf oge, %226, %227 : vector<8x256xf32>
    %cst_60 = arith.constant 2.000000e-01 : f32
    %229 = vector.broadcast %cst_60 : f32 to vector<8x256xf32>
    %230 = arith.mulf %229, %226 : vector<8x256xf32>
    %231 = arith.select %228, %226, %230 : vector<8x256xi1>, vector<8x256xf32>
    %232 = arith.truncf %231 : vector<8x256xf32> to vector<8x256xbf16>
    %233 = vector.broadcast %131 : vector<1x256xf32> to vector<8x256xf32>
    %234 = arith.addf %159, %233 : vector<8x256xf32>
    %cst_61 = arith.constant 0.000000e+00 : f32
    %235 = vector.broadcast %cst_61 : f32 to vector<8x256xf32>
    %236 = arith.cmpf oge, %234, %235 : vector<8x256xf32>
    %cst_62 = arith.constant 2.000000e-01 : f32
    %237 = vector.broadcast %cst_62 : f32 to vector<8x256xf32>
    %238 = arith.mulf %237, %234 : vector<8x256xf32>
    %239 = arith.select %236, %234, %238 : vector<8x256xi1>, vector<8x256xf32>
    %240 = arith.truncf %239 : vector<8x256xf32> to vector<8x256xbf16>
    %241 = vector.broadcast %131 : vector<1x256xf32> to vector<8x256xf32>
    %242 = arith.addf %162, %241 : vector<8x256xf32>
    %cst_63 = arith.constant 0.000000e+00 : f32
    %243 = vector.broadcast %cst_63 : f32 to vector<8x256xf32>
    %244 = arith.cmpf oge, %242, %243 : vector<8x256xf32>
    %cst_64 = arith.constant 2.000000e-01 : f32
    %245 = vector.broadcast %cst_64 : f32 to vector<8x256xf32>
    %246 = arith.mulf %245, %242 : vector<8x256xf32>
    %247 = arith.select %244, %242, %246 : vector<8x256xi1>, vector<8x256xf32>
    %248 = arith.truncf %247 : vector<8x256xf32> to vector<8x256xbf16>
    %249 = vector.broadcast %131 : vector<1x256xf32> to vector<8x256xf32>
    %250 = arith.addf %165, %249 : vector<8x256xf32>
    %cst_65 = arith.constant 0.000000e+00 : f32
    %251 = vector.broadcast %cst_65 : f32 to vector<8x256xf32>
    %252 = arith.cmpf oge, %250, %251 : vector<8x256xf32>
    %cst_66 = arith.constant 2.000000e-01 : f32
    %253 = vector.broadcast %cst_66 : f32 to vector<8x256xf32>
    %254 = arith.mulf %253, %250 : vector<8x256xf32>
    %255 = arith.select %252, %250, %254 : vector<8x256xi1>, vector<8x256xf32>
    %256 = arith.truncf %255 : vector<8x256xf32> to vector<8x256xbf16>
    %257 = vector.broadcast %131 : vector<1x256xf32> to vector<8x256xf32>
    %258 = arith.addf %168, %257 : vector<8x256xf32>
    %cst_67 = arith.constant 0.000000e+00 : f32
    %259 = vector.broadcast %cst_67 : f32 to vector<8x256xf32>
    %260 = arith.cmpf oge, %258, %259 : vector<8x256xf32>
    %cst_68 = arith.constant 2.000000e-01 : f32
    %261 = vector.broadcast %cst_68 : f32 to vector<8x256xf32>
    %262 = arith.mulf %261, %258 : vector<8x256xf32>
    %263 = arith.select %260, %258, %262 : vector<8x256xi1>, vector<8x256xf32>
    %264 = arith.truncf %263 : vector<8x256xf32> to vector<8x256xbf16>
    %265 = vector.broadcast %131 : vector<1x256xf32> to vector<8x256xf32>
    %266 = arith.addf %171, %265 : vector<8x256xf32>
    %cst_69 = arith.constant 0.000000e+00 : f32
    %267 = vector.broadcast %cst_69 : f32 to vector<8x256xf32>
    %268 = arith.cmpf oge, %266, %267 : vector<8x256xf32>
    %cst_70 = arith.constant 2.000000e-01 : f32
    %269 = vector.broadcast %cst_70 : f32 to vector<8x256xf32>
    %270 = arith.mulf %269, %266 : vector<8x256xf32>
    %271 = arith.select %268, %266, %270 : vector<8x256xi1>, vector<8x256xf32>
    %272 = arith.truncf %271 : vector<8x256xf32> to vector<8x256xbf16>
    %273 = vector.broadcast %131 : vector<1x256xf32> to vector<8x256xf32>
    %274 = arith.addf %174, %273 : vector<8x256xf32>
    %cst_71 = arith.constant 0.000000e+00 : f32
    %275 = vector.broadcast %cst_71 : f32 to vector<8x256xf32>
    %276 = arith.cmpf oge, %274, %275 : vector<8x256xf32>
    %cst_72 = arith.constant 2.000000e-01 : f32
    %277 = vector.broadcast %cst_72 : f32 to vector<8x256xf32>
    %278 = arith.mulf %277, %274 : vector<8x256xf32>
    %279 = arith.select %276, %274, %278 : vector<8x256xi1>, vector<8x256xf32>
    %280 = arith.truncf %279 : vector<8x256xf32> to vector<8x256xbf16>
    %281 = vector.broadcast %131 : vector<1x256xf32> to vector<8x256xf32>
    %282 = arith.addf %177, %281 : vector<8x256xf32>
    %cst_73 = arith.constant 0.000000e+00 : f32
    %283 = vector.broadcast %cst_73 : f32 to vector<8x256xf32>
    %284 = arith.cmpf oge, %282, %283 : vector<8x256xf32>
    %cst_74 = arith.constant 2.000000e-01 : f32
    %285 = vector.broadcast %cst_74 : f32 to vector<8x256xf32>
    %286 = arith.mulf %285, %282 : vector<8x256xf32>
    %287 = arith.select %284, %282, %286 : vector<8x256xi1>, vector<8x256xf32>
    %288 = arith.truncf %287 : vector<8x256xf32> to vector<8x256xbf16>
    %289 = vector.broadcast %131 : vector<1x256xf32> to vector<8x256xf32>
    %290 = arith.addf %180, %289 : vector<8x256xf32>
    %cst_75 = arith.constant 0.000000e+00 : f32
    %291 = vector.broadcast %cst_75 : f32 to vector<8x256xf32>
    %292 = arith.cmpf oge, %290, %291 : vector<8x256xf32>
    %cst_76 = arith.constant 2.000000e-01 : f32
    %293 = vector.broadcast %cst_76 : f32 to vector<8x256xf32>
    %294 = arith.mulf %293, %290 : vector<8x256xf32>
    %295 = arith.select %292, %290, %294 : vector<8x256xi1>, vector<8x256xf32>
    %296 = arith.truncf %295 : vector<8x256xf32> to vector<8x256xbf16>
    %297 = vector.broadcast %131 : vector<1x256xf32> to vector<8x256xf32>
    %298 = arith.addf %183, %297 : vector<8x256xf32>
    %cst_77 = arith.constant 0.000000e+00 : f32
    %299 = vector.broadcast %cst_77 : f32 to vector<8x256xf32>
    %300 = arith.cmpf oge, %298, %299 : vector<8x256xf32>
    %cst_78 = arith.constant 2.000000e-01 : f32
    %301 = vector.broadcast %cst_78 : f32 to vector<8x256xf32>
    %302 = arith.mulf %301, %298 : vector<8x256xf32>
    %303 = arith.select %300, %298, %302 : vector<8x256xi1>, vector<8x256xf32>
    %304 = arith.truncf %303 : vector<8x256xf32> to vector<8x256xbf16>
    %305 = vector.broadcast %131 : vector<1x256xf32> to vector<8x256xf32>
    %306 = arith.addf %184, %305 : vector<8x256xf32>
    %cst_79 = arith.constant 0.000000e+00 : f32
    %307 = vector.broadcast %cst_79 : f32 to vector<8x256xf32>
    %308 = arith.cmpf oge, %306, %307 : vector<8x256xf32>
    %cst_80 = arith.constant 2.000000e-01 : f32
    %309 = vector.broadcast %cst_80 : f32 to vector<8x256xf32>
    %310 = arith.mulf %309, %306 : vector<8x256xf32>
    %311 = arith.select %308, %306, %310 : vector<8x256xi1>, vector<8x256xf32>
    %312 = arith.truncf %311 : vector<8x256xf32> to vector<8x256xbf16>
    %c0_81 = arith.constant 0 : index
    %c0_82 = arith.constant 0 : index
    %313 = vector.load %arg8[%c0_81, %c0_82] : memref<256x128xbf16, #tpu.memory_space<vmem>>, vector<256x128xbf16>
    %cst_83 = arith.constant dense<0.000000e+00> : vector<8x128xf32>
    %314 = tpu.matmul %192, %313, %cst_83 {dimension_numbers = #tpu.dot_dimension_numbers<[1], [0], [0], [1], [0, 0, 1, 1], [], []>} : vector<8x256xbf16>, vector<256x128xbf16>, vector<8x128xf32> -> vector<8x128xf32>
    %cst_84 = arith.constant dense<0.000000e+00> : vector<8x128xf32>
    %315 = tpu.matmul %200, %313, %cst_84 {dimension_numbers = #tpu.dot_dimension_numbers<[1], [0], [0], [1], [0, 0, 1, 1], [], []>} : vector<8x256xbf16>, vector<256x128xbf16>, vector<8x128xf32> -> vector<8x128xf32>
    %cst_85 = arith.constant dense<0.000000e+00> : vector<8x128xf32>
    %316 = tpu.matmul %208, %313, %cst_85 {dimension_numbers = #tpu.dot_dimension_numbers<[1], [0], [0], [1], [0, 0, 1, 1], [], []>} : vector<8x256xbf16>, vector<256x128xbf16>, vector<8x128xf32> -> vector<8x128xf32>
    %cst_86 = arith.constant dense<0.000000e+00> : vector<8x128xf32>
    %317 = tpu.matmul %216, %313, %cst_86 {dimension_numbers = #tpu.dot_dimension_numbers<[1], [0], [0], [1], [0, 0, 1, 1], [], []>} : vector<8x256xbf16>, vector<256x128xbf16>, vector<8x128xf32> -> vector<8x128xf32>
    %cst_87 = arith.constant dense<0.000000e+00> : vector<8x128xf32>
    %318 = tpu.matmul %224, %313, %cst_87 {dimension_numbers = #tpu.dot_dimension_numbers<[1], [0], [0], [1], [0, 0, 1, 1], [], []>} : vector<8x256xbf16>, vector<256x128xbf16>, vector<8x128xf32> -> vector<8x128xf32>
    %cst_88 = arith.constant dense<0.000000e+00> : vector<8x128xf32>
    %319 = tpu.matmul %232, %313, %cst_88 {dimension_numbers = #tpu.dot_dimension_numbers<[1], [0], [0], [1], [0, 0, 1, 1], [], []>} : vector<8x256xbf16>, vector<256x128xbf16>, vector<8x128xf32> -> vector<8x128xf32>
    %cst_89 = arith.constant dense<0.000000e+00> : vector<8x128xf32>
    %320 = tpu.matmul %240, %313, %cst_89 {dimension_numbers = #tpu.dot_dimension_numbers<[1], [0], [0], [1], [0, 0, 1, 1], [], []>} : vector<8x256xbf16>, vector<256x128xbf16>, vector<8x128xf32> -> vector<8x128xf32>
    %cst_90 = arith.constant dense<0.000000e+00> : vector<8x128xf32>
    %321 = tpu.matmul %248, %313, %cst_90 {dimension_numbers = #tpu.dot_dimension_numbers<[1], [0], [0], [1], [0, 0, 1, 1], [], []>} : vector<8x256xbf16>, vector<256x128xbf16>, vector<8x128xf32> -> vector<8x128xf32>
    %cst_91 = arith.constant dense<0.000000e+00> : vector<8x128xf32>
    %322 = tpu.matmul %256, %313, %cst_91 {dimension_numbers = #tpu.dot_dimension_numbers<[1], [0], [0], [1], [0, 0, 1, 1], [], []>} : vector<8x256xbf16>, vector<256x128xbf16>, vector<8x128xf32> -> vector<8x128xf32>
    %cst_92 = arith.constant dense<0.000000e+00> : vector<8x128xf32>
    %323 = tpu.matmul %264, %313, %cst_92 {dimension_numbers = #tpu.dot_dimension_numbers<[1], [0], [0], [1], [0, 0, 1, 1], [], []>} : vector<8x256xbf16>, vector<256x128xbf16>, vector<8x128xf32> -> vector<8x128xf32>
    %cst_93 = arith.constant dense<0.000000e+00> : vector<8x128xf32>
    %324 = tpu.matmul %272, %313, %cst_93 {dimension_numbers = #tpu.dot_dimension_numbers<[1], [0], [0], [1], [0, 0, 1, 1], [], []>} : vector<8x256xbf16>, vector<256x128xbf16>, vector<8x128xf32> -> vector<8x128xf32>
    %cst_94 = arith.constant dense<0.000000e+00> : vector<8x128xf32>
    %325 = tpu.matmul %280, %313, %cst_94 {dimension_numbers = #tpu.dot_dimension_numbers<[1], [0], [0], [1], [0, 0, 1, 1], [], []>} : vector<8x256xbf16>, vector<256x128xbf16>, vector<8x128xf32> -> vector<8x128xf32>
    %cst_95 = arith.constant dense<0.000000e+00> : vector<8x128xf32>
    %326 = tpu.matmul %288, %313, %cst_95 {dimension_numbers = #tpu.dot_dimension_numbers<[1], [0], [0], [1], [0, 0, 1, 1], [], []>} : vector<8x256xbf16>, vector<256x128xbf16>, vector<8x128xf32> -> vector<8x128xf32>
    %cst_96 = arith.constant dense<0.000000e+00> : vector<8x128xf32>
    %327 = tpu.matmul %296, %313, %cst_96 {dimension_numbers = #tpu.dot_dimension_numbers<[1], [0], [0], [1], [0, 0, 1, 1], [], []>} : vector<8x256xbf16>, vector<256x128xbf16>, vector<8x128xf32> -> vector<8x128xf32>
    %cst_97 = arith.constant dense<0.000000e+00> : vector<8x128xf32>
    %328 = tpu.matmul %304, %313, %cst_97 {dimension_numbers = #tpu.dot_dimension_numbers<[1], [0], [0], [1], [0, 0, 1, 1], [], []>} : vector<8x256xbf16>, vector<256x128xbf16>, vector<8x128xf32> -> vector<8x128xf32>
    %cst_98 = arith.constant dense<0.000000e+00> : vector<8x128xf32>
    %329 = tpu.matmul %312, %313, %cst_98 {dimension_numbers = #tpu.dot_dimension_numbers<[1], [0], [0], [1], [0, 0, 1, 1], [], []>} : vector<8x256xbf16>, vector<256x128xbf16>, vector<8x128xf32> -> vector<8x128xf32>
    %330 = vector.extract_strided_slice %314 {offsets = [0, 32], sizes = [8, 32], strides = [1, 1]} : vector<8x128xf32> to vector<8x32xf32>
    %331 = vector.extract_strided_slice %314 {offsets = [0, 64], sizes = [8, 32], strides = [1, 1]} : vector<8x128xf32> to vector<8x32xf32>
    %332 = vector.extract_strided_slice %315 {offsets = [0, 0], sizes = [8, 32], strides = [1, 1]} : vector<8x128xf32> to vector<8x32xf32>
    %333 = arith.addf %331, %332 : vector<8x32xf32>
    %334 = vector.extract_strided_slice %315 {offsets = [0, 32], sizes = [8, 32], strides = [1, 1]} : vector<8x128xf32> to vector<8x32xf32>
    %335 = vector.extract_strided_slice %314 {offsets = [0, 96], sizes = [8, 32], strides = [1, 1]} : vector<8x128xf32> to vector<8x32xf32>
    %336 = arith.addf %334, %335 : vector<8x32xf32>
    %337 = vector.extract_strided_slice %315 {offsets = [0, 64], sizes = [8, 32], strides = [1, 1]} : vector<8x128xf32> to vector<8x32xf32>
    %338 = vector.extract_strided_slice %316 {offsets = [0, 0], sizes = [8, 32], strides = [1, 1]} : vector<8x128xf32> to vector<8x32xf32>
    %339 = arith.addf %337, %338 : vector<8x32xf32>
    %340 = vector.extract_strided_slice %316 {offsets = [0, 32], sizes = [8, 32], strides = [1, 1]} : vector<8x128xf32> to vector<8x32xf32>
    %341 = vector.extract_strided_slice %315 {offsets = [0, 96], sizes = [8, 32], strides = [1, 1]} : vector<8x128xf32> to vector<8x32xf32>
    %342 = arith.addf %340, %341 : vector<8x32xf32>
    %343 = vector.extract_strided_slice %316 {offsets = [0, 64], sizes = [8, 32], strides = [1, 1]} : vector<8x128xf32> to vector<8x32xf32>
    %344 = vector.extract_strided_slice %317 {offsets = [0, 0], sizes = [8, 32], strides = [1, 1]} : vector<8x128xf32> to vector<8x32xf32>
    %345 = arith.addf %343, %344 : vector<8x32xf32>
    %346 = vector.extract_strided_slice %317 {offsets = [0, 32], sizes = [8, 32], strides = [1, 1]} : vector<8x128xf32> to vector<8x32xf32>
    %347 = vector.extract_strided_slice %316 {offsets = [0, 96], sizes = [8, 32], strides = [1, 1]} : vector<8x128xf32> to vector<8x32xf32>
    %348 = arith.addf %346, %347 : vector<8x32xf32>
    %349 = vector.extract_strided_slice %317 {offsets = [0, 64], sizes = [8, 32], strides = [1, 1]} : vector<8x128xf32> to vector<8x32xf32>
    %350 = vector.extract_strided_slice %318 {offsets = [0, 0], sizes = [8, 32], strides = [1, 1]} : vector<8x128xf32> to vector<8x32xf32>
    %351 = arith.addf %349, %350 : vector<8x32xf32>
    %352 = vector.extract_strided_slice %318 {offsets = [0, 32], sizes = [8, 32], strides = [1, 1]} : vector<8x128xf32> to vector<8x32xf32>
    %353 = vector.extract_strided_slice %317 {offsets = [0, 96], sizes = [8, 32], strides = [1, 1]} : vector<8x128xf32> to vector<8x32xf32>
    %354 = arith.addf %352, %353 : vector<8x32xf32>
    %355 = vector.extract_strided_slice %318 {offsets = [0, 64], sizes = [8, 32], strides = [1, 1]} : vector<8x128xf32> to vector<8x32xf32>
    %356 = vector.extract_strided_slice %319 {offsets = [0, 0], sizes = [8, 32], strides = [1, 1]} : vector<8x128xf32> to vector<8x32xf32>
    %357 = arith.addf %355, %356 : vector<8x32xf32>
    %358 = vector.extract_strided_slice %319 {offsets = [0, 32], sizes = [8, 32], strides = [1, 1]} : vector<8x128xf32> to vector<8x32xf32>
    %359 = vector.extract_strided_slice %318 {offsets = [0, 96], sizes = [8, 32], strides = [1, 1]} : vector<8x128xf32> to vector<8x32xf32>
    %360 = arith.addf %358, %359 : vector<8x32xf32>
    %361 = vector.extract_strided_slice %319 {offsets = [0, 64], sizes = [8, 32], strides = [1, 1]} : vector<8x128xf32> to vector<8x32xf32>
    %362 = vector.extract_strided_slice %320 {offsets = [0, 0], sizes = [8, 32], strides = [1, 1]} : vector<8x128xf32> to vector<8x32xf32>
    %363 = arith.addf %361, %362 : vector<8x32xf32>
    %364 = vector.extract_strided_slice %320 {offsets = [0, 32], sizes = [8, 32], strides = [1, 1]} : vector<8x128xf32> to vector<8x32xf32>
    %365 = vector.extract_strided_slice %319 {offsets = [0, 96], sizes = [8, 32], strides = [1, 1]} : vector<8x128xf32> to vector<8x32xf32>
    %366 = arith.addf %364, %365 : vector<8x32xf32>
    %367 = vector.extract_strided_slice %320 {offsets = [0, 64], sizes = [8, 32], strides = [1, 1]} : vector<8x128xf32> to vector<8x32xf32>
    %368 = vector.extract_strided_slice %321 {offsets = [0, 0], sizes = [8, 32], strides = [1, 1]} : vector<8x128xf32> to vector<8x32xf32>
    %369 = arith.addf %367, %368 : vector<8x32xf32>
    %370 = vector.extract_strided_slice %321 {offsets = [0, 32], sizes = [8, 32], strides = [1, 1]} : vector<8x128xf32> to vector<8x32xf32>
    %371 = vector.extract_strided_slice %320 {offsets = [0, 96], sizes = [8, 32], strides = [1, 1]} : vector<8x128xf32> to vector<8x32xf32>
    %372 = arith.addf %370, %371 : vector<8x32xf32>
    %373 = vector.extract_strided_slice %321 {offsets = [0, 64], sizes = [8, 32], strides = [1, 1]} : vector<8x128xf32> to vector<8x32xf32>
    %374 = vector.extract_strided_slice %322 {offsets = [0, 0], sizes = [8, 32], strides = [1, 1]} : vector<8x128xf32> to vector<8x32xf32>
    %375 = arith.addf %373, %374 : vector<8x32xf32>
    %376 = vector.extract_strided_slice %322 {offsets = [0, 32], sizes = [8, 32], strides = [1, 1]} : vector<8x128xf32> to vector<8x32xf32>
    %377 = vector.extract_strided_slice %321 {offsets = [0, 96], sizes = [8, 32], strides = [1, 1]} : vector<8x128xf32> to vector<8x32xf32>
    %378 = arith.addf %376, %377 : vector<8x32xf32>
    %379 = vector.extract_strided_slice %322 {offsets = [0, 64], sizes = [8, 32], strides = [1, 1]} : vector<8x128xf32> to vector<8x32xf32>
    %380 = vector.extract_strided_slice %323 {offsets = [0, 0], sizes = [8, 32], strides = [1, 1]} : vector<8x128xf32> to vector<8x32xf32>
    %381 = arith.addf %379, %380 : vector<8x32xf32>
    %382 = vector.extract_strided_slice %323 {offsets = [0, 32], sizes = [8, 32], strides = [1, 1]} : vector<8x128xf32> to vector<8x32xf32>
    %383 = vector.extract_strided_slice %322 {offsets = [0, 96], sizes = [8, 32], strides = [1, 1]} : vector<8x128xf32> to vector<8x32xf32>
    %384 = arith.addf %382, %383 : vector<8x32xf32>
    %385 = vector.extract_strided_slice %323 {offsets = [0, 64], sizes = [8, 32], strides = [1, 1]} : vector<8x128xf32> to vector<8x32xf32>
    %386 = vector.extract_strided_slice %324 {offsets = [0, 0], sizes = [8, 32], strides = [1, 1]} : vector<8x128xf32> to vector<8x32xf32>
    %387 = arith.addf %385, %386 : vector<8x32xf32>
    %388 = vector.extract_strided_slice %324 {offsets = [0, 32], sizes = [8, 32], strides = [1, 1]} : vector<8x128xf32> to vector<8x32xf32>
    %389 = vector.extract_strided_slice %323 {offsets = [0, 96], sizes = [8, 32], strides = [1, 1]} : vector<8x128xf32> to vector<8x32xf32>
    %390 = arith.addf %388, %389 : vector<8x32xf32>
    %391 = vector.extract_strided_slice %324 {offsets = [0, 64], sizes = [8, 32], strides = [1, 1]} : vector<8x128xf32> to vector<8x32xf32>
    %392 = vector.extract_strided_slice %325 {offsets = [0, 0], sizes = [8, 32], strides = [1, 1]} : vector<8x128xf32> to vector<8x32xf32>
    %393 = arith.addf %391, %392 : vector<8x32xf32>
    %394 = vector.extract_strided_slice %325 {offsets = [0, 32], sizes = [8, 32], strides = [1, 1]} : vector<8x128xf32> to vector<8x32xf32>
    %395 = vector.extract_strided_slice %324 {offsets = [0, 96], sizes = [8, 32], strides = [1, 1]} : vector<8x128xf32> to vector<8x32xf32>
    %396 = arith.addf %394, %395 : vector<8x32xf32>
    %397 = vector.extract_strided_slice %325 {offsets = [0, 64], sizes = [8, 32], strides = [1, 1]} : vector<8x128xf32> to vector<8x32xf32>
    %398 = vector.extract_strided_slice %326 {offsets = [0, 0], sizes = [8, 32], strides = [1, 1]} : vector<8x128xf32> to vector<8x32xf32>
    %399 = arith.addf %397, %398 : vector<8x32xf32>
    %400 = vector.extract_strided_slice %326 {offsets = [0, 32], sizes = [8, 32], strides = [1, 1]} : vector<8x128xf32> to vector<8x32xf32>
    %401 = vector.extract_strided_slice %325 {offsets = [0, 96], sizes = [8, 32], strides = [1, 1]} : vector<8x128xf32> to vector<8x32xf32>
    %402 = arith.addf %400, %401 : vector<8x32xf32>
    %403 = vector.extract_strided_slice %326 {offsets = [0, 64], sizes = [8, 32], strides = [1, 1]} : vector<8x128xf32> to vector<8x32xf32>
    %404 = vector.extract_strided_slice %327 {offsets = [0, 0], sizes = [8, 32], strides = [1, 1]} : vector<8x128xf32> to vector<8x32xf32>
    %405 = arith.addf %403, %404 : vector<8x32xf32>
    %406 = vector.extract_strided_slice %327 {offsets = [0, 32], sizes = [8, 32], strides = [1, 1]} : vector<8x128xf32> to vector<8x32xf32>
    %407 = vector.extract_strided_slice %326 {offsets = [0, 96], sizes = [8, 32], strides = [1, 1]} : vector<8x128xf32> to vector<8x32xf32>
    %408 = arith.addf %406, %407 : vector<8x32xf32>
    %409 = vector.extract_strided_slice %327 {offsets = [0, 64], sizes = [8, 32], strides = [1, 1]} : vector<8x128xf32> to vector<8x32xf32>
    %410 = vector.extract_strided_slice %328 {offsets = [0, 0], sizes = [8, 32], strides = [1, 1]} : vector<8x128xf32> to vector<8x32xf32>
    %411 = arith.addf %409, %410 : vector<8x32xf32>
    %412 = vector.extract_strided_slice %328 {offsets = [0, 32], sizes = [8, 32], strides = [1, 1]} : vector<8x128xf32> to vector<8x32xf32>
    %413 = vector.extract_strided_slice %327 {offsets = [0, 96], sizes = [8, 32], strides = [1, 1]} : vector<8x128xf32> to vector<8x32xf32>
    %414 = arith.addf %412, %413 : vector<8x32xf32>
    %415 = vector.extract_strided_slice %328 {offsets = [0, 64], sizes = [8, 32], strides = [1, 1]} : vector<8x128xf32> to vector<8x32xf32>
    %416 = vector.extract_strided_slice %329 {offsets = [0, 0], sizes = [8, 32], strides = [1, 1]} : vector<8x128xf32> to vector<8x32xf32>
    %417 = arith.addf %415, %416 : vector<8x32xf32>
    %418 = vector.extract_strided_slice %329 {offsets = [0, 32], sizes = [8, 32], strides = [1, 1]} : vector<8x128xf32> to vector<8x32xf32>
    %419 = vector.extract_strided_slice %328 {offsets = [0, 96], sizes = [8, 32], strides = [1, 1]} : vector<8x128xf32> to vector<8x32xf32>
    %420 = arith.addf %418, %419 : vector<8x32xf32>
    %421 = vector.extract_strided_slice %329 {offsets = [0, 64], sizes = [8, 32], strides = [1, 1]} : vector<8x128xf32> to vector<8x32xf32>
    %422 = tpu.concatenate %330, %333, %336, %339, %342, %345, %348, %351, %354, %357, %360, %363, %366, %369, %372, %375 in 1 : vector<8x32xf32>, vector<8x32xf32>, vector<8x32xf32>, vector<8x32xf32>, vector<8x32xf32>, vector<8x32xf32>, vector<8x32xf32>, vector<8x32xf32>, vector<8x32xf32>, vector<8x32xf32>, vector<8x32xf32>, vector<8x32xf32>, vector<8x32xf32>, vector<8x32xf32>, vector<8x32xf32>, vector<8x32xf32> -> vector<8x512xf32>
    %423 = tpu.concatenate %378, %381, %384, %387, %390, %393, %396, %399, %402, %405, %408, %411, %414, %417, %420, %421 in 1 : vector<8x32xf32>, vector<8x32xf32>, vector<8x32xf32>, vector<8x32xf32>, vector<8x32xf32>, vector<8x32xf32>, vector<8x32xf32>, vector<8x32xf32>, vector<8x32xf32>, vector<8x32xf32>, vector<8x32xf32>, vector<8x32xf32>, vector<8x32xf32>, vector<8x32xf32>, vector<8x32xf32>, vector<8x32xf32> -> vector<8x512xf32>
    %424 = tpu.concatenate %422, %423 in 1 : vector<8x512xf32>, vector<8x512xf32> -> vector<8x1024xf32>
    %425 = math.tanh %424 : vector<8x1024xf32>
    %c0_99 = arith.constant 0 : index
    %c0_100 = arith.constant 0 : index
    %426 = vector.load %arg9[%c0_99, %c0_100] : memref<8x1024xf32, #tpu.memory_space<vmem>>, vector<8x1024xf32>
    tpu.vector_store %arg9[%c0_99, %c0_100], %425 {strides = array<i32>} : memref<8x1024xf32, #tpu.memory_space<vmem>>, vector<8x1024xf32>,
    return
  }
  func.func @transform_0(%arg0: i32) -> (i32, i32) {
    %c0_i32 = arith.constant 0 : i32
    %c0_i32_0 = arith.constant 0 : i32
    return %arg0, %c0_i32 : i32, i32
  }
  func.func @transform_1(%arg0: i32) -> (i32, i32) {
    %c0_i32 = arith.constant 0 : i32
    %c0_i32_0 = arith.constant 0 : i32
    %c0_i32_1 = arith.constant 0 : i32
    return %c0_i32, %c0_i32_0 : i32, i32
  }
  func.func @transform_2(%arg0: i32) -> (i32, i32) {
    %c0_i32 = arith.constant 0 : i32
    %c0_i32_0 = arith.constant 0 : i32
    %c0_i32_1 = arith.constant 0 : i32
    return %c0_i32, %c0_i32_0 : i32, i32
  }
  func.func @transform_3(%arg0: i32) -> (i32, i32) {
    %c0_i32 = arith.constant 0 : i32
    %c0_i32_0 = arith.constant 0 : i32
    %c0_i32_1 = arith.constant 0 : i32
    return %c0_i32, %c0_i32_0 : i32, i32
  }
  func.func @transform_4(%arg0: i32) -> (i32, i32) {
    %c0_i32 = arith.constant 0 : i32
    %c0_i32_0 = arith.constant 0 : i32
    %c0_i32_1 = arith.constant 0 : i32
    return %c0_i32, %c0_i32_0 : i32, i32
  }
  func.func @transform_5(%arg0: i32) -> (i32, i32) {
    %c0_i32 = arith.constant 0 : i32
    %c0_i32_0 = arith.constant 0 : i32
    %c0_i32_1 = arith.constant 0 : i32
    return %c0_i32, %c0_i32_0 : i32, i32
  }
  func.func @transform_6(%arg0: i32) -> (i32, i32) {
    %c0_i32 = arith.constant 0 : i32
    %c0_i32_0 = arith.constant 0 : i32
    %c0_i32_1 = arith.constant 0 : i32
    return %c0_i32, %c0_i32_0 : i32, i32
  }
  func.func @transform_7(%arg0: i32) -> (i32, i32) {
    %c0_i32 = arith.constant 0 : i32
    %c0_i32_0 = arith.constant 0 : i32
    %c0_i32_1 = arith.constant 0 : i32
    return %c0_i32, %c0_i32_0 : i32, i32
  }
  func.func @transform_8(%arg0: i32) -> (i32, i32) {
    %c0_i32 = arith.constant 0 : i32
    %c0_i32_0 = arith.constant 0 : i32
    return %arg0, %c0_i32 : i32, i32
  }
}

</mosaic_0001>

<llo_original>
// kernel: generator_forward.1
$region0: #{generator_forward.1}
  #allocation0 [shape = 'u32[]', space=smem, size = 0x4, offset = 0x4, fixed_abs, tag = 'smem constant byte address 0x4 - core index']
  #allocation1 [shape = 'u32[144,128]{1,0:T(1,128)}', space=vmem, size = 0x12000, scoped, tag = 'internal scratch']
  %s0 = inlined_call_operand.hbm [shape: f32[16,32], index: 0, kind: input, shape index: {}]
  %s1 = inlined_call_operand.hbm [shape: bf16[32,1024], index: 1, kind: input, shape index: {}]
  %s2 = inlined_call_operand.vmem [shape: f32[1,256], index: 2, kind: input, shape index: {}]
  %s3 = inlined_call_operand.hbm [shape: bf16[256,1024], index: 3, kind: input, shape index: {}]
  %s4 = inlined_call_operand.vmem [shape: f32[1,256], index: 4, kind: input, shape index: {}]
  %s5 = inlined_call_operand.hbm [shape: bf16[256,1024], index: 5, kind: input, shape index: {}]
  %s6 = inlined_call_operand.vmem [shape: f32[1,256], index: 6, kind: input, shape index: {}]
  %s7 = inlined_call_operand.hbm [shape: bf16[256,128], index: 7, kind: input, shape index: {}]
  %s8 = inlined_call_operand.vmem [shape: f32[16,1024], index: 8, kind: output, shape index: {}]
  %s9 = sld [smem:[#allocation0]]
  $region85: #{generator_forward.1} parent=0
    _
  %s11 = ssub.s32 1, %s9
  %s12 = scalar_select 0, %s11, %s9
  $region1: #{generator_forward.1} parent=0
    #allocation2 [shape = 'u8[8192]{0}', space=vmem, size = 0x2000, scoped, tag = 'input window, operand 0']
    #allocation3 [shape = 's32[2]{0}', space=sflag, size = 0x8, scoped, tag = 'scoped memory for generator_forward.1']
    #allocation4 [shape = 'u8[65536]{0}', space=vmem, size = 0x10000, scoped, tag = 'input window, operand 1, single buffered']
    #allocation5 [shape = 's32[1]{0}', space=sflag, size = 0x4, scoped, tag = 'scoped memory for generator_forward.1']
    #allocation6 [shape = 'u8[524288]{0}', space=vmem, size = 0x80000, scoped, tag = 'input window, operand 3, single buffered']
    #allocation7 [shape = 'u8[524288]{0}', space=vmem, size = 0x80000, scoped, tag = 'input window, operand 5, single buffered']
    #allocation8 [shape = 's32[1]{0}', space=sflag, size = 0x4, scoped, tag = 'scoped memory for generator_forward.1']
    #allocation9 [shape = 'u8[65536]{0}', space=vmem, size = 0x10000, scoped, tag = 'input window, operand 7, single buffered']
    %13 = vsyncpa [#allocation3], 0
    %s14 = scalar_lea.sflag [#allocation3], 1
    %15 = vsyncpa %s14, 0
    %16 = vsyncpa [#allocation5], 0
    %17 = vsyncpa [#allocation8], 0
    loop: start=0, step=1, limit=4
    $region2: #{generator_forward.1} parent=1 // loop_pre_header
      _
    $region3: #{generator_forward.1} parent=1 // loop_header
      %s19 = sphi 0, %s23
      %p20 = scmp.ge.s32.totalorder %s19, 4
      %s29 = sphi 0, %s31
      %s32 = sphi 0, %s29
      %s33 = sphi 0, %s32
      %s49 = sphi 0, %s33
      %s53 = sphi 0, %s53
      %s55 = sphi 0, %s53
      %s56 = sphi 0, %s55
      %s70 = sphi 0, %s56
      %s74 = sphi 0, %s74
      %s76 = sphi 0, %s74
      %s77 = sphi 0, %s76
      %s91 = sphi 0, %s77
      %s95 = sphi 0, %s95
      %s97 = sphi 0, %s95
      %s98 = sphi 0, %s97
      %s112 = sphi 0, %s98
      %s116 = sphi 0, %s116
      %s118 = sphi 0, %s116
      %s119 = sphi 0, %s118
      %s133 = sphi 0, %s119
      %s137 = sphi 0, %s137
      %s139 = sphi 0, %s137
      %s140 = sphi 0, %s139
      %s154 = sphi 0, %s140
      %s158 = sphi 0, %s158
      %s160 = sphi 0, %s158
      %s161 = sphi 0, %s160
      %s175 = sphi 0, %s161
      %s179 = sphi 0, %s179
      %s181 = sphi 0, %s179
      %s182 = sphi 0, %s181
      %s196 = sphi 0, %s182
      %s202 = sphi 0, %s204
      %s205 = sphi 0, %s202
      %s206 = sphi 0, %s205
      %s222 = sphi 0, %s206
    $region4: #{generator_forward.1} parent=1 // loop_header_branch
      %22 = sbr.rel (%p20) target = $region8
    $region5: #{generator_forward.1} parent=1 // loop_body
      %s24 = ssub.s32 %s19, 1
      %s25 = ssub.s32 %s19, 2
      %s26 = sadd.s32 %s19, 1
      %s27 = ssub.s32 %s19, %s26
      %p28 = scmp.eq.s32.totalorder %s27, 0
      %s30 = sadd.s32 %s29, 1
      %s31 = scalar_select %p28, %s29, %s30
      %p34 = pneg %p28
      %p35 = scmp.eq.s32.totalorder %s19, 1
      %p36 = por %p34, %p35
      %p37 = scmp.ne.s32.totalorder %s29, %s32
      %p38 = scmp.eq.s32.totalorder %s19, 0
      %p39 = por %p37, %p38
      %p40 = scmp.ne.s32.totalorder %s29, %s32
      %p41 = scmp.eq.s32.totalorder %s24, 1
      %p42 = por %p40, %p41
      %p43 = scmp.ne.s32.totalorder %s32, %s33
      %p44 = scmp.eq.s32.totalorder %s24, 0
      %p45 = por %p43, %p44
      %p46 = scmp.ne.s32.totalorder %s32, %s33
      %p47 = scmp.eq.s32.totalorder %s25, 1
      %p48 = por %p46, %p47
      %p50 = scmp.ne.s32.totalorder %s33, %s49
      %p51 = scmp.eq.s32.totalorder %s25, 0
      %p52 = por %p50, %p51
      %s54 = sadd.s32 %s53, 1
      %p57 = scmp.eq.s32.totalorder %s19, 1
      %p58 = scmp.ne.s32.totalorder %s53, %s55
      %p59 = scmp.eq.s32.totalorder %s19, 0
      %p60 = por %p58, %p59
      %p61 = scmp.ne.s32.totalorder %s53, %s55
      %p62 = scmp.eq.s32.totalorder %s24, 1
      %p63 = por %p61, %p62
      %p64 = scmp.ne.s32.totalorder %s55, %s56
      %p65 = scmp.eq.s32.totalorder %s24, 0
      %p66 = por %p64, %p65
      %p67 = scmp.ne.s32.totalorder %s55, %s56
      %p68 = scmp.eq.s32.totalorder %s25, 1
      %p69 = por %p67, %p68
      %p71 = scmp.ne.s32.totalorder %s56, %s70
      %p72 = scmp.eq.s32.totalorder %s25, 0
      %p73 = por %p71, %p72
      %s75 = sadd.s32 %s74, 1
      %p78 = scmp.eq.s32.totalorder %s19, 1
      %p79 = scmp.ne.s32.totalorder %s74, %s76
      %p80 = scmp.eq.s32.totalorder %s19, 0
      %p81 = por %p79, %p80
      %p82 = scmp.ne.s32.totalorder %s74, %s76
      %p83 = scmp.eq.s32.totalorder %s24, 1
      %p84 = por %p82, %p83
      %p85 = scmp.ne.s32.totalorder %s76, %s77
      %p86 = scmp.eq.s32.totalorder %s24, 0
      %p87 = por %p85, %p86
      %p88 = scmp.ne.s32.totalorder %s76, %s77
      %p89 = scmp.eq.s32.totalorder %s25, 1
      %p90 = por %p88, %p89
      %p92 = scmp.ne.s32.totalorder %s77, %s91
      %p93 = scmp.eq.s32.totalorder %s25, 0
      %p94 = por %p92, %p93
      %s96 = sadd.s32 %s95, 1
      %p99 = scmp.eq.s32.totalorder %s19, 1
      %p100 = scmp.ne.s32.totalorder %s95, %s97
      %p101 = scmp.eq.s32.totalorder %s19, 0
      %p102 = por %p100, %p101
      %p103 = scmp.ne.s32.totalorder %s95, %s97
      %p104 = scmp.eq.s32.totalorder %s24, 1
      %p105 = por %p103, %p104
      %p106 = scmp.ne.s32.totalorder %s97, %s98
      %p107 = scmp.eq.s32.totalorder %s24, 0
      %p108 = por %p106, %p107
      %p109 = scmp.ne.s32.totalorder %s97, %s98
      %p110 = scmp.eq.s32.totalorder %s25, 1
      %p111 = por %p109, %p110
      %p113 = scmp.ne.s32.totalorder %s98, %s112
      %p114 = scmp.eq.s32.totalorder %s25, 0
      %p115 = por %p113, %p114
      %s117 = sadd.s32 %s116, 1
      %p120 = scmp.eq.s32.totalorder %s19, 1
      %p121 = scmp.ne.s32.totalorder %s116, %s118
      %p122 = scmp.eq.s32.totalorder %s19, 0
      %p123 = por %p121, %p122
      %p124 = scmp.ne.s32.totalorder %s116, %s118
      %p125 = scmp.eq.s32.totalorder %s24, 1
      %p126 = por %p124, %p125
      %p127 = scmp.ne.s32.totalorder %s118, %s119
      %p128 = scmp.eq.s32.totalorder %s24, 0
      %p129 = por %p127, %p128
      %p130 = scmp.ne.s32.totalorder %s118, %s119
      %p131 = scmp.eq.s32.totalorder %s25, 1
      %p132 = por %p130, %p131
      %p134 = scmp.ne.s32.totalorder %s119, %s133
      %p135 = scmp.eq.s32.totalorder %s25, 0
      %p136 = por %p134, %p135
      %s138 = sadd.s32 %s137, 1
      %p141 = scmp.eq.s32.totalorder %s19, 1
      %p142 = scmp.ne.s32.totalorder %s137, %s139
      %p143 = scmp.eq.s32.totalorder %s19, 0
      %p144 = por %p142, %p143
      %p145 = scmp.ne.s32.totalorder %s137, %s139
      %p146 = scmp.eq.s32.totalorder %s24, 1
      %p147 = por %p145, %p146
      %p148 = scmp.ne.s32.totalorder %s139, %s140
      %p149 = scmp.eq.s32.totalorder %s24, 0
      %p150 = por %p148, %p149
      %p151 = scmp.ne.s32.totalorder %s139, %s140
      %p152 = scmp.eq.s32.totalorder %s25, 1
      %p153 = por %p151, %p152
      %p155 = scmp.ne.s32.totalorder %s140, %s154
      %p156 = scmp.eq.s32.totalorder %s25, 0
      %p157 = por %p155, %p156
      %s159 = sadd.s32 %s158, 1
      %p162 = scmp.eq.s32.totalorder %s19, 1
      %p163 = scmp.ne.s32.totalorder %s158, %s160
      %p164 = scmp.eq.s32.totalorder %s19, 0
      %p165 = por %p163, %p164
      %p166 = scmp.ne.s32.totalorder %s158, %s160
      %p167 = scmp.eq.s32.totalorder %s24, 1
      %p168 = por %p166, %p167
      %p169 = scmp.ne.s32.totalorder %s160, %s161
      %p170 = scmp.eq.s32.totalorder %s24, 0
      %p171 = por %p169, %p170
      %p172 = scmp.ne.s32.totalorder %s160, %s161
      %p173 = scmp.eq.s32.totalorder %s25, 1
      %p174 = por %p172, %p173
      %p176 = scmp.ne.s32.totalorder %s161, %s175
      %p177 = scmp.eq.s32.totalorder %s25, 0
      %p178 = por %p176, %p177
      %s180 = sadd.s32 %s179, 1
      %p183 = scmp.eq.s32.totalorder %s19, 1
      %p184 = scmp.ne.s32.totalorder %s179, %s181
      %p185 = scmp.eq.s32.totalorder %s19, 0
      %p186 = por %p184, %p185
      %p187 = scmp.ne.s32.totalorder %s179, %s181
      %p188 = scmp.eq.s32.totalorder %s24, 1
      %p189 = por %p187, %p188
      %p190 = scmp.ne.s32.totalorder %s181, %s182
      %p191 = scmp.eq.s32.totalorder %s24, 0
      %p192 = por %p190, %p191
      %p193 = scmp.ne.s32.totalorder %s181, %s182
      %p194 = scmp.eq.s32.totalorder %s25, 1
      %p195 = por %p193, %p194
      %p197 = scmp.ne.s32.totalorder %s182, %s196
      %p198 = scmp.eq.s32.totalorder %s25, 0
      %p199 = por %p197, %p198
      %s200 = ssub.s32 %s19, %s26
      %p201 = scmp.eq.s32.totalorder %s200, 0
      %s203 = sadd.s32 %s202, 1
      %s204 = scalar_select %p201, %s202, %s203
      %p207 = pneg %p201
      %p208 = scmp.eq.s32.totalorder %s19, 1
      %p209 = por %p207, %p208
      %p210 = scmp.ne.s32.totalorder %s202, %s205
      %p211 = scmp.eq.s32.totalorder %s19, 0
      %p212 = por %p210, %p211
      %p213 = scmp.ne.s32.totalorder %s202, %s205
      %p214 = scmp.eq.s32.totalorder %s24, 1
      %p215 = por %p213, %p214
      %p216 = scmp.ne.s32.totalorder %s205, %s206
      %p217 = scmp.eq.s32.totalorder %s24, 0
      %p218 = por %p216, %p217
      %p219 = scmp.ne.s32.totalorder %s205, %s206
      %p220 = scmp.eq.s32.totalorder %s25, 1
      %p221 = por %p219, %p220
      %p223 = scmp.ne.s32.totalorder %s206, %s222
      %p224 = scmp.eq.s32.totalorder %s25, 0
      %p225 = por %p223, %p224
      %p226 = scmp.le.s32.totalorder 1, %s19
      %p227 = scmp.lt.s32.totalorder %s19, 3
      %p228 = pnand %p226, %p227
      %p229 = pneg %p228
      // Predicated region
      $region9: #{generator_forward.1} parent=5 // pred_check
        _
      $region10: #{generator_forward.1} parent=5 // pred_check_branch
        %231 = sbr.rel (%p228) target = $region12
      $region11: #{generator_forward.1} parent=5 // pred_region
        %s232 = ssub.s32 %s19, 1
        // Predicated region
        $region13: #{generator_forward.1} parent=11 // pred_check
          %p233 = pneg %p66
        $region14: #{generator_forward.1} parent=11 // pred_check_branch
          %235 = sbr.rel (%p233) target = $region16
        $region15: #{generator_forward.1} parent=11 // pred_region
          %s237 = ssub.s32 2048, 2048
          %238 = vsyncadd [#allocation5], %s237
          %s239 = sshll.u32 [#allocation4], 4
          %s240 = int_to_ptr.vmem [resolvable:$true] %s239
          %245 = dma.hbm_to_vmem [thread:$0]  %s1, 2048, %s240, [#allocation5], 512, 512, 32
        $region16: #{generator_forward.1} parent=11 // pred_fallthru
          _
        // Predicated region
        $region17: #{generator_forward.1} parent=11 // pred_check
          %p246 = pneg %p87
        $region18: #{generator_forward.1} parent=11 // pred_check_branch
          %248 = sbr.rel (%p246) target = $region20
        $region19: #{generator_forward.1} parent=11 // pred_region
          _
        $region20: #{generator_forward.1} parent=11 // pred_fallthru
          _
        // Predicated region
        $region21: #{generator_forward.1} parent=11 // pred_check
          %p249 = pneg %p108
        $region22: #{generator_forward.1} parent=11 // pred_check_branch
          %251 = sbr.rel (%p249) target = $region24
        $region23: #{generator_forward.1} parent=11 // pred_region
          %s253 = ssub.s32 16384, 16384
          %254 = vsyncadd [#allocation5], %s253
          %s255 = sshll.u32 [#allocation6], 4
          %s256 = int_to_ptr.vmem [resolvable:$true] %s255
          %261 = dma.hbm_to_vmem [thread:$0]  %s3, 16384, %s256, [#allocation5], 512, 512, 32
        $region24: #{generator_forward.1} parent=11 // pred_fallthru
          _
        // Predicated region
        $region25: #{generator_forward.1} parent=11 // pred_check
          %p262 = pneg %p129
        $region26: #{generator_forward.1} parent=11 // pred_check_branch
          %264 = sbr.rel (%p262) target = $region28
        $region27: #{generator_forward.1} parent=11 // pred_region
          _
        $region28: #{generator_forward.1} parent=11 // pred_fallthru
          _
        // Predicated region
        $region29: #{generator_forward.1} parent=11 // pred_check
          %p265 = pneg %p150
        $region30: #{generator_forward.1} parent=11 // pred_check_branch
          %267 = sbr.rel (%p265) target = $region32
        $region31: #{generator_forward.1} parent=11 // pred_region
          %s269 = ssub.s32 16384, 16384
          %270 = vsyncadd [#allocation8], %s269
          %s271 = sshll.u32 [#allocation7], 4
          %s272 = int_to_ptr.vmem [resolvable:$true] %s271
          %277 = dma.hbm_to_vmem [thread:$0]  %s5, 16384, %s272, [#allocation8], 512, 512, 32
        $region32: #{generator_forward.1} parent=11 // pred_fallthru
          _
        // Predicated region
        $region33: #{generator_forward.1} parent=11 // pred_check
          %p278 = pneg %p171
        $region34: #{generator_forward.1} parent=11 // pred_check_branch
          %280 = sbr.rel (%p278) target = $region36
        $region35: #{generator_forward.1} parent=11 // pred_region
          _
        $region36: #{generator_forward.1} parent=11 // pred_fallthru
          _
        // Predicated region
        $region37: #{generator_forward.1} parent=11 // pred_check
          %p281 = pneg %p192
        $region38: #{generator_forward.1} parent=11 // pred_check_branch
          %283 = sbr.rel (%p281) target = $region40
        $region39: #{generator_forward.1} parent=11 // pred_region
          %s285 = ssub.s32 2048, 2048
          %286 = vsyncadd [#allocation8], %s285
          %s287 = sshll.u32 [#allocation9], 4
          %s288 = int_to_ptr.vmem [resolvable:$true] %s287
          %293 = dma.hbm_to_vmem [thread:$0]  %s7, 2048, %s288, [#allocation8], 64, 64, 4
        $region40: #{generator_forward.1} parent=11 // pred_fallthru
          _
      $region12: #{generator_forward.1} parent=5 // pred_fallthru
        _
      %p294 = scmp.lt.s32.totalorder %s19, 2
      // Predicated region
      $region41: #{generator_forward.1} parent=5 // pred_check
        %p295 = pneg %p294
      $region42: #{generator_forward.1} parent=5 // pred_check_branch
        %297 = sbr.rel (%p295) target = $region44
      $region43: #{generator_forward.1} parent=5 // pred_region
        // Predicated region
        $region45: #{generator_forward.1} parent=43 // pred_check
          %p298 = pneg %p39
        $region46: #{generator_forward.1} parent=43 // pred_check_branch
          %300 = sbr.rel (%p298) target = $region48
        $region47: #{generator_forward.1} parent=43 // pred_region
          %s301 = sand.u32 %s29, 1
          %s302 = scalar_lea.sflag [#allocation3], %s301
          %s303 = sand.u32 %s29, 1
          %s304 = smul.addr %s303, 8
          %s305 = scalar_lea.vmem [#allocation2], %s304
          %s307 = ssub.s32 128, 128
          %308 = vsyncadd %s302, %s307
          %s309 = smul.addr %s19, 128
          %s310 = scalar_lea.hbm %s0, %s309
          %s312 = sshll.u32 %s305, 4
          %s313 = int_to_ptr.vmem [resolvable:$true] %s312
          %315 = dma.hbm_to_vmem [thread:$0]  %s310, 128, %s313, %s302
        $region48: #{generator_forward.1} parent=43 // pred_fallthru
          _
      $region44: #{generator_forward.1} parent=5 // pred_fallthru
        _
      %p316 = scmp.le.s32.totalorder 1, %s19
      %p317 = scmp.lt.s32.totalorder %s19, 3
      %p318 = pnand %p316, %p317
      %p319 = pneg %p318
      // Predicated region
      $region49: #{generator_forward.1} parent=5 // pred_check
        _
      $region50: #{generator_forward.1} parent=5 // pred_check_branch
        %321 = sbr.rel (%p318) target = $region52
      $region51: #{generator_forward.1} parent=5 // pred_region
        %s322 = ssub.s32 %s19, 1
        %s323 = sand.u32 %s32, 1
        %s324 = scalar_lea.sflag [#allocation3], %s323
        %s325 = sand.u32 %s32, 1
        %s326 = smul.addr %s325, 8
        %s327 = scalar_lea.vmem [#allocation2], %s326
        // Predicated region
        $region53: #{generator_forward.1} parent=51 // pred_check
          %p328 = pneg %p45
        $region54: #{generator_forward.1} parent=51 // pred_check_branch
          %330 = sbr.rel (%p328) target = $region56
        $region55: #{generator_forward.1} parent=51 // pred_region
          %331 = dma.done %s324, 128
        $region56: #{generator_forward.1} parent=51 // pred_fallthru
          _
        // Predicated region
        $region57: #{generator_forward.1} parent=51 // pred_check
          %p332 = pneg %p66
        $region58: #{generator_forward.1} parent=51 // pred_check_branch
          %334 = sbr.rel (%p332) target = $region60
        $region59: #{generator_forward.1} parent=51 // pred_region
          %335 = dma.done [#allocation5], 2048
        $region60: #{generator_forward.1} parent=51 // pred_fallthru
          _
        // Predicated region
        $region61: #{generator_forward.1} parent=51 // pred_check
          %p336 = pneg %p108
        $region62: #{generator_forward.1} parent=51 // pred_check_branch
          %338 = sbr.rel (%p336) target = $region64
        $region63: #{generator_forward.1} parent=51 // pred_region
          %339 = dma.done [#allocation5], 16384
        $region64: #{generator_forward.1} parent=51 // pred_fallthru
          _
        // Predicated region
        $region65: #{generator_forward.1} parent=51 // pred_check
          %p340 = pneg %p150
        $region66: #{generator_forward.1} parent=51 // pred_check_branch
          %342 = sbr.rel (%p340) target = $region68
        $region67: #{generator_forward.1} parent=51 // pred_region
          %343 = dma.done [#allocation8], 16384
        $region68: #{generator_forward.1} parent=51 // pred_fallthru
          _
        // Predicated region
        $region69: #{generator_forward.1} parent=51 // pred_check
          %p344 = pneg %p192
        $region70: #{generator_forward.1} parent=51 // pred_check_branch
          %346 = sbr.rel (%p344) target = $region72
        $region71: #{generator_forward.1} parent=51 // pred_region
          %347 = dma.done [#allocation8], 2048
        $region72: #{generator_forward.1} parent=51 // pred_fallthru
          _
        %s348 = sand.u32 %s32, 1
        %s349 = scalar_lea.sflag [#allocation3], %s348
        %s350 = sand.u32 %s32, 1
        %s351 = smul.addr %s350, 8
        %s352 = scalar_lea.vmem [#allocation2], %s351
        %p353 = pneg %p45
        %p354 = pneg %p42
        %p355 = pneg %p66
        %p356 = pneg %p63
        %p357 = pneg %p87
        %p358 = pneg %p84
        %p359 = pneg %p108
        %p360 = pneg %p105
        %p361 = pneg %p129
        %p362 = pneg %p126
        %p363 = pneg %p150
        %p364 = pneg %p147
        %p365 = pneg %p171
        %p366 = pneg %p168
        %p367 = pneg %p192
        %p368 = pneg %p189
        %p369 = pneg %p218
        %p370 = pneg %p215
        %p371 = scmp.lt.s32.totalorder %s24, 1
        %s372 = scalar_select %p371, %s24, 1
        %s373 = smul.addr %s372, 8
        %s374 = smul.addr %s373, 8
        %s375 = scalar_lea.vmem %s8, %s374
        %p376 = scmp.lt.s32.totalorder %s24, 1
        %s377 = scalar_select %p376, %s24, 1
        %s378 = smul.addr %s377, 8
        %s379 = smul.addr %s378, 8
        %s380 = scalar_lea.vmem %s8, %s379
        %v382 = vld [vmem:[%s327] sm:$0xff]
        %v383 = vpack.c.bf16 %v382, %v382
        %v384 = vld [vmem:[#allocation4] sm:$0xff]
        %v385 = vld [vmem:[#allocation4 + $0x8] sm:$0xff]
        %v386 = vld [vmem:[#allocation4 + $0x10] sm:$0xff]
        %v387 = vld [vmem:[#allocation4 + $0x18] sm:$0xff]
        %v388 = vld [vmem:[#allocation4 + $0x20] sm:$0xff]
        %v389 = vld [vmem:[#allocation4 + $0x28] sm:$0xff]
        %v390 = vld [vmem:[#allocation4 + $0x30] sm:$0xff]
        %v391 = vld [vmem:[#allocation4 + $0x38] sm:$0xff]
        %v392 = vld [vmem:[#allocation4 + $0x40] sm:$0xff]
        %v393 = vld [vmem:[#allocation4 + $0x48] sm:$0xff]
        %v394 = vld [vmem:[#allocation4 + $0x50] sm:$0xff]
        %v395 = vld [vmem:[#allocation4 + $0x58] sm:$0xff]
        %v396 = vld [vmem:[#allocation4 + $0x60] sm:$0xff]
        %v397 = vld [vmem:[#allocation4 + $0x68] sm:$0xff]
        %v398 = vld [vmem:[#allocation4 + $0x70] sm:$0xff]
        %v399 = vld [vmem:[#allocation4 + $0x78] sm:$0xff]
        %v416 = vunpack.c.l.b16 %v384
        %v417 = vunpack.c.h.b16 %v384
        %v418 = vunpack.c.l.b16 %v385
        %v419 = vunpack.c.h.b16 %v385
        %v420 = vunpack.c.l.b16 %v386
        %v421 = vunpack.c.h.b16 %v386
        %v422 = vunpack.c.l.b16 %v387
        %v423 = vunpack.c.h.b16 %v387
        %v424 = vunpack.c.l.b16 %v388
        %v425 = vunpack.c.h.b16 %v388
        %v426 = vunpack.c.l.b16 %v389
        %v427 = vunpack.c.h.b16 %v389
        %v428 = vunpack.c.l.b16 %v390
        %v429 = vunpack.c.h.b16 %v390
        %v430 = vunpack.c.l.b16 %v391
        %v431 = vunpack.c.h.b16 %v391
        %v432 = vunpack.c.l.b16 %v392
        %v433 = vunpack.c.h.b16 %v392
        %v434 = vunpack.c.l.b16 %v393
        %v435 = vunpack.c.h.b16 %v393
        %v436 = vunpack.c.l.b16 %v394
        %v437 = vunpack.c.h.b16 %v394
        %v438 = vunpack.c.l.b16 %v395
        %v439 = vunpack.c.h.b16 %v395
        %v440 = vunpack.c.l.b16 %v396
        %v441 = vunpack.c.h.b16 %v396
        %v442 = vunpack.c.l.b16 %v397
        %v443 = vunpack.c.h.b16 %v397
        %v444 = vunpack.c.l.b16 %v398
        %v445 = vunpack.c.h.b16 %v398
        %v446 = vunpack.c.l.b16 %v399
        %v447 = vunpack.c.h.b16 %v399
        %v448 = vpack.c.b16 %v424, %v416
        %v449 = vpack.c.b16 %v425, %v417
        %v450 = vpack.c.b16 %v426, %v418
        %v451 = vpack.c.b16 %v427, %v419
        %v452 = vpack.c.b16 %v428, %v420
        %v453 = vpack.c.b16 %v429, %v421
        %v454 = vpack.c.b16 %v430, %v422
        %v455 = vpack.c.b16 %v431, %v423
        %v456 = vpack.c.b16 %v440, %v432
        %v457 = vpack.c.b16 %v441, %v433
        %v458 = vpack.c.b16 %v442, %v434
        %v459 = vpack.c.b16 %v443, %v435
        %v460 = vpack.c.b16 %v444, %v436
        %v461 = vpack.c.b16 %v445, %v437
        %v462 = vpack.c.b16 %v446, %v438
        %v463 = vpack.c.b16 %v447, %v439
        %vm480 = vcmask 261120
        %v482 = vsel %vm480, %v383, 0
        %484 = vmatprep.subr.bf16.mxu0 0
        %485 = vmatpush1.bf16.msra.mxu0 0
        %486 = vmatprep.subr.bf16.mxu0 0
        %487 = vmatpush1.bf16.msra.mxu0 0
        %488 = vmatprep.subr.bf16.mxu0 0
        %489 = vmatpush1.bf16.msra.mxu0 0
        %490 = vmatprep.subr.bf16.mxu0 0
        %491 = vmatpush1.bf16.msra.mxu0 0
        %492 = vmatprep.subr.bf16.mxu0 0
        %493 = vmatpush1.bf16.msra.mxu0 0
        %494 = vmatprep.subr.bf16.mxu0 0
        %495 = vmatpush1.bf16.msra.mxu0 0
        %496 = vmatprep.subr.bf16.mxu0 %v457
        %497 = vmatpush1.bf16.msra.mxu0 %v456
        %498 = vmatprep.subr.bf16.mxu0 %v449
        %499 = vmatpush1.bf16.msra.mxu0 %v448
        %500 = vmatprep.subr.bf16.mxu0 0
        %501 = vmatpush2.bf16.msra.mxu0 0
        %502 = vmatprep.subr.bf16.mxu0 0
        %503 = vmatpush2.bf16.msra.mxu0 0
        %504 = vmatprep.subr.bf16.mxu0 0
        %505 = vmatpush2.bf16.msra.mxu0 0
        %506 = vmatprep.subr.bf16.mxu0 0
        %507 = vmatpush2.bf16.msra.mxu0 0
        %508 = vmatprep.subr.bf16.mxu0 0
        %509 = vmatpush2.bf16.msra.mxu0 0
        %510 = vmatprep.subr.bf16.mxu0 0
        %511 = vmatpush2.bf16.msra.mxu0 0
        %512 = vmatprep.subr.bf16.mxu0 0
        %513 = vmatpush2.bf16.msra.mxu0 0
        %514 = vmatprep.subr.bf16.mxu0 0
        %515 = vmatpush2.bf16.msra.mxu0 0
        %516 = vmatprep.mubr.bf16.mxu0 0
        %517 = vmatmul.mubr.bf16.gmra.mxu0 %v482
        %v518 = vpop.f32.mrf.mxu0
        %v519 = vadd.f32 0.0, %v518
        %v520 = vpop.f32.mrf.mxu0
        %v521 = vadd.f32 0.0, %v520
        %v522 = vpop.f32.mrf.mxu0
        %v523 = vpop.f32.mrf.mxu0
        %524 = vdwg.mxu0
        %525 = vmatprep.subr.bf16.mxu0 0
        %526 = vmatpush1.bf16.msra.mxu0 0
        %527 = vmatprep.subr.bf16.mxu0 0
        %528 = vmatpush1.bf16.msra.mxu0 0
        %529 = vmatprep.subr.bf16.mxu0 0
        %530 = vmatpush1.bf16.msra.mxu0 0
        %531 = vmatprep.subr.bf16.mxu0 0
        %532 = vmatpush1.bf16.msra.mxu0 0
        %533 = vmatprep.subr.bf16.mxu0 0
        %534 = vmatpush1.bf16.msra.mxu0 0
        %535 = vmatprep.subr.bf16.mxu0 0
        %536 = vmatpush1.bf16.msra.mxu0 0
        %537 = vmatprep.subr.bf16.mxu0 %v459
        %538 = vmatpush1.bf16.msra.mxu0 %v458
        %539 = vmatprep.subr.bf16.mxu0 %v451
        %540 = vmatpush1.bf16.msra.mxu0 %v450
        %541 = vmatprep.subr.bf16.mxu0 0
        %542 = vmatpush2.bf16.msra.mxu0 0
        %543 = vmatprep.subr.bf16.mxu0 0
        %544 = vmatpush2.bf16.msra.mxu0 0
        %545 = vmatprep.subr.bf16.mxu0 0
        %546 = vmatpush2.bf16.msra.mxu0 0
        %547 = vmatprep.subr.bf16.mxu0 0
        %548 = vmatpush2.bf16.msra.mxu0 0
        %549 = vmatprep.subr.bf16.mxu0 0
        %550 = vmatpush2.bf16.msra.mxu0 0
        %551 = vmatprep.subr.bf16.mxu0 0
        %552 = vmatpush2.bf16.msra.mxu0 0
        %553 = vmatprep.subr.bf16.mxu0 0
        %554 = vmatpush2.bf16.msra.mxu0 0
        %555 = vmatprep.subr.bf16.mxu0 0
        %556 = vmatpush2.bf16.msra.mxu0 0
        %557 = vmatprep.mubr.bf16.mxu0 0
        %558 = vmatmul.mubr.bf16.gmra.mxu0 %v482
        %v559 = vpop.f32.mrf.mxu0
        %v560 = vadd.f32 0.0, %v559
        %v561 = vpop.f32.mrf.mxu0
        %v562 = vadd.f32 0.0, %v561
        %v563 = vpop.f32.mrf.mxu0
        %v564 = vpop.f32.mrf.mxu0
        %565 = vdwg.mxu0
        %566 = vmatprep.subr.bf16.mxu0 0
        %567 = vmatpush1.bf16.msra.mxu0 0
        %568 = vmatprep.subr.bf16.mxu0 0
        %569 = vmatpush1.bf16.msra.mxu0 0
        %570 = vmatprep.subr.bf16.mxu0 0
        %571 = vmatpush1.bf16.msra.mxu0 0
        %572 = vmatprep.subr.bf16.mxu0 0
        %573 = vmatpush1.bf16.msra.mxu0 0
        %574 = vmatprep.subr.bf16.mxu0 0
        %575 = vmatpush1.bf16.msra.mxu0 0
        %576 = vmatprep.subr.bf16.mxu0 0
        %577 = vmatpush1.bf16.msra.mxu0 0
        %578 = vmatprep.subr.bf16.mxu0 %v461
        %579 = vmatpush1.bf16.msra.mxu0 %v460
        %580 = vmatprep.subr.bf16.mxu0 %v453
        %581 = vmatpush1.bf16.msra.mxu0 %v452
        %582 = vmatprep.subr.bf16.mxu0 0
        %583 = vmatpush2.bf16.msra.mxu0 0
        %584 = vmatprep.subr.bf16.mxu0 0
        %585 = vmatpush2.bf16.msra.mxu0 0
        %586 = vmatprep.subr.bf16.mxu0 0
        %587 = vmatpush2.bf16.msra.mxu0 0
        %588 = vmatprep.subr.bf16.mxu0 0
        %589 = vmatpush2.bf16.msra.mxu0 0
        %590 = vmatprep.subr.bf16.mxu0 0
        %591 = vmatpush2.bf16.msra.mxu0 0
        %592 = vmatprep.subr.bf16.mxu0 0
        %593 = vmatpush2.bf16.msra.mxu0 0
        %594 = vmatprep.subr.bf16.mxu0 0
        %595 = vmatpush2.bf16.msra.mxu0 0
        %596 = vmatprep.subr.bf16.mxu0 0
        %597 = vmatpush2.bf16.msra.mxu0 0
        %598 = vmatprep.mubr.bf16.mxu0 0
        %599 = vmatmul.mubr.bf16.gmra.mxu0 %v482
        %v600 = vpop.f32.mrf.mxu0
        %v601 = vadd.f32 0.0, %v600
        %v602 = vpop.f32.mrf.mxu0
        %v603 = vadd.f32 0.0, %v602
        %v604 = vpop.f32.mrf.mxu0
        %v605 = vpop.f32.mrf.mxu0
        %606 = vdwg.mxu0
        %607 = vmatprep.subr.bf16.mxu0 0
        %608 = vmatpush1.bf16.msra.mxu0 0
        %609 = vmatprep.subr.bf16.mxu0 0
        %610 = vmatpush1.bf16.msra.mxu0 0
        %611 = vmatprep.subr.bf16.mxu0 0
        %612 = vmatpush1.bf16.msra.mxu0 0
        %613 = vmatprep.subr.bf16.mxu0 0
        %614 = vmatpush1.bf16.msra.mxu0 0
        %615 = vmatprep.subr.bf16.mxu0 0
        %616 = vmatpush1.bf16.msra.mxu0 0
        %617 = vmatprep.subr.bf16.mxu0 0
        %618 = vmatpush1.bf16.msra.mxu0 0
        %619 = vmatprep.subr.bf16.mxu0 %v463
        %620 = vmatpush1.bf16.msra.mxu0 %v462
        %621 = vmatprep.subr.bf16.mxu0 %v455
        %622 = vmatpush1.bf16.msra.mxu0 %v454
        %623 = vmatprep.subr.bf16.mxu0 0
        %624 = vmatpush2.bf16.msra.mxu0 0
        %625 = vmatprep.subr.bf16.mxu0 0
        %626 = vmatpush2.bf16.msra.mxu0 0
        %627 = vmatprep.subr.bf16.mxu0 0
        %628 = vmatpush2.bf16.msra.mxu0 0
        %629 = vmatprep.subr.bf16.mxu0 0
        %630 = vmatpush2.bf16.msra.mxu0 0
        %631 = vmatprep.subr.bf16.mxu0 0
        %632 = vmatpush2.bf16.msra.mxu0 0
        %633 = vmatprep.subr.bf16.mxu0 0
        %634 = vmatpush2.bf16.msra.mxu0 0
        %635 = vmatprep.subr.bf16.mxu0 0
        %636 = vmatpush2.bf16.msra.mxu0 0
        %637 = vmatprep.subr.bf16.mxu0 0
        %638 = vmatpush2.bf16.msra.mxu0 0
        %639 = vmatprep.mubr.bf16.mxu0 0
        %640 = vmatmul.mubr.bf16.gmra.mxu0 %v482
        %v641 = vpop.f32.mrf.mxu0
        %v642 = vadd.f32 0.0, %v641
        %v643 = vpop.f32.mrf.mxu0
        %v644 = vadd.f32 0.0, %v643
        %v645 = vpop.f32.mrf.mxu0
        %v646 = vpop.f32.mrf.mxu0
        %647 = vdwg.mxu0
        %v648 = vld [vmem:[%s2] sm:$0x3]
        %v650 = vlaneseq
        %v651 = vshrl.u32 %v650, 7
        %v652 = vsub.s32 0, %v651
        %v653 = vrot.slane %v648, %v652
        %v654 = vlaneseq
        %v655 = vshrl.u32 %v654, 7
        %v656 = vsub.s32 1, %v655
        %v657 = vrot.slane %v648, %v656
        %v660 = vadd.f32 %v519, %v653
        %v661 = vadd.f32 %v521, %v657
        %vm662 = vcmp.ge.f32.partialorder %v660, 0.0
        %vm663 = vcmp.ge.f32.partialorder %v661, 0.0
        %v664 = vmul.f32 %v660, 0.2
        %v665 = vmul.f32 %v661, 0.2
        %v666 = vsel %vm662, %v660, %v664
        %v667 = vsel %vm663, %v661, %v665
        %v668 = vpack.c.bf16 %v666, %v666
        %v669 = vpack.c.bf16 %v667, %v667
        %v670 = vadd.f32 %v560, %v653
        %v671 = vadd.f32 %v562, %v657
        %vm672 = vcmp.ge.f32.partialorder %v670, 0.0
        %vm673 = vcmp.ge.f32.partialorder %v671, 0.0
        %v674 = vmul.f32 %v670, 0.2
        %v675 = vmul.f32 %v671, 0.2
        %v676 = vsel %vm672, %v670, %v674
        %v677 = vsel %vm673, %v671, %v675
        %v678 = vpack.c.bf16 %v676, %v676
        %v679 = vpack.c.bf16 %v677, %v677
        %v680 = vadd.f32 %v601, %v653
        %v681 = vadd.f32 %v603, %v657
        %vm682 = vcmp.ge.f32.partialorder %v680, 0.0
        %vm683 = vcmp.ge.f32.partialorder %v681, 0.0
        %v684 = vmul.f32 %v680, 0.2
        %v685 = vmul.f32 %v681, 0.2
        %v686 = vsel %vm682, %v680, %v684
        %v687 = vsel %vm683, %v681, %v685
        %v688 = vpack.c.bf16 %v686, %v686
        %v689 = vpack.c.bf16 %v687, %v687
        %v690 = vadd.f32 %v642, %v653
        %v691 = vadd.f32 %v644, %v657
        %vm692 = vcmp.ge.f32.partialorder %v690, 0.0
        %vm693 = vcmp.ge.f32.partialorder %v691, 0.0
        %v694 = vmul.f32 %v690, 0.2
        %v695 = vmul.f32 %v691, 0.2
        %v696 = vsel %vm692, %v690, %v694
        %v697 = vsel %vm693, %v691, %v695
        %v698 = vpack.c.bf16 %v696, %v696
        %v699 = vpack.c.bf16 %v697, %v697
        %v700 = vld [vmem:[%s4] sm:$0x3]
        %v701 = vld [vmem:[#allocation6] sm:$0xff]
        %v702 = vld [vmem:[#allocation6 + $0x8] sm:$0xff]
        %v703 = vld [vmem:[#allocation6 + $0x10] sm:$0xff]
        %v704 = vld [vmem:[#allocation6 + $0x18] sm:$0xff]
        %v705 = vld [vmem:[#allocation6 + $0x20] sm:$0xff]
        %v706 = vld [vmem:[#allocation6 + $0x28] sm:$0xff]
        %v707 = vld [vmem:[#allocation6 + $0x30] sm:$0xff]
        %v708 = vld [vmem:[#allocation6 + $0x38] sm:$0xff]
        %v709 = vld [vmem:[#allocation6 + $0x40] sm:$0xff]
        %v710 = vld [vmem:[#allocation6 + $0x48] sm:$0xff]
        %v711 = vld [vmem:[#allocation6 + $0x50] sm:$0xff]
        %v712 = vld [vmem:[#allocation6 + $0x58] sm:$0xff]
        %v713 = vld [vmem:[#allocation6 + $0x60] sm:$0xff]
        %v714 = vld [vmem:[#allocation6 + $0x68] sm:$0xff]
        %v715 = vld [vmem:[#allocation6 + $0x70] sm:$0xff]
        %v716 = vld [vmem:[#allocation6 + $0x78] sm:$0xff]
        %v717 = vld [vmem:[#allocation6 + $0x80] sm:$0xff]
        %v718 = vld [vmem:[#allocation6 + $0x88] sm:$0xff]
        %v719 = vld [vmem:[#allocation6 + $0x90] sm:$0xff]
        %v720 = vld [vmem:[#allocation6 + $0x98] sm:$0xff]
        %v721 = vld [vmem:[#allocation6 + $0xa0] sm:$0xff]
        %v722 = vld [vmem:[#allocation6 + $0xa8] sm:$0xff]
        %v723 = vld [vmem:[#allocation6 + $0xb0] sm:$0xff]
        %v724 = vld [vmem:[#allocation6 + $0xb8] sm:$0xff]
        %v725 = vld [vmem:[#allocation6 + $0xc0] sm:$0xff]
        %v726 = vld [vmem:[#allocation6 + $0xc8] sm:$0xff]
        %v727 = vld [vmem:[#allocation6 + $0xd0] sm:$0xff]
        %v728 = vld [vmem:[#allocation6 + $0xd8] sm:$0xff]
        %v729 = vld [vmem:[#allocation6 + $0xe0] sm:$0xff]
        %v730 = vld [vmem:[#allocation6 + $0xe8] sm:$0xff]
        %v731 = vld [vmem:[#allocation6 + $0xf0] sm:$0xff]
        %v732 = vld [vmem:[#allocation6 + $0xf8] sm:$0xff]
        %v733 = vld [vmem:[#allocation6 + $0x100] sm:$0xff]
        %v734 = vld [vmem:[#allocation6 + $0x108] sm:$0xff]
        %v735 = vld [vmem:[#allocation6 + $0x110] sm:$0xff]
        %v736 = vld [vmem:[#allocation6 + $0x118] sm:$0xff]
        %v737 = vld [vmem:[#allocation6 + $0x120] sm:$0xff]
        %v738 = vld [vmem:[#allocation6 + $0x128] sm:$0xff]
        %v739 = vld [vmem:[#allocation6 + $0x130] sm:$0xff]
        %v740 = vld [vmem:[#allocation6 + $0x138] sm:$0xff]
        %v741 = vld [vmem:[#allocation6 + $0x140] sm:$0xff]
        %v742 = vld [vmem:[#allocation6 + $0x148] sm:$0xff]
        %v743 = vld [vmem:[#allocation6 + $0x150] sm:$0xff]
        %v744 = vld [vmem:[#allocation6 + $0x158] sm:$0xff]
        %v745 = vld [vmem:[#allocation6 + $0x160] sm:$0xff]
        %v746 = vld [vmem:[#allocation6 + $0x168] sm:$0xff]
        %v747 = vld [vmem:[#allocation6 + $0x170] sm:$0xff]
        %v748 = vld [vmem:[#allocation6 + $0x178] sm:$0xff]
        %v749 = vld [vmem:[#allocation6 + $0x180] sm:$0xff]
        %v750 = vld [vmem:[#allocation6 + $0x188] sm:$0xff]
        %v751 = vld [vmem:[#allocation6 + $0x190] sm:$0xff]
        %v752 = vld [vmem:[#allocation6 + $0x198] sm:$0xff]
        %v753 = vld [vmem:[#allocation6 + $0x1a0] sm:$0xff]
        %v754 = vld [vmem:[#allocation6 + $0x1a8] sm:$0xff]
        %v755 = vld [vmem:[#allocation6 + $0x1b0] sm:$0xff]
        %v756 = vld [vmem:[#allocation6 + $0x1b8] sm:$0xff]
        %v757 = vld [vmem:[#allocation6 + $0x1c0] sm:$0xff]
        %v758 = vld [vmem:[#allocation6 + $0x1c8] sm:$0xff]
        %v759 = vld [vmem:[#allocation6 + $0x1d0] sm:$0xff]
        %v760 = vld [vmem:[#allocation6 + $0x1d8] sm:$0xff]
        %v761 = vld [vmem:[#allocation6 + $0x1e0] sm:$0xff]
        %v762 = vld [vmem:[#allocation6 + $0x1e8] sm:$0xff]
        %v763 = vld [vmem:[#allocation6 + $0x1f0] sm:$0xff]
        %v764 = vld [vmem:[#allocation6 + $0x1f8] sm:$0xff]
        %v765 = vld [vmem:[#allocation6 + $0x200] sm:$0xff]
        %v766 = vld [vmem:[#allocation6 + $0x208] sm:$0xff]
        %v767 = vld [vmem:[#allocation6 + $0x210] sm:$0xff]
        %v768 = vld [vmem:[#allocation6 + $0x218] sm:$0xff]
        %v769 = vld [vmem:[#allocation6 + $0x220] sm:$0xff]
        %v770 = vld [vmem:[#allocation6 + $0x228] sm:$0xff]
        %v771 = vld [vmem:[#allocation6 + $0x230] sm:$0xff]
        %v772 = vld [vmem:[#allocation6 + $0x238] sm:$0xff]
        %v773 = vld [vmem:[#allocation6 + $0x240] sm:$0xff]
        %v774 = vld [vmem:[#allocation6 + $0x248] sm:$0xff]
        %v775 = vld [vmem:[#allocation6 + $0x250] sm:$0xff]
        %v776 = vld [vmem:[#allocation6 + $0x258] sm:$0xff]
        %v777 = vld [vmem:[#allocation6 + $0x260] sm:$0xff]
        %v778 = vld [vmem:[#allocation6 + $0x268] sm:$0xff]
        %v779 = vld [vmem:[#allocation6 + $0x270] sm:$0xff]
        %v780 = vld [vmem:[#allocation6 + $0x278] sm:$0xff]
        %v781 = vld [vmem:[#allocation6 + $0x280] sm:$0xff]
        %v782 = vld [vmem:[#allocation6 + $0x288] sm:$0xff]
        %v783 = vld [vmem:[#allocation6 + $0x290] sm:$0xff]
        %v784 = vld [vmem:[#allocation6 + $0x298] sm:$0xff]
        %v785 = vld [vmem:[#allocation6 + $0x2a0] sm:$0xff]
        %v786 = vld [vmem:[#allocation6 + $0x2a8] sm:$0xff]
        %v787 = vld [vmem:[#allocation6 + $0x2b0] sm:$0xff]
        %v788 = vld [vmem:[#allocation6 + $0x2b8] sm:$0xff]
        %v789 = vld [vmem:[#allocation6 + $0x2c0] sm:$0xff]
        %v790 = vld [vmem:[#allocation6 + $0x2c8] sm:$0xff]
        %v791 = vld [vmem:[#allocation6 + $0x2d0] sm:$0xff]
        %v792 = vld [vmem:[#allocation6 + $0x2d8] sm:$0xff]
        %v793 = vld [vmem:[#allocation6 + $0x2e0] sm:$0xff]
        %v794 = vld [vmem:[#allocation6 + $0x2e8] sm:$0xff]
        %v795 = vld [vmem:[#allocation6 + $0x2f0] sm:$0xff]
        %v796 = vld [vmem:[#allocation6 + $0x2f8] sm:$0xff]
        %v797 = vld [vmem:[#allocation6 + $0x300] sm:$0xff]
        %v798 = vld [vmem:[#allocation6 + $0x308] sm:$0xff]
        %v799 = vld [vmem:[#allocation6 + $0x310] sm:$0xff]
        %v800 = vld [vmem:[#allocation6 + $0x318] sm:$0xff]
        %v801 = vld [vmem:[#allocation6 + $0x320] sm:$0xff]
        %v802 = vld [vmem:[#allocation6 + $0x328] sm:$0xff]
        %v803 = vld [vmem:[#allocation6 + $0x330] sm:$0xff]
        %v804 = vld [vmem:[#allocation6 + $0x338] sm:$0xff]
        %v805 = vld [vmem:[#allocation6 + $0x340] sm:$0xff]
        %v806 = vld [vmem:[#allocation6 + $0x348] sm:$0xff]
        %v807 = vld [vmem:[#allocation6 + $0x350] sm:$0xff]
        %v808 = vld [vmem:[#allocation6 + $0x358] sm:$0xff]
        %v809 = vld [vmem:[#allocation6 + $0x360] sm:$0xff]
        %v810 = vld [vmem:[#allocation6 + $0x368] sm:$0xff]
        %v811 = vld [vmem:[#allocation6 + $0x370] sm:$0xff]
        %v812 = vld [vmem:[#allocation6 + $0x378] sm:$0xff]
        %v813 = vld [vmem:[#allocation6 + $0x380] sm:$0xff]
        %v814 = vld [vmem:[#allocation6 + $0x388] sm:$0xff]
        %v815 = vld [vmem:[#allocation6 + $0x390] sm:$0xff]
        %v816 = vld [vmem:[#allocation6 + $0x398] sm:$0xff]
        %v817 = vld [vmem:[#allocation6 + $0x3a0] sm:$0xff]
        %v818 = vld [vmem:[#allocation6 + $0x3a8] sm:$0xff]
        %v819 = vld [vmem:[#allocation6 + $0x3b0] sm:$0xff]
        %v820 = vld [vmem:[#allocation6 + $0x3b8] sm:$0xff]
        %v821 = vld [vmem:[#allocation6 + $0x3c0] sm:$0xff]
        %v822 = vld [vmem:[#allocation6 + $0x3c8] sm:$0xff]
        %v823 = vld [vmem:[#allocation6 + $0x3d0] sm:$0xff]
        %v824 = vld [vmem:[#allocation6 + $0x3d8] sm:$0xff]
        %v825 = vld [vmem:[#allocation6 + $0x3e0] sm:$0xff]
        %v826 = vld [vmem:[#allocation6 + $0x3e8] sm:$0xff]
        %v827 = vld [vmem:[#allocation6 + $0x3f0] sm:$0xff]
        %v828 = vld [vmem:[#allocation6 + $0x3f8] sm:$0xff]
        %v925 = vunpack.c.l.b16 %v702
        %v926 = vunpack.c.h.b16 %v702
        %v927 = vunpack.c.l.b16 %v703
        %v928 = vunpack.c.h.b16 %v703
        %v929 = vunpack.c.l.b16 %v704
        %v930 = vunpack.c.h.b16 %v704
        %v931 = vunpack.c.l.b16 %v706
        %v932 = vunpack.c.h.b16 %v706
        %v933 = vunpack.c.l.b16 %v707
        %v934 = vunpack.c.h.b16 %v707
        %v935 = vunpack.c.l.b16 %v708
        %v936 = vunpack.c.h.b16 %v708
        %v937 = vunpack.c.l.b16 %v710
        %v938 = vunpack.c.h.b16 %v710
        %v939 = vunpack.c.l.b16 %v711
        %v940 = vunpack.c.h.b16 %v711
        %v941 = vunpack.c.l.b16 %v712
        %v942 = vunpack.c.h.b16 %v712
        %v943 = vunpack.c.l.b16 %v714
        %v944 = vunpack.c.h.b16 %v714
        %v945 = vunpack.c.l.b16 %v715
        %v946 = vunpack.c.h.b16 %v715
        %v947 = vunpack.c.l.b16 %v716
        %v948 = vunpack.c.h.b16 %v716
        %v949 = vunpack.c.l.b16 %v718
        %v950 = vunpack.c.h.b16 %v718
        %v951 = vunpack.c.l.b16 %v719
        %v952 = vunpack.c.h.b16 %v719
        %v953 = vunpack.c.l.b16 %v720
        %v954 = vunpack.c.h.b16 %v720
        %v955 = vunpack.c.l.b16 %v722
        %v956 = vunpack.c.h.b16 %v722
        %v957 = vunpack.c.l.b16 %v723
        %v958 = vunpack.c.h.b16 %v723
        %v959 = vunpack.c.l.b16 %v724
        %v960 = vunpack.c.h.b16 %v724
        %v961 = vunpack.c.l.b16 %v726
        %v962 = vunpack.c.h.b16 %v726
        %v963 = vunpack.c.l.b16 %v727
        %v964 = vunpack.c.h.b16 %v727
        %v965 = vunpack.c.l.b16 %v728
        %v966 = vunpack.c.h.b16 %v728
        %v967 = vunpack.c.l.b16 %v730
        %v968 = vunpack.c.h.b16 %v730
        %v969 = vunpack.c.l.b16 %v731
        %v970 = vunpack.c.h.b16 %v731
        %v971 = vunpack.c.l.b16 %v732
        %v972 = vunpack.c.h.b16 %v732
        %v973 = vunpack.c.l.b16 %v734
        %v974 = vunpack.c.h.b16 %v734
        %v975 = vunpack.c.l.b16 %v735
        %v976 = vunpack.c.h.b16 %v735
        %v977 = vunpack.c.l.b16 %v736
        %v978 = vunpack.c.h.b16 %v736
        %v979 = vunpack.c.l.b16 %v738
        %v980 = vunpack.c.h.b16 %v738
        %v981 = vunpack.c.l.b16 %v739
        %v982 = vunpack.c.h.b16 %v739
        %v983 = vunpack.c.l.b16 %v740
        %v984 = vunpack.c.h.b16 %v740
        %v985 = vunpack.c.l.b16 %v742
        %v986 = vunpack.c.h.b16 %v742
        %v987 = vunpack.c.l.b16 %v743
        %v988 = vunpack.c.h.b16 %v743
        %v989 = vunpack.c.l.b16 %v744
        %v990 = vunpack.c.h.b16 %v744
        %v991 = vunpack.c.l.b16 %v746
        %v992 = vunpack.c.h.b16 %v746
        %v993 = vunpack.c.l.b16 %v747
        %v994 = vunpack.c.h.b16 %v747
        %v995 = vunpack.c.l.b16 %v748
        %v996 = vunpack.c.h.b16 %v748
        %v997 = vunpack.c.l.b16 %v750
        %v998 = vunpack.c.h.b16 %v750
        %v999 = vunpack.c.l.b16 %v751
        %v1000 = vunpack.c.h.b16 %v751
        %v1001 = vunpack.c.l.b16 %v752
        %v1002 = vunpack.c.h.b16 %v752
        %v1003 = vunpack.c.l.b16 %v754
        %v1004 = vunpack.c.h.b16 %v754
        %v1005 = vunpack.c.l.b16 %v755
        %v1006 = vunpack.c.h.b16 %v755
        %v1007 = vunpack.c.l.b16 %v756
        %v1008 = vunpack.c.h.b16 %v756
        %v1009 = vunpack.c.l.b16 %v758
        %v1010 = vunpack.c.h.b16 %v758
        %v1011 = vunpack.c.l.b16 %v759
        %v1012 = vunpack.c.h.b16 %v759
        %v1013 = vunpack.c.l.b16 %v760
        %v1014 = vunpack.c.h.b16 %v760
        %v1015 = vunpack.c.l.b16 %v762
        %v1016 = vunpack.c.h.b16 %v762
        %v1017 = vunpack.c.l.b16 %v763
        %v1018 = vunpack.c.h.b16 %v763
        %v1019 = vunpack.c.l.b16 %v764
        %v1020 = vunpack.c.h.b16 %v764
        %v1021 = vunpack.c.l.b16 %v766
        %v1022 = vunpack.c.h.b16 %v766
        %v1023 = vunpack.c.l.b16 %v767
        %v1024 = vunpack.c.h.b16 %v767
        %v1025 = vunpack.c.l.b16 %v768
        %v1026 = vunpack.c.h.b16 %v768
        %v1027 = vunpack.c.l.b16 %v770
        %v1028 = vunpack.c.h.b16 %v770
        %v1029 = vunpack.c.l.b16 %v771
        %v1030 = vunpack.c.h.b16 %v771
        %v1031 = vunpack.c.l.b16 %v772
        %v1032 = vunpack.c.h.b16 %v772
        %v1033 = vunpack.c.l.b16 %v774
        %v1034 = vunpack.c.h.b16 %v774
        %v1035 = vunpack.c.l.b16 %v775
        %v1036 = vunpack.c.h.b16 %v775
        %v1037 = vunpack.c.l.b16 %v776
        %v1038 = vunpack.c.h.b16 %v776
        %v1039 = vunpack.c.l.b16 %v778
        %v1040 = vunpack.c.h.b16 %v778
        %v1041 = vunpack.c.l.b16 %v779
        %v1042 = vunpack.c.h.b16 %v779
        %v1043 = vunpack.c.l.b16 %v780
        %v1044 = vunpack.c.h.b16 %v780
        %v1045 = vunpack.c.l.b16 %v782
        %v1046 = vunpack.c.h.b16 %v782
        %v1047 = vunpack.c.l.b16 %v783
        %v1048 = vunpack.c.h.b16 %v783
        %v1049 = vunpack.c.l.b16 %v784
        %v1050 = vunpack.c.h.b16 %v784
        %v1051 = vunpack.c.l.b16 %v786
        %v1052 = vunpack.c.h.b16 %v786
        %v1053 = vunpack.c.l.b16 %v787
        %v1054 = vunpack.c.h.b16 %v787
        %v1055 = vunpack.c.l.b16 %v788
        %v1056 = vunpack.c.h.b16 %v788
        %v1057 = vunpack.c.l.b16 %v790
        %v1058 = vunpack.c.h.b16 %v790
        %v1059 = vunpack.c.l.b16 %v791
        %v1060 = vunpack.c.h.b16 %v791
        %v1061 = vunpack.c.l.b16 %v792
        %v1062 = vunpack.c.h.b16 %v792
        %v1063 = vunpack.c.l.b16 %v794
        %v1064 = vunpack.c.h.b16 %v794
        %v1065 = vunpack.c.l.b16 %v795
        %v1066 = vunpack.c.h.b16 %v795
        %v1067 = vunpack.c.l.b16 %v796
        %v1068 = vunpack.c.h.b16 %v796
        %v1069 = vunpack.c.l.b16 %v798
        %v1070 = vunpack.c.h.b16 %v798
        %v1071 = vunpack.c.l.b16 %v799
        %v1072 = vunpack.c.h.b16 %v799
        %v1073 = vunpack.c.l.b16 %v800
        %v1074 = vunpack.c.h.b16 %v800
        %v1075 = vunpack.c.l.b16 %v802
        %v1076 = vunpack.c.h.b16 %v802
        %v1077 = vunpack.c.l.b16 %v803
        %v1078 = vunpack.c.h.b16 %v803
        %v1079 = vunpack.c.l.b16 %v804
        %v1080 = vunpack.c.h.b16 %v804
        %v1081 = vunpack.c.l.b16 %v806
        %v1082 = vunpack.c.h.b16 %v806
        %v1083 = vunpack.c.l.b16 %v807
        %v1084 = vunpack.c.h.b16 %v807
        %v1085 = vunpack.c.l.b16 %v808
        %v1086 = vunpack.c.h.b16 %v808
        %v1087 = vunpack.c.l.b16 %v810
        %v1088 = vunpack.c.h.b16 %v810
        %v1089 = vunpack.c.l.b16 %v811
        %v1090 = vunpack.c.h.b16 %v811
        %v1091 = vunpack.c.l.b16 %v812
        %v1092 = vunpack.c.h.b16 %v812
        %v1093 = vunpack.c.l.b16 %v814
        %v1094 = vunpack.c.h.b16 %v814
        %v1095 = vunpack.c.l.b16 %v815
        %v1096 = vunpack.c.h.b16 %v815
        %v1097 = vunpack.c.l.b16 %v816
        %v1098 = vunpack.c.h.b16 %v816
        %v1099 = vunpack.c.l.b16 %v818
        %v1100 = vunpack.c.h.b16 %v818
        %v1101 = vunpack.c.l.b16 %v819
        %v1102 = vunpack.c.h.b16 %v819
        %v1103 = vunpack.c.l.b16 %v820
        %v1104 = vunpack.c.h.b16 %v820
        %v1105 = vunpack.c.l.b16 %v822
        %v1106 = vunpack.c.h.b16 %v822
        %v1107 = vunpack.c.l.b16 %v823
        %v1108 = vunpack.c.h.b16 %v823
        %v1109 = vunpack.c.l.b16 %v824
        %v1110 = vunpack.c.h.b16 %v824
        %v1111 = vunpack.c.l.b16 %v826
        %v1112 = vunpack.c.h.b16 %v826
        %v1113 = vunpack.c.l.b16 %v827
        %v1114 = vunpack.c.h.b16 %v827
        %v1115 = vunpack.c.l.b16 %v828
        %v1116 = vunpack.c.h.b16 %v828
        %v1117 = vpack.c.b16 %v931, %v925
        %v1118 = vpack.c.b16 %v932, %v926
        %v1119 = vpack.c.b16 %v933, %v927
        %v1120 = vpack.c.b16 %v934, %v928
        %v1121 = vpack.c.b16 %v935, %v929
        %v1122 = vpack.c.b16 %v936, %v930
        %v1123 = vpack.c.b16 %v943, %v937
        %v1124 = vpack.c.b16 %v944, %v938
        %v1125 = vpack.c.b16 %v945, %v939
        %v1126 = vpack.c.b16 %v946, %v940
        %v1127 = vpack.c.b16 %v947, %v941
        %v1128 = vpack.c.b16 %v948, %v942
        %v1129 = vpack.c.b16 %v955, %v949
        %v1130 = vpack.c.b16 %v956, %v950
        %v1131 = vpack.c.b16 %v957, %v951
        %v1132 = vpack.c.b16 %v958, %v952
        %v1133 = vpack.c.b16 %v959, %v953
        %v1134 = vpack.c.b16 %v960, %v954
        %v1135 = vpack.c.b16 %v967, %v961
        %v1136 = vpack.c.b16 %v968, %v962
        %v1137 = vpack.c.b16 %v969, %v963
        %v1138 = vpack.c.b16 %v970, %v964
        %v1139 = vpack.c.b16 %v971, %v965
        %v1140 = vpack.c.b16 %v972, %v966
        %v1141 = vpack.c.b16 %v979, %v973
        %v1142 = vpack.c.b16 %v980, %v974
        %v1143 = vpack.c.b16 %v981, %v975
        %v1144 = vpack.c.b16 %v982, %v976
        %v1145 = vpack.c.b16 %v983, %v977
        %v1146 = vpack.c.b16 %v984, %v978
        %v1147 = vpack.c.b16 %v991, %v985
        %v1148 = vpack.c.b16 %v992, %v986
        %v1149 = vpack.c.b16 %v993, %v987
        %v1150 = vpack.c.b16 %v994, %v988
        %v1151 = vpack.c.b16 %v995, %v989
        %v1152 = vpack.c.b16 %v996, %v990
        %v1153 = vpack.c.b16 %v1003, %v997
        %v1154 = vpack.c.b16 %v1004, %v998
        %v1155 = vpack.c.b16 %v1005, %v999
        %v1156 = vpack.c.b16 %v1006, %v1000
        %v1157 = vpack.c.b16 %v1007, %v1001
        %v1158 = vpack.c.b16 %v1008, %v1002
        %v1159 = vpack.c.b16 %v1015, %v1009
        %v1160 = vpack.c.b16 %v1016, %v1010
        %v1161 = vpack.c.b16 %v1017, %v1011
        %v1162 = vpack.c.b16 %v1018, %v1012
        %v1163 = vpack.c.b16 %v1019, %v1013
        %v1164 = vpack.c.b16 %v1020, %v1014
        %v1165 = vpack.c.b16 %v1027, %v1021
        %v1166 = vpack.c.b16 %v1028, %v1022
        %v1167 = vpack.c.b16 %v1029, %v1023
        %v1168 = vpack.c.b16 %v1030, %v1024
        %v1169 = vpack.c.b16 %v1031, %v1025
        %v1170 = vpack.c.b16 %v1032, %v1026
        %v1171 = vpack.c.b16 %v1039, %v1033
        %v1172 = vpack.c.b16 %v1040, %v1034
        %v1173 = vpack.c.b16 %v1041, %v1035
        %v1174 = vpack.c.b16 %v1042, %v1036
        %v1175 = vpack.c.b16 %v1043, %v1037
        %v1176 = vpack.c.b16 %v1044, %v1038
        %v1177 = vpack.c.b16 %v1051, %v1045
        %v1178 = vpack.c.b16 %v1052, %v1046
        %v1179 = vpack.c.b16 %v1053, %v1047
        %v1180 = vpack.c.b16 %v1054, %v1048
        %v1181 = vpack.c.b16 %v1055, %v1049
        %v1182 = vpack.c.b16 %v1056, %v1050
        %v1183 = vpack.c.b16 %v1063, %v1057
        %v1184 = vpack.c.b16 %v1064, %v1058
        %v1185 = vpack.c.b16 %v1065, %v1059
        %v1186 = vpack.c.b16 %v1066, %v1060
        %v1187 = vpack.c.b16 %v1067, %v1061
        %v1188 = vpack.c.b16 %v1068, %v1062
        %v1189 = vpack.c.b16 %v1075, %v1069
        %v1190 = vpack.c.b16 %v1076, %v1070
        %v1191 = vpack.c.b16 %v1077, %v1071
        %v1192 = vpack.c.b16 %v1078, %v1072
        %v1193 = vpack.c.b16 %v1079, %v1073
        %v1194 = vpack.c.b16 %v1080, %v1074
        %v1195 = vpack.c.b16 %v1087, %v1081
        %v1196 = vpack.c.b16 %v1088, %v1082
        %v1197 = vpack.c.b16 %v1089, %v1083
        %v1198 = vpack.c.b16 %v1090, %v1084
        %v1199 = vpack.c.b16 %v1091, %v1085
        %v1200 = vpack.c.b16 %v1092, %v1086
        %v1201 = vpack.c.b16 %v1099, %v1093
        %v1202 = vpack.c.b16 %v1100, %v1094
        %v1203 = vpack.c.b16 %v1101, %v1095
        %v1204 = vpack.c.b16 %v1102, %v1096
        %v1205 = vpack.c.b16 %v1103, %v1097
        %v1206 = vpack.c.b16 %v1104, %v1098
        %v1207 = vpack.c.b16 %v1111, %v1105
        %v1208 = vpack.c.b16 %v1112, %v1106
        %v1209 = vpack.c.b16 %v1113, %v1107
        %v1210 = vpack.c.b16 %v1114, %v1108
        %v1211 = vpack.c.b16 %v1115, %v1109
        %v1212 = vpack.c.b16 %v1116, %v1110
        %1309 = vmatprep.subr.bf16.mxu0 %v1160
        %1310 = vmatpush1.bf16.msra.mxu0 %v1159
        %1311 = vmatprep.subr.bf16.mxu0 %v1154
        %1312 = vmatpush1.bf16.msra.mxu0 %v1153
        %1313 = vmatprep.subr.bf16.mxu0 %v1148
        %1314 = vmatpush1.bf16.msra.mxu0 %v1147
        %1315 = vmatprep.subr.bf16.mxu0 %v1142
        %1316 = vmatpush1.bf16.msra.mxu0 %v1141
        %1317 = vmatprep.subr.bf16.mxu0 %v1136
        %1318 = vmatpush1.bf16.msra.mxu0 %v1135
        %1319 = vmatprep.subr.bf16.mxu0 %v1130
        %1320 = vmatpush1.bf16.msra.mxu0 %v1129
        %1321 = vmatprep.subr.bf16.mxu0 %v1124
        %1322 = vmatpush1.bf16.msra.mxu0 %v1123
        %1323 = vmatprep.subr.bf16.mxu0 %v1118
        %1324 = vmatpush1.bf16.msra.mxu0 %v1117
        %1325 = vmatprep.subr.bf16.mxu0 %v1208
        %1326 = vmatpush2.bf16.msra.mxu0 %v1207
        %1327 = vmatprep.subr.bf16.mxu0 %v1202
        %1328 = vmatpush2.bf16.msra.mxu0 %v1201
        %1329 = vmatprep.subr.bf16.mxu0 %v1196
        %1330 = vmatpush2.bf16.msra.mxu0 %v1195
        %1331 = vmatprep.subr.bf16.mxu0 %v1190
        %1332 = vmatpush2.bf16.msra.mxu0 %v1189
        %1333 = vmatprep.subr.bf16.mxu0 %v1184
        %1334 = vmatpush2.bf16.msra.mxu0 %v1183
        %1335 = vmatprep.subr.bf16.mxu0 %v1178
        %1336 = vmatpush2.bf16.msra.mxu0 %v1177
        %1337 = vmatprep.subr.bf16.mxu0 %v1172
        %1338 = vmatpush2.bf16.msra.mxu0 %v1171
        %1339 = vmatprep.subr.bf16.mxu0 %v1166
        %1340 = vmatpush2.bf16.msra.mxu0 %v1165
        %1341 = vmatprep.mubr.bf16.mxu0 %v669
        %1342 = vmatmul.mubr.bf16.gmra.mxu0 %v668
        %v1343 = vpop.f32.mrf.mxu0
        %v1344 = vadd.f32 0.0, %v1343
        %v1345 = vpop.f32.mrf.mxu0
        %v1346 = vadd.f32 0.0, %v1345
        %v1347 = vpop.f32.mrf.mxu0
        %v1348 = vpop.f32.mrf.mxu0
        %1349 = vdwg.mxu0
        %1350 = vmatprep.subr.bf16.mxu0 %v1162
        %1351 = vmatpush1.bf16.msra.mxu0 %v1161
        %1352 = vmatprep.subr.bf16.mxu0 %v1156
        %1353 = vmatpush1.bf16.msra.mxu0 %v1155
        %1354 = vmatprep.subr.bf16.mxu0 %v1150
        %1355 = vmatpush1.bf16.msra.mxu0 %v1149
        %1356 = vmatprep.subr.bf16.mxu0 %v1144
        %1357 = vmatpush1.bf16.msra.mxu0 %v1143
        %1358 = vmatprep.subr.bf16.mxu0 %v1138
        %1359 = vmatpush1.bf16.msra.mxu0 %v1137
        %1360 = vmatprep.subr.bf16.mxu0 %v1132
        %1361 = vmatpush1.bf16.msra.mxu0 %v1131
        %1362 = vmatprep.subr.bf16.mxu0 %v1126
        %1363 = vmatpush1.bf16.msra.mxu0 %v1125
        %1364 = vmatprep.subr.bf16.mxu0 %v1120
        %1365 = vmatpush1.bf16.msra.mxu0 %v1119
        %1366 = vmatprep.subr.bf16.mxu0 %v1210
        %1367 = vmatpush2.bf16.msra.mxu0 %v1209
        %1368 = vmatprep.subr.bf16.mxu0 %v1204
        %1369 = vmatpush2.bf16.msra.mxu0 %v1203
        %1370 = vmatprep.subr.bf16.mxu0 %v1198
        %1371 = vmatpush2.bf16.msra.mxu0 %v1197
        %1372 = vmatprep.subr.bf16.mxu0 %v1192
        %1373 = vmatpush2.bf16.msra.mxu0 %v1191
        %1374 = vmatprep.subr.bf16.mxu0 %v1186
        %1375 = vmatpush2.bf16.msra.mxu0 %v1185
        %1376 = vmatprep.subr.bf16.mxu0 %v1180
        %1377 = vmatpush2.bf16.msra.mxu0 %v1179
        %1378 = vmatprep.subr.bf16.mxu0 %v1174
        %1379 = vmatpush2.bf16.msra.mxu0 %v1173
        %1380 = vmatprep.subr.bf16.mxu0 %v1168
        %1381 = vmatpush2.bf16.msra.mxu0 %v1167
        %1382 = vmatprep.mubr.bf16.mxu0 %v669
        %1383 = vmatmul.mubr.bf16.gmra.mxu0 %v668
        %v1384 = vpop.f32.mrf.mxu0
        %v1385 = vadd.f32 0.0, %v1384
        %v1386 = vpop.f32.mrf.mxu0
        %v1387 = vadd.f32 0.0, %v1386
        %v1388 = vpop.f32.mrf.mxu0
        %v1389 = vpop.f32.mrf.mxu0
        %1390 = vdwg.mxu0
        %1391 = vmatprep.subr.bf16.mxu0 %v1164
        %1392 = vmatpush1.bf16.msra.mxu0 %v1163
        %1393 = vmatprep.subr.bf16.mxu0 %v1158
        %1394 = vmatpush1.bf16.msra.mxu0 %v1157
        %1395 = vmatprep.subr.bf16.mxu0 %v1152
        %1396 = vmatpush1.bf16.msra.mxu0 %v1151
        %1397 = vmatprep.subr.bf16.mxu0 %v1146
        %1398 = vmatpush1.bf16.msra.mxu0 %v1145
        %1399 = vmatprep.subr.bf16.mxu0 %v1140
        %1400 = vmatpush1.bf16.msra.mxu0 %v1139
        %1401 = vmatprep.subr.bf16.mxu0 %v1134
        %1402 = vmatpush1.bf16.msra.mxu0 %v1133
        %1403 = vmatprep.subr.bf16.mxu0 %v1128
        %1404 = vmatpush1.bf16.msra.mxu0 %v1127
        %1405 = vmatprep.subr.bf16.mxu0 %v1122
        %1406 = vmatpush1.bf16.msra.mxu0 %v1121
        %1407 = vmatprep.subr.bf16.mxu0 %v1212
        %1408 = vmatpush2.bf16.msra.mxu0 %v1211
        %1409 = vmatprep.subr.bf16.mxu0 %v1206
        %1410 = vmatpush2.bf16.msra.mxu0 %v1205
        %1411 = vmatprep.subr.bf16.mxu0 %v1200
        %1412 = vmatpush2.bf16.msra.mxu0 %v1199
        %1413 = vmatprep.subr.bf16.mxu0 %v1194
        %1414 = vmatpush2.bf16.msra.mxu0 %v1193
        %1415 = vmatprep.subr.bf16.mxu0 %v1188
        %1416 = vmatpush2.bf16.msra.mxu0 %v1187
        %1417 = vmatprep.subr.bf16.mxu0 %v1182
        %1418 = vmatpush2.bf16.msra.mxu0 %v1181
        %1419 = vmatprep.subr.bf16.mxu0 %v1176
        %1420 = vmatpush2.bf16.msra.mxu0 %v1175
        %1421 = vmatprep.subr.bf16.mxu0 %v1170
        %1422 = vmatpush2.bf16.msra.mxu0 %v1169
        %1423 = vmatprep.mubr.bf16.mxu0 %v669
        %1424 = vmatmul.mubr.bf16.gmra.mxu0 %v668
        %v1425 = vpop.f32.mrf.mxu0
        %v1426 = vadd.f32 0.0, %v1425
        %v1427 = vpop.f32.mrf.mxu0
        %v1428 = vadd.f32 0.0, %v1427
        %v1429 = vpop.f32.mrf.mxu0
        %v1430 = vpop.f32.mrf.mxu0
        %1431 = vdwg.mxu0
        %v1464 = vunpack.c.l.b16 %v701
        %v1465 = vunpack.c.h.b16 %v701
        %v1466 = vunpack.c.l.b16 %v705
        %v1467 = vunpack.c.h.b16 %v705
        %v1468 = vunpack.c.l.b16 %v709
        %v1469 = vunpack.c.h.b16 %v709
        %v1470 = vunpack.c.l.b16 %v713
        %v1471 = vunpack.c.h.b16 %v713
        %v1472 = vunpack.c.l.b16 %v717
        %v1473 = vunpack.c.h.b16 %v717
        %v1474 = vunpack.c.l.b16 %v721
        %v1475 = vunpack.c.h.b16 %v721
        %v1476 = vunpack.c.l.b16 %v725
        %v1477 = vunpack.c.h.b16 %v725
        %v1478 = vunpack.c.l.b16 %v729
        %v1479 = vunpack.c.h.b16 %v729
        %v1480 = vunpack.c.l.b16 %v733
        %v1481 = vunpack.c.h.b16 %v733
        %v1482 = vunpack.c.l.b16 %v737
        %v1483 = vunpack.c.h.b16 %v737
        %v1484 = vunpack.c.l.b16 %v741
        %v1485 = vunpack.c.h.b16 %v741
        %v1486 = vunpack.c.l.b16 %v745
        %v1487 = vunpack.c.h.b16 %v745
        %v1488 = vunpack.c.l.b16 %v749
        %v1489 = vunpack.c.h.b16 %v749
        %v1490 = vunpack.c.l.b16 %v753
        %v1491 = vunpack.c.h.b16 %v753
        %v1492 = vunpack.c.l.b16 %v757
        %v1493 = vunpack.c.h.b16 %v757
        %v1494 = vunpack.c.l.b16 %v761
        %v1495 = vunpack.c.h.b16 %v761
        %v1496 = vunpack.c.l.b16 %v765
        %v1497 = vunpack.c.h.b16 %v765
        %v1498 = vunpack.c.l.b16 %v769
        %v1499 = vunpack.c.h.b16 %v769
        %v1500 = vunpack.c.l.b16 %v773
        %v1501 = vunpack.c.h.b16 %v773
        %v1502 = vunpack.c.l.b16 %v777
        %v1503 = vunpack.c.h.b16 %v777
        %v1504 = vunpack.c.l.b16 %v781
        %v1505 = vunpack.c.h.b16 %v781
        %v1506 = vunpack.c.l.b16 %v785
        %v1507 = vunpack.c.h.b16 %v785
        %v1508 = vunpack.c.l.b16 %v789
        %v1509 = vunpack.c.h.b16 %v789
        %v1510 = vunpack.c.l.b16 %v793
        %v1511 = vunpack.c.h.b16 %v793
        %v1512 = vunpack.c.l.b16 %v797
        %v1513 = vunpack.c.h.b16 %v797
        %v1514 = vunpack.c.l.b16 %v801
        %v1515 = vunpack.c.h.b16 %v801
        %v1516 = vunpack.c.l.b16 %v805
        %v1517 = vunpack.c.h.b16 %v805
        %v1518 = vunpack.c.l.b16 %v809
        %v1519 = vunpack.c.h.b16 %v809
        %v1520 = vunpack.c.l.b16 %v813
        %v1521 = vunpack.c.h.b16 %v813
        %v1522 = vunpack.c.l.b16 %v817
        %v1523 = vunpack.c.h.b16 %v817
        %v1524 = vunpack.c.l.b16 %v821
        %v1525 = vunpack.c.h.b16 %v821
        %v1526 = vunpack.c.l.b16 %v825
        %v1527 = vunpack.c.h.b16 %v825
        %v1528 = vpack.c.b16 %v1466, %v1464
        %v1529 = vpack.c.b16 %v1467, %v1465
        %v1530 = vpack.c.b16 %v1470, %v1468
        %v1531 = vpack.c.b16 %v1471, %v1469
        %v1532 = vpack.c.b16 %v1474, %v1472
        %v1533 = vpack.c.b16 %v1475, %v1473
        %v1534 = vpack.c.b16 %v1478, %v1476
        %v1535 = vpack.c.b16 %v1479, %v1477
        %v1536 = vpack.c.b16 %v1482, %v1480
        %v1537 = vpack.c.b16 %v1483, %v1481
        %v1538 = vpack.c.b16 %v1486, %v1484
        %v1539 = vpack.c.b16 %v1487, %v1485
        %v1540 = vpack.c.b16 %v1490, %v1488
        %v1541 = vpack.c.b16 %v1491, %v1489
        %v1542 = vpack.c.b16 %v1494, %v1492
        %v1543 = vpack.c.b16 %v1495, %v1493
        %v1544 = vpack.c.b16 %v1498, %v1496
        %v1545 = vpack.c.b16 %v1499, %v1497
        %v1546 = vpack.c.b16 %v1502, %v1500
        %v1547 = vpack.c.b16 %v1503, %v1501
        %v1548 = vpack.c.b16 %v1506, %v1504
        %v1549 = vpack.c.b16 %v1507, %v1505
        %v1550 = vpack.c.b16 %v1510, %v1508
        %v1551 = vpack.c.b16 %v1511, %v1509
        %v1552 = vpack.c.b16 %v1514, %v1512
        %v1553 = vpack.c.b16 %v1515, %v1513
        %v1554 = vpack.c.b16 %v1518, %v1516
        %v1555 = vpack.c.b16 %v1519, %v1517
        %v1556 = vpack.c.b16 %v1522, %v1520
        %v1557 = vpack.c.b16 %v1523, %v1521
        %v1558 = vpack.c.b16 %v1526, %v1524
        %v1559 = vpack.c.b16 %v1527, %v1525
        %1592 = vmatprep.subr.bf16.mxu0 %v1543
        %1593 = vmatpush1.bf16.msra.mxu0 %v1542
        %1594 = vmatprep.subr.bf16.mxu0 %v1541
        %1595 = vmatpush1.bf16.msra.mxu0 %v1540
        %1596 = vmatprep.subr.bf16.mxu0 %v1539
        %1597 = vmatpush1.bf16.msra.mxu0 %v1538
        %1598 = vmatprep.subr.bf16.mxu0 %v1537
        %1599 = vmatpush1.bf16.msra.mxu0 %v1536
        %1600 = vmatprep.subr.bf16.mxu0 %v1535
        %1601 = vmatpush1.bf16.msra.mxu0 %v1534
        %1602 = vmatprep.subr.bf16.mxu0 %v1533
        %1603 = vmatpush1.bf16.msra.mxu0 %v1532
        %1604 = vmatprep.subr.bf16.mxu0 %v1531
        %1605 = vmatpush1.bf16.msra.mxu0 %v1530
        %1606 = vmatprep.subr.bf16.mxu0 %v1529
        %1607 = vmatpush1.bf16.msra.mxu0 %v1528
        %1608 = vmatprep.subr.bf16.mxu0 %v1559
        %1609 = vmatpush2.bf16.msra.mxu0 %v1558
        %1610 = vmatprep.subr.bf16.mxu0 %v1557
        %1611 = vmatpush2.bf16.msra.mxu0 %v1556
        %1612 = vmatprep.subr.bf16.mxu0 %v1555
        %1613 = vmatpush2.bf16.msra.mxu0 %v1554
        %1614 = vmatprep.subr.bf16.mxu0 %v1553
        %1615 = vmatpush2.bf16.msra.mxu0 %v1552
        %1616 = vmatprep.subr.bf16.mxu0 %v1551
        %1617 = vmatpush2.bf16.msra.mxu0 %v1550
        %1618 = vmatprep.subr.bf16.mxu0 %v1549
        %1619 = vmatpush2.bf16.msra.mxu0 %v1548
        %1620 = vmatprep.subr.bf16.mxu0 %v1547
        %1621 = vmatpush2.bf16.msra.mxu0 %v1546
        %1622 = vmatprep.subr.bf16.mxu0 %v1545
        %1623 = vmatpush2.bf16.msra.mxu0 %v1544
        %1624 = vmatprep.mubr.bf16.mxu0 %v679
        %1625 = vmatmul.mubr.bf16.gmra.mxu0 %v678
        %v1626 = vpop.f32.mrf.mxu0
        %v1627 = vadd.f32 0.0, %v1626
        %v1628 = vpop.f32.mrf.mxu0
        %v1629 = vadd.f32 0.0, %v1628
        %v1630 = vpop.f32.mrf.mxu0
        %v1631 = vpop.f32.mrf.mxu0
        %1632 = vdwg.mxu0
        %1633 = vmatprep.subr.bf16.mxu0 %v1160
        %1634 = vmatpush1.bf16.msra.mxu0 %v1159
        %1635 = vmatprep.subr.bf16.mxu0 %v1154
        %1636 = vmatpush1.bf16.msra.mxu0 %v1153
        %1637 = vmatprep.subr.bf16.mxu0 %v1148
        %1638 = vmatpush1.bf16.msra.mxu0 %v1147
        %1639 = vmatprep.subr.bf16.mxu0 %v1142
        %1640 = vmatpush1.bf16.msra.mxu0 %v1141
        %1641 = vmatprep.subr.bf16.mxu0 %v1136
        %1642 = vmatpush1.bf16.msra.mxu0 %v1135
        %1643 = vmatprep.subr.bf16.mxu0 %v1130
        %1644 = vmatpush1.bf16.msra.mxu0 %v1129
        %1645 = vmatprep.subr.bf16.mxu0 %v1124
        %1646 = vmatpush1.bf16.msra.mxu0 %v1123
        %1647 = vmatprep.subr.bf16.mxu0 %v1118
        %1648 = vmatpush1.bf16.msra.mxu0 %v1117
        %1649 = vmatprep.subr.bf16.mxu0 %v1208
        %1650 = vmatpush2.bf16.msra.mxu0 %v1207
        %1651 = vmatprep.subr.bf16.mxu0 %v1202
        %1652 = vmatpush2.bf16.msra.mxu0 %v1201
        %1653 = vmatprep.subr.bf16.mxu0 %v1196
        %1654 = vmatpush2.bf16.msra.mxu0 %v1195
        %1655 = vmatprep.subr.bf16.mxu0 %v1190
        %1656 = vmatpush2.bf16.msra.mxu0 %v1189
        %1657 = vmatprep.subr.bf16.mxu0 %v1184
        %1658 = vmatpush2.bf16.msra.mxu0 %v1183
        %1659 = vmatprep.subr.bf16.mxu0 %v1178
        %1660 = vmatpush2.bf16.msra.mxu0 %v1177
        %1661 = vmatprep.subr.bf16.mxu0 %v1172
        %1662 = vmatpush2.bf16.msra.mxu0 %v1171
        %1663 = vmatprep.subr.bf16.mxu0 %v1166
        %1664 = vmatpush2.bf16.msra.mxu0 %v1165
        %1665 = vmatprep.mubr.bf16.mxu0 %v679
        %1666 = vmatmul.mubr.bf16.gmra.mxu0 %v678
        %v1667 = vpop.f32.mrf.mxu0
        %v1668 = vadd.f32 0.0, %v1667
        %v1669 = vpop.f32.mrf.mxu0
        %v1670 = vadd.f32 0.0, %v1669
        %v1671 = vpop.f32.mrf.mxu0
        %v1672 = vpop.f32.mrf.mxu0
        %1673 = vdwg.mxu0
        %1674 = vmatprep.subr.bf16.mxu0 %v1162
        %1675 = vmatpush1.bf16.msra.mxu0 %v1161
        %1676 = vmatprep.subr.bf16.mxu0 %v1156
        %1677 = vmatpush1.bf16.msra.mxu0 %v1155
        %1678 = vmatprep.subr.bf16.mxu0 %v1150
        %1679 = vmatpush1.bf16.msra.mxu0 %v1149
        %1680 = vmatprep.subr.bf16.mxu0 %v1144
        %1681 = vmatpush1.bf16.msra.mxu0 %v1143
        %1682 = vmatprep.subr.bf16.mxu0 %v1138
        %1683 = vmatpush1.bf16.msra.mxu0 %v1137
        %1684 = vmatprep.subr.bf16.mxu0 %v1132
        %1685 = vmatpush1.bf16.msra.mxu0 %v1131
        %1686 = vmatprep.subr.bf16.mxu0 %v1126
        %1687 = vmatpush1.bf16.msra.mxu0 %v1125
        %1688 = vmatprep.subr.bf16.mxu0 %v1120
        %1689 = vmatpush1.bf16.msra.mxu0 %v1119
        %1690 = vmatprep.subr.bf16.mxu0 %v1210
        %1691 = vmatpush2.bf16.msra.mxu0 %v1209
        %1692 = vmatprep.subr.bf16.mxu0 %v1204
        %1693 = vmatpush2.bf16.msra.mxu0 %v1203
        %1694 = vmatprep.subr.bf16.mxu0 %v1198
        %1695 = vmatpush2.bf16.msra.mxu0 %v1197
        %1696 = vmatprep.subr.bf16.mxu0 %v1192
        %1697 = vmatpush2.bf16.msra.mxu0 %v1191
        %1698 = vmatprep.subr.bf16.mxu0 %v1186
        %1699 = vmatpush2.bf16.msra.mxu0 %v1185
        %1700 = vmatprep.subr.bf16.mxu0 %v1180
        %1701 = vmatpush2.bf16.msra.mxu0 %v1179
        %1702 = vmatprep.subr.bf16.mxu0 %v1174
        %1703 = vmatpush2.bf16.msra.mxu0 %v1173
        %1704 = vmatprep.subr.bf16.mxu0 %v1168
        %1705 = vmatpush2.bf16.msra.mxu0 %v1167
        %1706 = vmatprep.mubr.bf16.mxu0 %v679
        %1707 = vmatmul.mubr.bf16.gmra.mxu0 %v678
        %v1708 = vpop.f32.mrf.mxu0
        %v1709 = vadd.f32 0.0, %v1708
        %v1710 = vpop.f32.mrf.mxu0
        %v1711 = vadd.f32 0.0, %v1710
        %v1712 = vpop.f32.mrf.mxu0
        %v1713 = vpop.f32.mrf.mxu0
        %1714 = vdwg.mxu0
        %1715 = vmatprep.subr.bf16.mxu0 %v1164
        %1716 = vmatpush1.bf16.msra.mxu0 %v1163
        %1717 = vmatprep.subr.bf16.mxu0 %v1158
        %1718 = vmatpush1.bf16.msra.mxu0 %v1157
        %1719 = vmatprep.subr.bf16.mxu0 %v1152
        %1720 = vmatpush1.bf16.msra.mxu0 %v1151
        %1721 = vmatprep.subr.bf16.mxu0 %v1146
        %1722 = vmatpush1.bf16.msra.mxu0 %v1145
        %1723 = vmatprep.subr.bf16.mxu0 %v1140
        %1724 = vmatpush1.bf16.msra.mxu0 %v1139
        %1725 = vmatprep.subr.bf16.mxu0 %v1134
        %1726 = vmatpush1.bf16.msra.mxu0 %v1133
        %1727 = vmatprep.subr.bf16.mxu0 %v1128
        %1728 = vmatpush1.bf16.msra.mxu0 %v1127
        %1729 = vmatprep.subr.bf16.mxu0 %v1122
        %1730 = vmatpush1.bf16.msra.mxu0 %v1121
        %1731 = vmatprep.subr.bf16.mxu0 %v1212
        %1732 = vmatpush2.bf16.msra.mxu0 %v1211
        %1733 = vmatprep.subr.bf16.mxu0 %v1206
        %1734 = vmatpush2.bf16.msra.mxu0 %v1205
        %1735 = vmatprep.subr.bf16.mxu0 %v1200
        %1736 = vmatpush2.bf16.msra.mxu0 %v1199
        %1737 = vmatprep.subr.bf16.mxu0 %v1194
        %1738 = vmatpush2.bf16.msra.mxu0 %v1193
        %1739 = vmatprep.subr.bf16.mxu0 %v1188
        %1740 = vmatpush2.bf16.msra.mxu0 %v1187
        %1741 = vmatprep.subr.bf16.mxu0 %v1182
        %1742 = vmatpush2.bf16.msra.mxu0 %v1181
        %1743 = vmatprep.subr.bf16.mxu0 %v1176
        %1744 = vmatpush2.bf16.msra.mxu0 %v1175
        %1745 = vmatprep.subr.bf16.mxu0 %v1170
        %1746 = vmatpush2.bf16.msra.mxu0 %v1169
        %1747 = vmatprep.mubr.bf16.mxu0 %v679
        %1748 = vmatmul.mubr.bf16.gmra.mxu0 %v678
        %v1749 = vpop.f32.mrf.mxu0
        %v1750 = vadd.f32 0.0, %v1749
        %v1751 = vpop.f32.mrf.mxu0
        %v1752 = vadd.f32 0.0, %v1751
        %v1753 = vpop.f32.mrf.mxu0
        %v1754 = vpop.f32.mrf.mxu0
        %1755 = vdwg.mxu0
        %1756 = vmatprep.subr.bf16.mxu0 %v1543
        %1757 = vmatpush1.bf16.msra.mxu0 %v1542
        %1758 = vmatprep.subr.bf16.mxu0 %v1541
        %1759 = vmatpush1.bf16.msra.mxu0 %v1540
        %1760 = vmatprep.subr.bf16.mxu0 %v1539
        %1761 = vmatpush1.bf16.msra.mxu0 %v1538
        %1762 = vmatprep.subr.bf16.mxu0 %v1537
        %1763 = vmatpush1.bf16.msra.mxu0 %v1536
        %1764 = vmatprep.subr.bf16.mxu0 %v1535
        %1765 = vmatpush1.bf16.msra.mxu0 %v1534
        %1766 = vmatprep.subr.bf16.mxu0 %v1533
        %1767 = vmatpush1.bf16.msra.mxu0 %v1532
        %1768 = vmatprep.subr.bf16.mxu0 %v1531
        %1769 = vmatpush1.bf16.msra.mxu0 %v1530
        %1770 = vmatprep.subr.bf16.mxu0 %v1529
        %1771 = vmatpush1.bf16.msra.mxu0 %v1528
        %1772 = vmatprep.subr.bf16.mxu0 %v1559
        %1773 = vmatpush2.bf16.msra.mxu0 %v1558
        %1774 = vmatprep.subr.bf16.mxu0 %v1557
        %1775 = vmatpush2.bf16.msra.mxu0 %v1556
        %1776 = vmatprep.subr.bf16.mxu0 %v1555
        %1777 = vmatpush2.bf16.msra.mxu0 %v1554
        %1778 = vmatprep.subr.bf16.mxu0 %v1553
        %1779 = vmatpush2.bf16.msra.mxu0 %v1552
        %1780 = vmatprep.subr.bf16.mxu0 %v1551
        %1781 = vmatpush2.bf16.msra.mxu0 %v1550
        %1782 = vmatprep.subr.bf16.mxu0 %v1549
        %1783 = vmatpush2.bf16.msra.mxu0 %v1548
        %1784 = vmatprep.subr.bf16.mxu0 %v1547
        %1785 = vmatpush2.bf16.msra.mxu0 %v1546
        %1786 = vmatprep.subr.bf16.mxu0 %v1545
        %1787 = vmatpush2.bf16.msra.mxu0 %v1544
        %1788 = vmatprep.mubr.bf16.mxu0 %v689
        %1789 = vmatmul.mubr.bf16.gmra.mxu0 %v688
        %v1790 = vpop.f32.mrf.mxu0
        %v1791 = vadd.f32 0.0, %v1790
        %v1792 = vpop.f32.mrf.mxu0
        %v1793 = vadd.f32 0.0, %v1792
        %v1794 = vpop.f32.mrf.mxu0
        %v1795 = vpop.f32.mrf.mxu0
        %1796 = vdwg.mxu0
        %1797 = vmatprep.subr.bf16.mxu0 %v1160
        %1798 = vmatpush1.bf16.msra.mxu0 %v1159
        %1799 = vmatprep.subr.bf16.mxu0 %v1154
        %1800 = vmatpush1.bf16.msra.mxu0 %v1153
        %1801 = vmatprep.subr.bf16.mxu0 %v1148
        %1802 = vmatpush1.bf16.msra.mxu0 %v1147
        %1803 = vmatprep.subr.bf16.mxu0 %v1142
        %1804 = vmatpush1.bf16.msra.mxu0 %v1141
        %1805 = vmatprep.subr.bf16.mxu0 %v1136
        %1806 = vmatpush1.bf16.msra.mxu0 %v1135
        %1807 = vmatprep.subr.bf16.mxu0 %v1130
        %1808 = vmatpush1.bf16.msra.mxu0 %v1129
        %1809 = vmatprep.subr.bf16.mxu0 %v1124
        %1810 = vmatpush1.bf16.msra.mxu0 %v1123
        %1811 = vmatprep.subr.bf16.mxu0 %v1118
        %1812 = vmatpush1.bf16.msra.mxu0 %v1117
        %1813 = vmatprep.subr.bf16.mxu0 %v1208
        %1814 = vmatpush2.bf16.msra.mxu0 %v1207
        %1815 = vmatprep.subr.bf16.mxu0 %v1202
        %1816 = vmatpush2.bf16.msra.mxu0 %v1201
        %1817 = vmatprep.subr.bf16.mxu0 %v1196
        %1818 = vmatpush2.bf16.msra.mxu0 %v1195
        %1819 = vmatprep.subr.bf16.mxu0 %v1190
        %1820 = vmatpush2.bf16.msra.mxu0 %v1189
        %1821 = vmatprep.subr.bf16.mxu0 %v1184
        %1822 = vmatpush2.bf16.msra.mxu0 %v1183
        %1823 = vmatprep.subr.bf16.mxu0 %v1178
        %1824 = vmatpush2.bf16.msra.mxu0 %v1177
        %1825 = vmatprep.subr.bf16.mxu0 %v1172
        %1826 = vmatpush2.bf16.msra.mxu0 %v1171
        %1827 = vmatprep.subr.bf16.mxu0 %v1166
        %1828 = vmatpush2.bf16.msra.mxu0 %v1165
        %1829 = vmatprep.mubr.bf16.mxu0 %v689
        %1830 = vmatmul.mubr.bf16.gmra.mxu0 %v688
        %v1831 = vpop.f32.mrf.mxu0
        %v1832 = vadd.f32 0.0, %v1831
        %v1833 = vpop.f32.mrf.mxu0
        %v1834 = vadd.f32 0.0, %v1833
        %v1835 = vpop.f32.mrf.mxu0
        %v1836 = vpop.f32.mrf.mxu0
        %1837 = vdwg.mxu0
        %1838 = vmatprep.subr.bf16.mxu0 %v1162
        %1839 = vmatpush1.bf16.msra.mxu0 %v1161
        %1840 = vmatprep.subr.bf16.mxu0 %v1156
        %1841 = vmatpush1.bf16.msra.mxu0 %v1155
        %1842 = vmatprep.subr.bf16.mxu0 %v1150
        %1843 = vmatpush1.bf16.msra.mxu0 %v1149
        %1844 = vmatprep.subr.bf16.mxu0 %v1144
        %1845 = vmatpush1.bf16.msra.mxu0 %v1143
        %1846 = vmatprep.subr.bf16.mxu0 %v1138
        %1847 = vmatpush1.bf16.msra.mxu0 %v1137
        %1848 = vmatprep.subr.bf16.mxu0 %v1132
        %1849 = vmatpush1.bf16.msra.mxu0 %v1131
        %1850 = vmatprep.subr.bf16.mxu0 %v1126
        %1851 = vmatpush1.bf16.msra.mxu0 %v1125
        %1852 = vmatprep.subr.bf16.mxu0 %v1120
        %1853 = vmatpush1.bf16.msra.mxu0 %v1119
        %1854 = vmatprep.subr.bf16.mxu0 %v1210
        %1855 = vmatpush2.bf16.msra.mxu0 %v1209
        %1856 = vmatprep.subr.bf16.mxu0 %v1204
        %1857 = vmatpush2.bf16.msra.mxu0 %v1203
        %1858 = vmatprep.subr.bf16.mxu0 %v1198
        %1859 = vmatpush2.bf16.msra.mxu0 %v1197
        %1860 = vmatprep.subr.bf16.mxu0 %v1192
        %1861 = vmatpush2.bf16.msra.mxu0 %v1191
        %1862 = vmatprep.subr.bf16.mxu0 %v1186
        %1863 = vmatpush2.bf16.msra.mxu0 %v1185
        %1864 = vmatprep.subr.bf16.mxu0 %v1180
        %1865 = vmatpush2.bf16.msra.mxu0 %v1179
        %1866 = vmatprep.subr.bf16.mxu0 %v1174
        %1867 = vmatpush2.bf16.msra.mxu0 %v1173
        %1868 = vmatprep.subr.bf16.mxu0 %v1168
        %1869 = vmatpush2.bf16.msra.mxu0 %v1167
        %1870 = vmatprep.mubr.bf16.mxu0 %v689
        %1871 = vmatmul.mubr.bf16.gmra.mxu0 %v688
        %v1872 = vpop.f32.mrf.mxu0
        %v1873 = vadd.f32 0.0, %v1872
        %v1874 = vpop.f32.mrf.mxu0
        %v1875 = vadd.f32 0.0, %v1874
        %v1876 = vpop.f32.mrf.mxu0
        %v1877 = vpop.f32.mrf.mxu0
        %1878 = vdwg.mxu0
        %1879 = vmatprep.subr.bf16.mxu0 %v1164
        %1880 = vmatpush1.bf16.msra.mxu0 %v1163
        %1881 = vmatprep.subr.bf16.mxu0 %v1158
        %1882 = vmatpush1.bf16.msra.mxu0 %v1157
        %1883 = vmatprep.subr.bf16.mxu0 %v1152
        %1884 = vmatpush1.bf16.msra.mxu0 %v1151
        %1885 = vmatprep.subr.bf16.mxu0 %v1146
        %1886 = vmatpush1.bf16.msra.mxu0 %v1145
        %1887 = vmatprep.subr.bf16.mxu0 %v1140
        %1888 = vmatpush1.bf16.msra.mxu0 %v1139
        %1889 = vmatprep.subr.bf16.mxu0 %v1134
        %1890 = vmatpush1.bf16.msra.mxu0 %v1133
        %1891 = vmatprep.subr.bf16.mxu0 %v1128
        %1892 = vmatpush1.bf16.msra.mxu0 %v1127
        %1893 = vmatprep.subr.bf16.mxu0 %v1122
        %1894 = vmatpush1.bf16.msra.mxu0 %v1121
        %1895 = vmatprep.subr.bf16.mxu0 %v1212
        %1896 = vmatpush2.bf16.msra.mxu0 %v1211
        %1897 = vmatprep.subr.bf16.mxu0 %v1206
        %1898 = vmatpush2.bf16.msra.mxu0 %v1205
        %1899 = vmatprep.subr.bf16.mxu0 %v1200
        %1900 = vmatpush2.bf16.msra.mxu0 %v1199
        %1901 = vmatprep.subr.bf16.mxu0 %v1194
        %1902 = vmatpush2.bf16.msra.mxu0 %v1193
        %1903 = vmatprep.subr.bf16.mxu0 %v1188
        %1904 = vmatpush2.bf16.msra.mxu0 %v1187
        %1905 = vmatprep.subr.bf16.mxu0 %v1182
        %1906 = vmatpush2.bf16.msra.mxu0 %v1181
        %1907 = vmatprep.subr.bf16.mxu0 %v1176
        %1908 = vmatpush2.bf16.msra.mxu0 %v1175
        %1909 = vmatprep.subr.bf16.mxu0 %v1170
        %1910 = vmatpush2.bf16.msra.mxu0 %v1169
        %1911 = vmatprep.mubr.bf16.mxu0 %v689
        %1912 = vmatmul.mubr.bf16.gmra.mxu0 %v688
        %v1913 = vpop.f32.mrf.mxu0
        %v1914 = vadd.f32 0.0, %v1913
        %v1915 = vpop.f32.mrf.mxu0
        %v1916 = vadd.f32 0.0, %v1915
        %v1917 = vpop.f32.mrf.mxu0
        %v1918 = vpop.f32.mrf.mxu0
        %1919 = vdwg.mxu0
        %1920 = vmatprep.subr.bf16.mxu0 %v1543
        %1921 = vmatpush1.bf16.msra.mxu0 %v1542
        %1922 = vmatprep.subr.bf16.mxu0 %v1541
        %1923 = vmatpush1.bf16.msra.mxu0 %v1540
        %1924 = vmatprep.subr.bf16.mxu0 %v1539
        %1925 = vmatpush1.bf16.msra.mxu0 %v1538
        %1926 = vmatprep.subr.bf16.mxu0 %v1537
        %1927 = vmatpush1.bf16.msra.mxu0 %v1536
        %1928 = vmatprep.subr.bf16.mxu0 %v1535
        %1929 = vmatpush1.bf16.msra.mxu0 %v1534
        %1930 = vmatprep.subr.bf16.mxu0 %v1533
        %1931 = vmatpush1.bf16.msra.mxu0 %v1532
        %1932 = vmatprep.subr.bf16.mxu0 %v1531
        %1933 = vmatpush1.bf16.msra.mxu0 %v1530
        %1934 = vmatprep.subr.bf16.mxu0 %v1529
        %1935 = vmatpush1.bf16.msra.mxu0 %v1528
        %1936 = vmatprep.subr.bf16.mxu0 %v1559
        %1937 = vmatpush2.bf16.msra.mxu0 %v1558
        %1938 = vmatprep.subr.bf16.mxu0 %v1557
        %1939 = vmatpush2.bf16.msra.mxu0 %v1556
        %1940 = vmatprep.subr.bf16.mxu0 %v1555
        %1941 = vmatpush2.bf16.msra.mxu0 %v1554
        %1942 = vmatprep.subr.bf16.mxu0 %v1553
        %1943 = vmatpush2.bf16.msra.mxu0 %v1552
        %1944 = vmatprep.subr.bf16.mxu0 %v1551
        %1945 = vmatpush2.bf16.msra.mxu0 %v1550
        %1946 = vmatprep.subr.bf16.mxu0 %v1549
        %1947 = vmatpush2.bf16.msra.mxu0 %v1548
        %1948 = vmatprep.subr.bf16.mxu0 %v1547
        %1949 = vmatpush2.bf16.msra.mxu0 %v1546
        %1950 = vmatprep.subr.bf16.mxu0 %v1545
        %1951 = vmatpush2.bf16.msra.mxu0 %v1544
        %1952 = vmatprep.mubr.bf16.mxu0 %v699
        %1953 = vmatmul.mubr.bf16.gmra.mxu0 %v698
        %v1954 = vpop.f32.mrf.mxu0
        %v1955 = vadd.f32 0.0, %v1954
        %v1956 = vpop.f32.mrf.mxu0
        %v1957 = vadd.f32 0.0, %v1956
        %v1958 = vpop.f32.mrf.mxu0
        %v1959 = vpop.f32.mrf.mxu0
        %1960 = vdwg.mxu0
        %1961 = vmatprep.subr.bf16.mxu0 %v1160
        %1962 = vmatpush1.bf16.msra.mxu0 %v1159
        %1963 = vmatprep.subr.bf16.mxu0 %v1154
        %1964 = vmatpush1.bf16.msra.mxu0 %v1153
        %1965 = vmatprep.subr.bf16.mxu0 %v1148
        %1966 = vmatpush1.bf16.msra.mxu0 %v1147
        %1967 = vmatprep.subr.bf16.mxu0 %v1142
        %1968 = vmatpush1.bf16.msra.mxu0 %v1141
        %1969 = vmatprep.subr.bf16.mxu0 %v1136
        %1970 = vmatpush1.bf16.msra.mxu0 %v1135
        %1971 = vmatprep.subr.bf16.mxu0 %v1130
        %1972 = vmatpush1.bf16.msra.mxu0 %v1129
        %1973 = vmatprep.subr.bf16.mxu0 %v1124
        %1974 = vmatpush1.bf16.msra.mxu0 %v1123
        %1975 = vmatprep.subr.bf16.mxu0 %v1118
        %1976 = vmatpush1.bf16.msra.mxu0 %v1117
        %1977 = vmatprep.subr.bf16.mxu0 %v1208
        %1978 = vmatpush2.bf16.msra.mxu0 %v1207
        %1979 = vmatprep.subr.bf16.mxu0 %v1202
        %1980 = vmatpush2.bf16.msra.mxu0 %v1201
        %1981 = vmatprep.subr.bf16.mxu0 %v1196
        %1982 = vmatpush2.bf16.msra.mxu0 %v1195
        %1983 = vmatprep.subr.bf16.mxu0 %v1190
        %1984 = vmatpush2.bf16.msra.mxu0 %v1189
        %1985 = vmatprep.subr.bf16.mxu0 %v1184
        %1986 = vmatpush2.bf16.msra.mxu0 %v1183
        %1987 = vmatprep.subr.bf16.mxu0 %v1178
        %1988 = vmatpush2.bf16.msra.mxu0 %v1177
        %1989 = vmatprep.subr.bf16.mxu0 %v1172
        %1990 = vmatpush2.bf16.msra.mxu0 %v1171
        %1991 = vmatprep.subr.bf16.mxu0 %v1166
        %1992 = vmatpush2.bf16.msra.mxu0 %v1165
        %1993 = vmatprep.mubr.bf16.mxu0 %v699
        %1994 = vmatmul.mubr.bf16.gmra.mxu0 %v698
        %v1995 = vpop.f32.mrf.mxu0
        %v1996 = vadd.f32 0.0, %v1995
        %v1997 = vpop.f32.mrf.mxu0
        %v1998 = vadd.f32 0.0, %v1997
        %v1999 = vpop.f32.mrf.mxu0
        %v2000 = vpop.f32.mrf.mxu0
        %2001 = vdwg.mxu0
        %2002 = vmatprep.subr.bf16.mxu0 %v1162
        %2003 = vmatpush1.bf16.msra.mxu0 %v1161
        %2004 = vmatprep.subr.bf16.mxu0 %v1156
        %2005 = vmatpush1.bf16.msra.mxu0 %v1155
        %2006 = vmatprep.subr.bf16.mxu0 %v1150
        %2007 = vmatpush1.bf16.msra.mxu0 %v1149
        %2008 = vmatprep.subr.bf16.mxu0 %v1144
        %2009 = vmatpush1.bf16.msra.mxu0 %v1143
        %2010 = vmatprep.subr.bf16.mxu0 %v1138
        %2011 = vmatpush1.bf16.msra.mxu0 %v1137
        %2012 = vmatprep.subr.bf16.mxu0 %v1132
        %2013 = vmatpush1.bf16.msra.mxu0 %v1131
        %2014 = vmatprep.subr.bf16.mxu0 %v1126
        %2015 = vmatpush1.bf16.msra.mxu0 %v1125
        %2016 = vmatprep.subr.bf16.mxu0 %v1120
        %2017 = vmatpush1.bf16.msra.mxu0 %v1119
        %2018 = vmatprep.subr.bf16.mxu0 %v1210
        %2019 = vmatpush2.bf16.msra.mxu0 %v1209
        %2020 = vmatprep.subr.bf16.mxu0 %v1204
        %2021 = vmatpush2.bf16.msra.mxu0 %v1203
        %2022 = vmatprep.subr.bf16.mxu0 %v1198
        %2023 = vmatpush2.bf16.msra.mxu0 %v1197
        %2024 = vmatprep.subr.bf16.mxu0 %v1192
        %2025 = vmatpush2.bf16.msra.mxu0 %v1191
        %2026 = vmatprep.subr.bf16.mxu0 %v1186
        %2027 = vmatpush2.bf16.msra.mxu0 %v1185
        %2028 = vmatprep.subr.bf16.mxu0 %v1180
        %2029 = vmatpush2.bf16.msra.mxu0 %v1179
        %2030 = vmatprep.subr.bf16.mxu0 %v1174
        %2031 = vmatpush2.bf16.msra.mxu0 %v1173
        %2032 = vmatprep.subr.bf16.mxu0 %v1168
        %2033 = vmatpush2.bf16.msra.mxu0 %v1167
        %2034 = vmatprep.mubr.bf16.mxu0 %v699
        %2035 = vmatmul.mubr.bf16.gmra.mxu0 %v698
        %v2036 = vpop.f32.mrf.mxu0
        %v2037 = vadd.f32 0.0, %v2036
        %v2038 = vpop.f32.mrf.mxu0
        %v2039 = vadd.f32 0.0, %v2038
        %v2040 = vpop.f32.mrf.mxu0
        %v2041 = vpop.f32.mrf.mxu0
        %2042 = vdwg.mxu0
        %v2043 = vadd.f32 %v1385, %v1627
        %v2044 = vadd.f32 %v1387, %v1629
        %v2045 = vadd.f32 %v1668, %v1426
        %v2046 = vadd.f32 %v1670, %v1428
        %v2047 = vadd.f32 %v1709, %v1791
        %v2048 = vadd.f32 %v1711, %v1793
        %v2049 = vadd.f32 %v1832, %v1750
        %v2050 = vadd.f32 %v1834, %v1752
        %v2051 = vadd.f32 %v1873, %v1955
        %v2052 = vadd.f32 %v1875, %v1957
        %v2053 = vadd.f32 %v1996, %v1914
        %v2054 = vadd.f32 %v1998, %v1916
        %v2056 = vlaneseq
        %v2057 = vshrl.u32 %v2056, 7
        %v2058 = vsub.s32 0, %v2057
        %v2059 = vrot.slane %v700, %v2058
        %v2060 = vlaneseq
        %v2061 = vshrl.u32 %v2060, 7
        %v2062 = vsub.s32 1, %v2061
        %v2063 = vrot.slane %v700, %v2062
        %v2066 = vadd.f32 %v1344, %v2059
        %v2067 = vadd.f32 %v1346, %v2063
        %vm2068 = vcmp.ge.f32.partialorder %v2066, 0.0
        %vm2069 = vcmp.ge.f32.partialorder %v2067, 0.0
        %v2070 = vmul.f32 %v2066, 0.2
        %v2071 = vmul.f32 %v2067, 0.2
        %v2072 = vsel %vm2068, %v2066, %v2070
        %v2073 = vsel %vm2069, %v2067, %v2071
        %v2074 = vpack.c.bf16 %v2072, %v2072
        %v2075 = vpack.c.bf16 %v2073, %v2073
        %v2076 = vadd.f32 %v2043, %v2059
        %v2077 = vadd.f32 %v2044, %v2063
        %vm2078 = vcmp.ge.f32.partialorder %v2076, 0.0
        %vm2079 = vcmp.ge.f32.partialorder %v2077, 0.0
        %v2080 = vmul.f32 %v2076, 0.2
        %v2081 = vmul.f32 %v2077, 0.2
        %v2082 = vsel %vm2078, %v2076, %v2080
        %v2083 = vsel %vm2079, %v2077, %v2081
        %v2084 = vpack.c.bf16 %v2082, %v2082
        %v2085 = vpack.c.bf16 %v2083, %v2083
        %v2086 = vadd.f32 %v2045, %v2059
        %v2087 = vadd.f32 %v2046, %v2063
        %vm2088 = vcmp.ge.f32.partialorder %v2086, 0.0
        %vm2089 = vcmp.ge.f32.partialorder %v2087, 0.0
        %v2090 = vmul.f32 %v2086, 0.2
        %v2091 = vmul.f32 %v2087, 0.2
        %v2092 = vsel %vm2088, %v2086, %v2090
        %v2093 = vsel %vm2089, %v2087, %v2091
        %v2094 = vpack.c.bf16 %v2092, %v2092
        %v2095 = vpack.c.bf16 %v2093, %v2093
        %v2096 = vadd.f32 %v2047, %v2059
        %v2097 = vadd.f32 %v2048, %v2063
        %vm2098 = vcmp.ge.f32.partialorder %v2096, 0.0
        %vm2099 = vcmp.ge.f32.partialorder %v2097, 0.0
        %v2100 = vmul.f32 %v2096, 0.2
        %v2101 = vmul.f32 %v2097, 0.2
        %v2102 = vsel %vm2098, %v2096, %v2100
        %v2103 = vsel %vm2099, %v2097, %v2101
        %v2104 = vpack.c.bf16 %v2102, %v2102
        %v2105 = vpack.c.bf16 %v2103, %v2103
        %v2106 = vadd.f32 %v2049, %v2059
        %v2107 = vadd.f32 %v2050, %v2063
        %vm2108 = vcmp.ge.f32.partialorder %v2106, 0.0
        %vm2109 = vcmp.ge.f32.partialorder %v2107, 0.0
        %v2110 = vmul.f32 %v2106, 0.2
        %v2111 = vmul.f32 %v2107, 0.2
        %v2112 = vsel %vm2108, %v2106, %v2110
        %v2113 = vsel %vm2109, %v2107, %v2111
        %v2114 = vpack.c.bf16 %v2112, %v2112
        %v2115 = vpack.c.bf16 %v2113, %v2113
        %v2116 = vadd.f32 %v2051, %v2059
        %v2117 = vadd.f32 %v2052, %v2063
        %vm2118 = vcmp.ge.f32.partialorder %v2116, 0.0
        %vm2119 = vcmp.ge.f32.partialorder %v2117, 0.0
        %v2120 = vmul.f32 %v2116, 0.2
        %v2121 = vmul.f32 %v2117, 0.2
        %v2122 = vsel %vm2118, %v2116, %v2120
        %v2123 = vsel %vm2119, %v2117, %v2121
        %v2124 = vpack.c.bf16 %v2122, %v2122
        %v2125 = vpack.c.bf16 %v2123, %v2123
        %v2126 = vadd.f32 %v2053, %v2059
        %v2127 = vadd.f32 %v2054, %v2063
        %vm2128 = vcmp.ge.f32.partialorder %v2126, 0.0
        %vm2129 = vcmp.ge.f32.partialorder %v2127, 0.0
        %v2130 = vmul.f32 %v2126, 0.2
        %v2131 = vmul.f32 %v2127, 0.2
        %v2132 = vsel %vm2128, %v2126, %v2130
        %v2133 = vsel %vm2129, %v2127, %v2131
        %v2134 = vpack.c.bf16 %v2132, %v2132
        %v2135 = vpack.c.bf16 %v2133, %v2133
        %v2136 = vadd.f32 %v2037, %v2059
        %v2137 = vadd.f32 %v2039, %v2063
        %vm2138 = vcmp.ge.f32.partialorder %v2136, 0.0
        %vm2139 = vcmp.ge.f32.partialorder %v2137, 0.0
        %v2140 = vmul.f32 %v2136, 0.2
        %v2141 = vmul.f32 %v2137, 0.2
        %v2142 = vsel %vm2138, %v2136, %v2140
        %v2143 = vsel %vm2139, %v2137, %v2141
        %v2144 = vpack.c.bf16 %v2142, %v2142
        %v2145 = vpack.c.bf16 %v2143, %v2143
        %v2146 = vld [vmem:[%s6] sm:$0x3]
        %v2147 = vld [vmem:[#allocation7] sm:$0xff]
        %v2148 = vld [vmem:[#allocation7 + $0x8] sm:$0xff]
        %v2149 = vld [vmem:[#allocation7 + $0x10] sm:$0xff]
        %v2150 = vld [vmem:[#allocation7 + $0x18] sm:$0xff]
        %v2151 = vld [vmem:[#allocation7 + $0x20] sm:$0xff]
        %v2152 = vld [vmem:[#allocation7 + $0x28] sm:$0xff]
        %v2153 = vld [vmem:[#allocation7 + $0x30] sm:$0xff]
        %v2154 = vld [vmem:[#allocation7 + $0x38] sm:$0xff]
        %v2155 = vld [vmem:[#allocation7 + $0x40] sm:$0xff]
        %v2156 = vld [vmem:[#allocation7 + $0x48] sm:$0xff]
        %v2157 = vld [vmem:[#allocation7 + $0x50] sm:$0xff]
        %v2158 = vld [vmem:[#allocation7 + $0x58] sm:$0xff]
        %v2159 = vld [vmem:[#allocation7 + $0x60] sm:$0xff]
        %v2160 = vld [vmem:[#allocation7 + $0x68] sm:$0xff]
        %v2161 = vld [vmem:[#allocation7 + $0x70] sm:$0xff]
        %v2162 = vld [vmem:[#allocation7 + $0x78] sm:$0xff]
        %v2163 = vld [vmem:[#allocation7 + $0x80] sm:$0xff]
        %v2164 = vld [vmem:[#allocation7 + $0x88] sm:$0xff]
        %v2165 = vld [vmem:[#allocation7 + $0x90] sm:$0xff]
        %v2166 = vld [vmem:[#allocation7 + $0x98] sm:$0xff]
        %v2167 = vld [vmem:[#allocation7 + $0xa0] sm:$0xff]
        %v2168 = vld [vmem:[#allocation7 + $0xa8] sm:$0xff]
        %v2169 = vld [vmem:[#allocation7 + $0xb0] sm:$0xff]
        %v2170 = vld [vmem:[#allocation7 + $0xb8] sm:$0xff]
        %v2171 = vld [vmem:[#allocation7 + $0xc0] sm:$0xff]
        %v2172 = vld [vmem:[#allocation7 + $0xc8] sm:$0xff]
        %v2173 = vld [vmem:[#allocation7 + $0xd0] sm:$0xff]
        %v2174 = vld [vmem:[#allocation7 + $0xd8] sm:$0xff]
        %v2175 = vld [vmem:[#allocation7 + $0xe0] sm:$0xff]
        %v2176 = vld [vmem:[#allocation7 + $0xe8] sm:$0xff]
        %v2177 = vld [vmem:[#allocation7 + $0xf0] sm:$0xff]
        %v2178 = vld [vmem:[#allocation7 + $0xf8] sm:$0xff]
        %v2179 = vld [vmem:[#allocation7 + $0x100] sm:$0xff]
        %v2180 = vld [vmem:[#allocation7 + $0x108] sm:$0xff]
        %v2181 = vld [vmem:[#allocation7 + $0x110] sm:$0xff]
        %v2182 = vld [vmem:[#allocation7 + $0x118] sm:$0xff]
        %v2183 = vld [vmem:[#allocation7 + $0x120] sm:$0xff]
        %v2184 = vld [vmem:[#allocation7 + $0x128] sm:$0xff]
        %v2185 = vld [vmem:[#allocation7 + $0x130] sm:$0xff]
        %v2186 = vld [vmem:[#allocation7 + $0x138] sm:$0xff]
        %v2187 = vld [vmem:[#allocation7 + $0x140] sm:$0xff]
        %v2188 = vld [vmem:[#allocation7 + $0x148] sm:$0xff]
        %v2189 = vld [vmem:[#allocation7 + $0x150] sm:$0xff]
        %v2190 = vld [vmem:[#allocation7 + $0x158] sm:$0xff]
        %v2191 = vld [vmem:[#allocation7 + $0x160] sm:$0xff]
        %v2192 = vld [vmem:[#allocation7 + $0x168] sm:$0xff]
        %v2193 = vld [vmem:[#allocation7 + $0x170] sm:$0xff]
        %v2194 = vld [vmem:[#allocation7 + $0x178] sm:$0xff]
        %v2195 = vld [vmem:[#allocation7 + $0x180] sm:$0xff]
        %v2196 = vld [vmem:[#allocation7 + $0x188] sm:$0xff]
        %v2197 = vld [vmem:[#allocation7 + $0x190] sm:$0xff]
        %v2198 = vld [vmem:[#allocation7 + $0x198] sm:$0xff]
        %v2199 = vld [vmem:[#allocation7 + $0x1a0] sm:$0xff]
        %v2200 = vld [vmem:[#allocation7 + $0x1a8] sm:$0xff]
        %v2201 = vld [vmem:[#allocation7 + $0x1b0] sm:$0xff]
        %v2202 = vld [vmem:[#allocation7 + $0x1b8] sm:$0xff]
        %v2203 = vld [vmem:[#allocation7 + $0x1c0] sm:$0xff]
        %v2204 = vld [vmem:[#allocation7 + $0x1c8] sm:$0xff]
        %v2205 = vld [vmem:[#allocation7 + $0x1d0] sm:$0xff]
        %v2206 = vld [vmem:[#allocation7 + $0x1d8] sm:$0xff]
        %v2207 = vld [vmem:[#allocation7 + $0x1e0] sm:$0xff]
        %v2208 = vld [vmem:[#allocation7 + $0x1e8] sm:$0xff]
        %v2209 = vld [vmem:[#allocation7 + $0x1f0] sm:$0xff]
        %v2210 = vld [vmem:[#allocation7 + $0x1f8] sm:$0xff]
        %v2211 = vld [vmem:[#allocation7 + $0x200] sm:$0xff]
        %v2212 = vld [vmem:[#allocation7 + $0x208] sm:$0xff]
        %v2213 = vld [vmem:[#allocation7 + $0x210] sm:$0xff]
        %v2214 = vld [vmem:[#allocation7 + $0x218] sm:$0xff]
        %v2215 = vld [vmem:[#allocation7 + $0x220] sm:$0xff]
        %v2216 = vld [vmem:[#allocation7 + $0x228] sm:$0xff]
        %v2217 = vld [vmem:[#allocation7 + $0x230] sm:$0xff]
        %v2218 = vld [vmem:[#allocation7 + $0x238] sm:$0xff]
        %v2219 = vld [vmem:[#allocation7 + $0x240] sm:$0xff]
        %v2220 = vld [vmem:[#allocation7 + $0x248] sm:$0xff]
        %v2221 = vld [vmem:[#allocation7 + $0x250] sm:$0xff]
        %v2222 = vld [vmem:[#allocation7 + $0x258] sm:$0xff]
        %v2223 = vld [vmem:[#allocation7 + $0x260] sm:$0xff]
        %v2224 = vld [vmem:[#allocation7 + $0x268] sm:$0xff]
        %v2225 = vld [vmem:[#allocation7 + $0x270] sm:$0xff]
        %v2226 = vld [vmem:[#allocation7 + $0x278] sm:$0xff]
        %v2227 = vld [vmem:[#allocation7 + $0x280] sm:$0xff]
        %v2228 = vld [vmem:[#allocation7 + $0x288] sm:$0xff]
        %v2229 = vld [vmem:[#allocation7 + $0x290] sm:$0xff]
        %v2230 = vld [vmem:[#allocation7 + $0x298] sm:$0xff]
        %v2231 = vld [vmem:[#allocation7 + $0x2a0] sm:$0xff]
        %v2232 = vld [vmem:[#allocation7 + $0x2a8] sm:$0xff]
        %v2233 = vld [vmem:[#allocation7 + $0x2b0] sm:$0xff]
        %v2234 = vld [vmem:[#allocation7 + $0x2b8] sm:$0xff]
        %v2235 = vld [vmem:[#allocation7 + $0x2c0] sm:$0xff]
        %v2236 = vld [vmem:[#allocation7 + $0x2c8] sm:$0xff]
        %v2237 = vld [vmem:[#allocation7 + $0x2d0] sm:$0xff]
        %v2238 = vld [vmem:[#allocation7 + $0x2d8] sm:$0xff]
        %v2239 = vld [vmem:[#allocation7 + $0x2e0] sm:$0xff]
        %v2240 = vld [vmem:[#allocation7 + $0x2e8] sm:$0xff]
        %v2241 = vld [vmem:[#allocation7 + $0x2f0] sm:$0xff]
        %v2242 = vld [vmem:[#allocation7 + $0x2f8] sm:$0xff]
        %v2243 = vld [vmem:[#allocation7 + $0x300] sm:$0xff]
        %v2244 = vld [vmem:[#allocation7 + $0x308] sm:$0xff]
        %v2245 = vld [vmem:[#allocation7 + $0x310] sm:$0xff]
        %v2246 = vld [vmem:[#allocation7 + $0x318] sm:$0xff]
        %v2247 = vld [vmem:[#allocation7 + $0x320] sm:$0xff]
        %v2248 = vld [vmem:[#allocation7 + $0x328] sm:$0xff]
        %v2249 = vld [vmem:[#allocation7 + $0x330] sm:$0xff]
        %v2250 = vld [vmem:[#allocation7 + $0x338] sm:$0xff]
        %v2251 = vld [vmem:[#allocation7 + $0x340] sm:$0xff]
        %v2252 = vld [vmem:[#allocation7 + $0x348] sm:$0xff]
        %v2253 = vld [vmem:[#allocation7 + $0x350] sm:$0xff]
        %v2254 = vld [vmem:[#allocation7 + $0x358] sm:$0xff]
        %v2255 = vld [vmem:[#allocation7 + $0x360] sm:$0xff]
        %v2256 = vld [vmem:[#allocation7 + $0x368] sm:$0xff]
        %v2257 = vld [vmem:[#allocation7 + $0x370] sm:$0xff]
        %v2258 = vld [vmem:[#allocation7 + $0x378] sm:$0xff]
        %v2259 = vld [vmem:[#allocation7 + $0x380] sm:$0xff]
        %v2260 = vld [vmem:[#allocation7 + $0x388] sm:$0xff]
        %v2261 = vld [vmem:[#allocation7 + $0x390] sm:$0xff]
        %v2262 = vld [vmem:[#allocation7 + $0x398] sm:$0xff]
        %v2263 = vld [vmem:[#allocation7 + $0x3a0] sm:$0xff]
        %v2264 = vld [vmem:[#allocation7 + $0x3a8] sm:$0xff]
        %v2265 = vld [vmem:[#allocation7 + $0x3b0] sm:$0xff]
        %v2266 = vld [vmem:[#allocation7 + $0x3b8] sm:$0xff]
        %v2267 = vld [vmem:[#allocation7 + $0x3c0] sm:$0xff]
        %v2268 = vld [vmem:[#allocation7 + $0x3c8] sm:$0xff]
        %v2269 = vld [vmem:[#allocation7 + $0x3d0] sm:$0xff]
        %v2270 = vld [vmem:[#allocation7 + $0x3d8] sm:$0xff]
        %v2271 = vld [vmem:[#allocation7 + $0x3e0] sm:$0xff]
        %v2272 = vld [vmem:[#allocation7 + $0x3e8] sm:$0xff]
        %v2273 = vld [vmem:[#allocation7 + $0x3f0] sm:$0xff]
        %v2274 = vld [vmem:[#allocation7 + $0x3f8] sm:$0xff]
        %v2371 = vunpack.c.l.b16 %v2148
        %v2372 = vunpack.c.h.b16 %v2148
        %v2373 = vunpack.c.l.b16 %v2149
        %v2374 = vunpack.c.h.b16 %v2149
        %v2375 = vunpack.c.l.b16 %v2150
        %v2376 = vunpack.c.h.b16 %v2150
        %v2377 = vunpack.c.l.b16 %v2152
        %v2378 = vunpack.c.h.b16 %v2152
        %v2379 = vunpack.c.l.b16 %v2153
        %v2380 = vunpack.c.h.b16 %v2153
        %v2381 = vunpack.c.l.b16 %v2154
        %v2382 = vunpack.c.h.b16 %v2154
        %v2383 = vunpack.c.l.b16 %v2156
        %v2384 = vunpack.c.h.b16 %v2156
        %v2385 = vunpack.c.l.b16 %v2157
        %v2386 = vunpack.c.h.b16 %v2157
        %v2387 = vunpack.c.l.b16 %v2158
        %v2388 = vunpack.c.h.b16 %v2158
        %v2389 = vunpack.c.l.b16 %v2160
        %v2390 = vunpack.c.h.b16 %v2160
        %v2391 = vunpack.c.l.b16 %v2161
        %v2392 = vunpack.c.h.b16 %v2161
        %v2393 = vunpack.c.l.b16 %v2162
        %v2394 = vunpack.c.h.b16 %v2162
        %v2395 = vunpack.c.l.b16 %v2164
        %v2396 = vunpack.c.h.b16 %v2164
        %v2397 = vunpack.c.l.b16 %v2165
        %v2398 = vunpack.c.h.b16 %v2165
        %v2399 = vunpack.c.l.b16 %v2166
        %v2400 = vunpack.c.h.b16 %v2166
        %v2401 = vunpack.c.l.b16 %v2168
        %v2402 = vunpack.c.h.b16 %v2168
        %v2403 = vunpack.c.l.b16 %v2169
        %v2404 = vunpack.c.h.b16 %v2169
        %v2405 = vunpack.c.l.b16 %v2170
        %v2406 = vunpack.c.h.b16 %v2170
        %v2407 = vunpack.c.l.b16 %v2172
        %v2408 = vunpack.c.h.b16 %v2172
        %v2409 = vunpack.c.l.b16 %v2173
        %v2410 = vunpack.c.h.b16 %v2173
        %v2411 = vunpack.c.l.b16 %v2174
        %v2412 = vunpack.c.h.b16 %v2174
        %v2413 = vunpack.c.l.b16 %v2176
        %v2414 = vunpack.c.h.b16 %v2176
        %v2415 = vunpack.c.l.b16 %v2177
        %v2416 = vunpack.c.h.b16 %v2177
        %v2417 = vunpack.c.l.b16 %v2178
        %v2418 = vunpack.c.h.b16 %v2178
        %v2419 = vunpack.c.l.b16 %v2180
        %v2420 = vunpack.c.h.b16 %v2180
        %v2421 = vunpack.c.l.b16 %v2181
        %v2422 = vunpack.c.h.b16 %v2181
        %v2423 = vunpack.c.l.b16 %v2182
        %v2424 = vunpack.c.h.b16 %v2182
        %v2425 = vunpack.c.l.b16 %v2184
        %v2426 = vunpack.c.h.b16 %v2184
        %v2427 = vunpack.c.l.b16 %v2185
        %v2428 = vunpack.c.h.b16 %v2185
        %v2429 = vunpack.c.l.b16 %v2186
        %v2430 = vunpack.c.h.b16 %v2186
        %v2431 = vunpack.c.l.b16 %v2188
        %v2432 = vunpack.c.h.b16 %v2188
        %v2433 = vunpack.c.l.b16 %v2189
        %v2434 = vunpack.c.h.b16 %v2189
        %v2435 = vunpack.c.l.b16 %v2190
        %v2436 = vunpack.c.h.b16 %v2190
        %v2437 = vunpack.c.l.b16 %v2192
        %v2438 = vunpack.c.h.b16 %v2192
        %v2439 = vunpack.c.l.b16 %v2193
        %v2440 = vunpack.c.h.b16 %v2193
        %v2441 = vunpack.c.l.b16 %v2194
        %v2442 = vunpack.c.h.b16 %v2194
        %v2443 = vunpack.c.l.b16 %v2196
        %v2444 = vunpack.c.h.b16 %v2196
        %v2445 = vunpack.c.l.b16 %v2197
        %v2446 = vunpack.c.h.b16 %v2197
        %v2447 = vunpack.c.l.b16 %v2198
        %v2448 = vunpack.c.h.b16 %v2198
        %v2449 = vunpack.c.l.b16 %v2200
        %v2450 = vunpack.c.h.b16 %v2200
        %v2451 = vunpack.c.l.b16 %v2201
        %v2452 = vunpack.c.h.b16 %v2201
        %v2453 = vunpack.c.l.b16 %v2202
        %v2454 = vunpack.c.h.b16 %v2202
        %v2455 = vunpack.c.l.b16 %v2204
        %v2456 = vunpack.c.h.b16 %v2204
        %v2457 = vunpack.c.l.b16 %v2205
        %v2458 = vunpack.c.h.b16 %v2205
        %v2459 = vunpack.c.l.b16 %v2206
        %v2460 = vunpack.c.h.b16 %v2206
        %v2461 = vunpack.c.l.b16 %v2208
        %v2462 = vunpack.c.h.b16 %v2208
        %v2463 = vunpack.c.l.b16 %v2209
        %v2464 = vunpack.c.h.b16 %v2209
        %v2465 = vunpack.c.l.b16 %v2210
        %v2466 = vunpack.c.h.b16 %v2210
        %v2467 = vunpack.c.l.b16 %v2212
        %v2468 = vunpack.c.h.b16 %v2212
        %v2469 = vunpack.c.l.b16 %v2213
        %v2470 = vunpack.c.h.b16 %v2213
        %v2471 = vunpack.c.l.b16 %v2214
        %v2472 = vunpack.c.h.b16 %v2214
        %v2473 = vunpack.c.l.b16 %v2216
        %v2474 = vunpack.c.h.b16 %v2216
        %v2475 = vunpack.c.l.b16 %v2217
        %v2476 = vunpack.c.h.b16 %v2217
        %v2477 = vunpack.c.l.b16 %v2218
        %v2478 = vunpack.c.h.b16 %v2218
        %v2479 = vunpack.c.l.b16 %v2220
        %v2480 = vunpack.c.h.b16 %v2220
        %v2481 = vunpack.c.l.b16 %v2221
        %v2482 = vunpack.c.h.b16 %v2221
        %v2483 = vunpack.c.l.b16 %v2222
        %v2484 = vunpack.c.h.b16 %v2222
        %v2485 = vunpack.c.l.b16 %v2224
        %v2486 = vunpack.c.h.b16 %v2224
        %v2487 = vunpack.c.l.b16 %v2225
        %v2488 = vunpack.c.h.b16 %v2225
        %v2489 = vunpack.c.l.b16 %v2226
        %v2490 = vunpack.c.h.b16 %v2226
        %v2491 = vunpack.c.l.b16 %v2228
        %v2492 = vunpack.c.h.b16 %v2228
        %v2493 = vunpack.c.l.b16 %v2229
        %v2494 = vunpack.c.h.b16 %v2229
        %v2495 = vunpack.c.l.b16 %v2230
        %v2496 = vunpack.c.h.b16 %v2230
        %v2497 = vunpack.c.l.b16 %v2232
        %v2498 = vunpack.c.h.b16 %v2232
        %v2499 = vunpack.c.l.b16 %v2233
        %v2500 = vunpack.c.h.b16 %v2233
        %v2501 = vunpack.c.l.b16 %v2234
        %v2502 = vunpack.c.h.b16 %v2234
        %v2503 = vunpack.c.l.b16 %v2236
        %v2504 = vunpack.c.h.b16 %v2236
        %v2505 = vunpack.c.l.b16 %v2237
        %v2506 = vunpack.c.h.b16 %v2237
        %v2507 = vunpack.c.l.b16 %v2238
        %v2508 = vunpack.c.h.b16 %v2238
        %v2509 = vunpack.c.l.b16 %v2240
        %v2510 = vunpack.c.h.b16 %v2240
        %v2511 = vunpack.c.l.b16 %v2241
        %v2512 = vunpack.c.h.b16 %v2241
        %v2513 = vunpack.c.l.b16 %v2242
        %v2514 = vunpack.c.h.b16 %v2242
        %v2515 = vunpack.c.l.b16 %v2244
        %v2516 = vunpack.c.h.b16 %v2244
        %v2517 = vunpack.c.l.b16 %v2245
        %v2518 = vunpack.c.h.b16 %v2245
        %v2519 = vunpack.c.l.b16 %v2246
        %v2520 = vunpack.c.h.b16 %v2246
        %v2521 = vunpack.c.l.b16 %v2248
        %v2522 = vunpack.c.h.b16 %v2248
        %v2523 = vunpack.c.l.b16 %v2249
        %v2524 = vunpack.c.h.b16 %v2249
        %v2525 = vunpack.c.l.b16 %v2250
        %v2526 = vunpack.c.h.b16 %v2250
        %v2527 = vunpack.c.l.b16 %v2252
        %v2528 = vunpack.c.h.b16 %v2252
        %v2529 = vunpack.c.l.b16 %v2253
        %v2530 = vunpack.c.h.b16 %v2253
        %v2531 = vunpack.c.l.b16 %v2254
        %v2532 = vunpack.c.h.b16 %v2254
        %v2533 = vunpack.c.l.b16 %v2256
        %v2534 = vunpack.c.h.b16 %v2256
        %v2535 = vunpack.c.l.b16 %v2257
        %v2536 = vunpack.c.h.b16 %v2257
        %v2537 = vunpack.c.l.b16 %v2258
        %v2538 = vunpack.c.h.b16 %v2258
        %v2539 = vunpack.c.l.b16 %v2260
        %v2540 = vunpack.c.h.b16 %v2260
        %v2541 = vunpack.c.l.b16 %v2261
        %v2542 = vunpack.c.h.b16 %v2261
        %v2543 = vunpack.c.l.b16 %v2262
        %v2544 = vunpack.c.h.b16 %v2262
        %v2545 = vunpack.c.l.b16 %v2264
        %v2546 = vunpack.c.h.b16 %v2264
        %v2547 = vunpack.c.l.b16 %v2265
        %v2548 = vunpack.c.h.b16 %v2265
        %v2549 = vunpack.c.l.b16 %v2266
        %v2550 = vunpack.c.h.b16 %v2266
        %v2551 = vunpack.c.l.b16 %v2268
        %v2552 = vunpack.c.h.b16 %v2268
        %v2553 = vunpack.c.l.b16 %v2269
        %v2554 = vunpack.c.h.b16 %v2269
        %v2555 = vunpack.c.l.b16 %v2270
        %v2556 = vunpack.c.h.b16 %v2270
        %v2557 = vunpack.c.l.b16 %v2272
        %v2558 = vunpack.c.h.b16 %v2272
        %v2559 = vunpack.c.l.b16 %v2273
        %v2560 = vunpack.c.h.b16 %v2273
        %v2561 = vunpack.c.l.b16 %v2274
        %v2562 = vunpack.c.h.b16 %v2274
        %v2563 = vpack.c.b16 %v2377, %v2371
        %v2564 = vpack.c.b16 %v2378, %v2372
        %v2565 = vpack.c.b16 %v2379, %v2373
        %v2566 = vpack.c.b16 %v2380, %v2374
        %v2567 = vpack.c.b16 %v2381, %v2375
        %v2568 = vpack.c.b16 %v2382, %v2376
        %v2569 = vpack.c.b16 %v2389, %v2383
        %v2570 = vpack.c.b16 %v2390, %v2384
        %v2571 = vpack.c.b16 %v2391, %v2385
        %v2572 = vpack.c.b16 %v2392, %v2386
        %v2573 = vpack.c.b16 %v2393, %v2387
        %v2574 = vpack.c.b16 %v2394, %v2388
        %v2575 = vpack.c.b16 %v2401, %v2395
        %v2576 = vpack.c.b16 %v2402, %v2396
        %v2577 = vpack.c.b16 %v2403, %v2397
        %v2578 = vpack.c.b16 %v2404, %v2398
        %v2579 = vpack.c.b16 %v2405, %v2399
        %v2580 = vpack.c.b16 %v2406, %v2400
        %v2581 = vpack.c.b16 %v2413, %v2407
        %v2582 = vpack.c.b16 %v2414, %v2408
        %v2583 = vpack.c.b16 %v2415, %v2409
        %v2584 = vpack.c.b16 %v2416, %v2410
        %v2585 = vpack.c.b16 %v2417, %v2411
        %v2586 = vpack.c.b16 %v2418, %v2412
        %v2587 = vpack.c.b16 %v2425, %v2419
        %v2588 = vpack.c.b16 %v2426, %v2420
        %v2589 = vpack.c.b16 %v2427, %v2421
        %v2590 = vpack.c.b16 %v2428, %v2422
        %v2591 = vpack.c.b16 %v2429, %v2423
        %v2592 = vpack.c.b16 %v2430, %v2424
        %v2593 = vpack.c.b16 %v2437, %v2431
        %v2594 = vpack.c.b16 %v2438, %v2432
        %v2595 = vpack.c.b16 %v2439, %v2433
        %v2596 = vpack.c.b16 %v2440, %v2434
        %v2597 = vpack.c.b16 %v2441, %v2435
        %v2598 = vpack.c.b16 %v2442, %v2436
        %v2599 = vpack.c.b16 %v2449, %v2443
        %v2600 = vpack.c.b16 %v2450, %v2444
        %v2601 = vpack.c.b16 %v2451, %v2445
        %v2602 = vpack.c.b16 %v2452, %v2446
        %v2603 = vpack.c.b16 %v2453, %v2447
        %v2604 = vpack.c.b16 %v2454, %v2448
        %v2605 = vpack.c.b16 %v2461, %v2455
        %v2606 = vpack.c.b16 %v2462, %v2456
        %v2607 = vpack.c.b16 %v2463, %v2457
        %v2608 = vpack.c.b16 %v2464, %v2458
        %v2609 = vpack.c.b16 %v2465, %v2459
        %v2610 = vpack.c.b16 %v2466, %v2460
        %v2611 = vpack.c.b16 %v2473, %v2467
        %v2612 = vpack.c.b16 %v2474, %v2468
        %v2613 = vpack.c.b16 %v2475, %v2469
        %v2614 = vpack.c.b16 %v2476, %v2470
        %v2615 = vpack.c.b16 %v2477, %v2471
        %v2616 = vpack.c.b16 %v2478, %v2472
        %v2617 = vpack.c.b16 %v2485, %v2479
        %v2618 = vpack.c.b16 %v2486, %v2480
        %v2619 = vpack.c.b16 %v2487, %v2481
        %v2620 = vpack.c.b16 %v2488, %v2482
        %v2621 = vpack.c.b16 %v2489, %v2483
        %v2622 = vpack.c.b16 %v2490, %v2484
        %v2623 = vpack.c.b16 %v2497, %v2491
        %v2624 = vpack.c.b16 %v2498, %v2492
        %v2625 = vpack.c.b16 %v2499, %v2493
        %v2626 = vpack.c.b16 %v2500, %v2494
        %v2627 = vpack.c.b16 %v2501, %v2495
        %v2628 = vpack.c.b16 %v2502, %v2496
        %v2629 = vpack.c.b16 %v2509, %v2503
        %v2630 = vpack.c.b16 %v2510, %v2504
        %v2631 = vpack.c.b16 %v2511, %v2505
        %v2632 = vpack.c.b16 %v2512, %v2506
        %v2633 = vpack.c.b16 %v2513, %v2507
        %v2634 = vpack.c.b16 %v2514, %v2508
        %v2635 = vpack.c.b16 %v2521, %v2515
        %v2636 = vpack.c.b16 %v2522, %v2516
        %v2637 = vpack.c.b16 %v2523, %v2517
        %v2638 = vpack.c.b16 %v2524, %v2518
        %v2639 = vpack.c.b16 %v2525, %v2519
        %v2640 = vpack.c.b16 %v2526, %v2520
        %v2641 = vpack.c.b16 %v2533, %v2527
        %v2642 = vpack.c.b16 %v2534, %v2528
        %v2643 = vpack.c.b16 %v2535, %v2529
        %v2644 = vpack.c.b16 %v2536, %v2530
        %v2645 = vpack.c.b16 %v2537, %v2531
        %v2646 = vpack.c.b16 %v2538, %v2532
        %v2647 = vpack.c.b16 %v2545, %v2539
        %v2648 = vpack.c.b16 %v2546, %v2540
        %v2649 = vpack.c.b16 %v2547, %v2541
        %v2650 = vpack.c.b16 %v2548, %v2542
        %v2651 = vpack.c.b16 %v2549, %v2543
        %v2652 = vpack.c.b16 %v2550, %v2544
        %v2653 = vpack.c.b16 %v2557, %v2551
        %v2654 = vpack.c.b16 %v2558, %v2552
        %v2655 = vpack.c.b16 %v2559, %v2553
        %v2656 = vpack.c.b16 %v2560, %v2554
        %v2657 = vpack.c.b16 %v2561, %v2555
        %v2658 = vpack.c.b16 %v2562, %v2556
        %2755 = vmatprep.subr.bf16.mxu0 %v2606
        %2756 = vmatpush1.bf16.msra.mxu0 %v2605
        %2757 = vmatprep.subr.bf16.mxu0 %v2600
        %2758 = vmatpush1.bf16.msra.mxu0 %v2599
        %2759 = vmatprep.subr.bf16.mxu0 %v2594
        %2760 = vmatpush1.bf16.msra.mxu0 %v2593
        %2761 = vmatprep.subr.bf16.mxu0 %v2588
        %2762 = vmatpush1.bf16.msra.mxu0 %v2587
        %2763 = vmatprep.subr.bf16.mxu0 %v2582
        %2764 = vmatpush1.bf16.msra.mxu0 %v2581
        %2765 = vmatprep.subr.bf16.mxu0 %v2576
        %2766 = vmatpush1.bf16.msra.mxu0 %v2575
        %2767 = vmatprep.subr.bf16.mxu0 %v2570
        %2768 = vmatpush1.bf16.msra.mxu0 %v2569
        %2769 = vmatprep.subr.bf16.mxu0 %v2564
        %2770 = vmatpush1.bf16.msra.mxu0 %v2563
        %2771 = vmatprep.subr.bf16.mxu0 %v2654
        %2772 = vmatpush2.bf16.msra.mxu0 %v2653
        %2773 = vmatprep.subr.bf16.mxu0 %v2648
        %2774 = vmatpush2.bf16.msra.mxu0 %v2647
        %2775 = vmatprep.subr.bf16.mxu0 %v2642
        %2776 = vmatpush2.bf16.msra.mxu0 %v2641
        %2777 = vmatprep.subr.bf16.mxu0 %v2636
        %2778 = vmatpush2.bf16.msra.mxu0 %v2635
        %2779 = vmatprep.subr.bf16.mxu0 %v2630
        %2780 = vmatpush2.bf16.msra.mxu0 %v2629
        %2781 = vmatprep.subr.bf16.mxu0 %v2624
        %2782 = vmatpush2.bf16.msra.mxu0 %v2623
        %2783 = vmatprep.subr.bf16.mxu0 %v2618
        %2784 = vmatpush2.bf16.msra.mxu0 %v2617
        %2785 = vmatprep.subr.bf16.mxu0 %v2612
        %2786 = vmatpush2.bf16.msra.mxu0 %v2611
        %2787 = vmatprep.mubr.bf16.mxu0 %v2075
        %2788 = vmatmul.mubr.bf16.gmra.mxu0 %v2074
        %v2789 = vpop.f32.mrf.mxu0
        %v2790 = vadd.f32 0.0, %v2789
        %v2791 = vpop.f32.mrf.mxu0
        %v2792 = vadd.f32 0.0, %v2791
        %v2793 = vpop.f32.mrf.mxu0
        %v2794 = vpop.f32.mrf.mxu0
        %2795 = vdwg.mxu0
        %2796 = vmatprep.subr.bf16.mxu0 %v2608
        %2797 = vmatpush1.bf16.msra.mxu0 %v2607
        %2798 = vmatprep.subr.bf16.mxu0 %v2602
        %2799 = vmatpush1.bf16.msra.mxu0 %v2601
        %2800 = vmatprep.subr.bf16.mxu0 %v2596
        %2801 = vmatpush1.bf16.msra.mxu0 %v2595
        %2802 = vmatprep.subr.bf16.mxu0 %v2590
        %2803 = vmatpush1.bf16.msra.mxu0 %v2589
        %2804 = vmatprep.subr.bf16.mxu0 %v2584
        %2805 = vmatpush1.bf16.msra.mxu0 %v2583
        %2806 = vmatprep.subr.bf16.mxu0 %v2578
        %2807 = vmatpush1.bf16.msra.mxu0 %v2577
        %2808 = vmatprep.subr.bf16.mxu0 %v2572
        %2809 = vmatpush1.bf16.msra.mxu0 %v2571
        %2810 = vmatprep.subr.bf16.mxu0 %v2566
        %2811 = vmatpush1.bf16.msra.mxu0 %v2565
        %2812 = vmatprep.subr.bf16.mxu0 %v2656
        %2813 = vmatpush2.bf16.msra.mxu0 %v2655
        %2814 = vmatprep.subr.bf16.mxu0 %v2650
        %2815 = vmatpush2.bf16.msra.mxu0 %v2649
        %2816 = vmatprep.subr.bf16.mxu0 %v2644
        %2817 = vmatpush2.bf16.msra.mxu0 %v2643
        %2818 = vmatprep.subr.bf16.mxu0 %v2638
        %2819 = vmatpush2.bf16.msra.mxu0 %v2637
        %2820 = vmatprep.subr.bf16.mxu0 %v2632
        %2821 = vmatpush2.bf16.msra.mxu0 %v2631
        %2822 = vmatprep.subr.bf16.mxu0 %v2626
        %2823 = vmatpush2.bf16.msra.mxu0 %v2625
        %2824 = vmatprep.subr.bf16.mxu0 %v2620
        %2825 = vmatpush2.bf16.msra.mxu0 %v2619
        %2826 = vmatprep.subr.bf16.mxu0 %v2614
        %2827 = vmatpush2.bf16.msra.mxu0 %v2613
        %2828 = vmatprep.mubr.bf16.mxu0 %v2075
        %2829 = vmatmul.mubr.bf16.gmra.mxu0 %v2074
        %v2830 = vpop.f32.mrf.mxu0
        %v2831 = vadd.f32 0.0, %v2830
        %v2832 = vpop.f32.mrf.mxu0
        %v2833 = vadd.f32 0.0, %v2832
        %v2834 = vpop.f32.mrf.mxu0
        %v2835 = vpop.f32.mrf.mxu0
        %2836 = vdwg.mxu0
        %2837 = vmatprep.subr.bf16.mxu0 %v2610
        %2838 = vmatpush1.bf16.msra.mxu0 %v2609
        %2839 = vmatprep.subr.bf16.mxu0 %v2604
        %2840 = vmatpush1.bf16.msra.mxu0 %v2603
        %2841 = vmatprep.subr.bf16.mxu0 %v2598
        %2842 = vmatpush1.bf16.msra.mxu0 %v2597
        %2843 = vmatprep.subr.bf16.mxu0 %v2592
        %2844 = vmatpush1.bf16.msra.mxu0 %v2591
        %2845 = vmatprep.subr.bf16.mxu0 %v2586
        %2846 = vmatpush1.bf16.msra.mxu0 %v2585
        %2847 = vmatprep.subr.bf16.mxu0 %v2580
        %2848 = vmatpush1.bf16.msra.mxu0 %v2579
        %2849 = vmatprep.subr.bf16.mxu0 %v2574
        %2850 = vmatpush1.bf16.msra.mxu0 %v2573
        %2851 = vmatprep.subr.bf16.mxu0 %v2568
        %2852 = vmatpush1.bf16.msra.mxu0 %v2567
        %2853 = vmatprep.subr.bf16.mxu0 %v2658
        %2854 = vmatpush2.bf16.msra.mxu0 %v2657
        %2855 = vmatprep.subr.bf16.mxu0 %v2652
        %2856 = vmatpush2.bf16.msra.mxu0 %v2651
        %2857 = vmatprep.subr.bf16.mxu0 %v2646
        %2858 = vmatpush2.bf16.msra.mxu0 %v2645
        %2859 = vmatprep.subr.bf16.mxu0 %v2640
        %2860 = vmatpush2.bf16.msra.mxu0 %v2639
        %2861 = vmatprep.subr.bf16.mxu0 %v2634
        %2862 = vmatpush2.bf16.msra.mxu0 %v2633
        %2863 = vmatprep.subr.bf16.mxu0 %v2628
        %2864 = vmatpush2.bf16.msra.mxu0 %v2627
        %2865 = vmatprep.subr.bf16.mxu0 %v2622
        %2866 = vmatpush2.bf16.msra.mxu0 %v2621
        %2867 = vmatprep.subr.bf16.mxu0 %v2616
        %2868 = vmatpush2.bf16.msra.mxu0 %v2615
        %2869 = vmatprep.mubr.bf16.mxu0 %v2075
        %2870 = vmatmul.mubr.bf16.gmra.mxu0 %v2074
        %v2871 = vpop.f32.mrf.mxu0
        %v2872 = vadd.f32 0.0, %v2871
        %v2873 = vpop.f32.mrf.mxu0
        %v2874 = vadd.f32 0.0, %v2873
        %v2875 = vpop.f32.mrf.mxu0
        %v2876 = vpop.f32.mrf.mxu0
        %2877 = vdwg.mxu0
        %v2910 = vunpack.c.l.b16 %v2147
        %v2911 = vunpack.c.h.b16 %v2147
        %v2912 = vunpack.c.l.b16 %v2151
        %v2913 = vunpack.c.h.b16 %v2151
        %v2914 = vunpack.c.l.b16 %v2155
        %v2915 = vunpack.c.h.b16 %v2155
        %v2916 = vunpack.c.l.b16 %v2159
        %v2917 = vunpack.c.h.b16 %v2159
        %v2918 = vunpack.c.l.b16 %v2163
        %v2919 = vunpack.c.h.b16 %v2163
        %v2920 = vunpack.c.l.b16 %v2167
        %v2921 = vunpack.c.h.b16 %v2167
        %v2922 = vunpack.c.l.b16 %v2171
        %v2923 = vunpack.c.h.b16 %v2171
        %v2924 = vunpack.c.l.b16 %v2175
        %v2925 = vunpack.c.h.b16 %v2175
        %v2926 = vunpack.c.l.b16 %v2179
        %v2927 = vunpack.c.h.b16 %v2179
        %v2928 = vunpack.c.l.b16 %v2183
        %v2929 = vunpack.c.h.b16 %v2183
        %v2930 = vunpack.c.l.b16 %v2187
        %v2931 = vunpack.c.h.b16 %v2187
        %v2932 = vunpack.c.l.b16 %v2191
        %v2933 = vunpack.c.h.b16 %v2191
        %v2934 = vunpack.c.l.b16 %v2195
        %v2935 = vunpack.c.h.b16 %v2195
        %v2936 = vunpack.c.l.b16 %v2199
        %v2937 = vunpack.c.h.b16 %v2199
        %v2938 = vunpack.c.l.b16 %v2203
        %v2939 = vunpack.c.h.b16 %v2203
        %v2940 = vunpack.c.l.b16 %v2207
        %v2941 = vunpack.c.h.b16 %v2207
        %v2942 = vunpack.c.l.b16 %v2211
        %v2943 = vunpack.c.h.b16 %v2211
        %v2944 = vunpack.c.l.b16 %v2215
        %v2945 = vunpack.c.h.b16 %v2215
        %v2946 = vunpack.c.l.b16 %v2219
        %v2947 = vunpack.c.h.b16 %v2219
        %v2948 = vunpack.c.l.b16 %v2223
        %v2949 = vunpack.c.h.b16 %v2223
        %v2950 = vunpack.c.l.b16 %v2227
        %v2951 = vunpack.c.h.b16 %v2227
        %v2952 = vunpack.c.l.b16 %v2231
        %v2953 = vunpack.c.h.b16 %v2231
        %v2954 = vunpack.c.l.b16 %v2235
        %v2955 = vunpack.c.h.b16 %v2235
        %v2956 = vunpack.c.l.b16 %v2239
        %v2957 = vunpack.c.h.b16 %v2239
        %v2958 = vunpack.c.l.b16 %v2243
        %v2959 = vunpack.c.h.b16 %v2243
        %v2960 = vunpack.c.l.b16 %v2247
        %v2961 = vunpack.c.h.b16 %v2247
        %v2962 = vunpack.c.l.b16 %v2251
        %v2963 = vunpack.c.h.b16 %v2251
        %v2964 = vunpack.c.l.b16 %v2255
        %v2965 = vunpack.c.h.b16 %v2255
        %v2966 = vunpack.c.l.b16 %v2259
        %v2967 = vunpack.c.h.b16 %v2259
        %v2968 = vunpack.c.l.b16 %v2263
        %v2969 = vunpack.c.h.b16 %v2263
        %v2970 = vunpack.c.l.b16 %v2267
        %v2971 = vunpack.c.h.b16 %v2267
        %v2972 = vunpack.c.l.b16 %v2271
        %v2973 = vunpack.c.h.b16 %v2271
        %v2974 = vpack.c.b16 %v2912, %v2910
        %v2975 = vpack.c.b16 %v2913, %v2911
        %v2976 = vpack.c.b16 %v2916, %v2914
        %v2977 = vpack.c.b16 %v2917, %v2915
        %v2978 = vpack.c.b16 %v2920, %v2918
        %v2979 = vpack.c.b16 %v2921, %v2919
        %v2980 = vpack.c.b16 %v2924, %v2922
        %v2981 = vpack.c.b16 %v2925, %v2923
        %v2982 = vpack.c.b16 %v2928, %v2926
        %v2983 = vpack.c.b16 %v2929, %v2927
        %v2984 = vpack.c.b16 %v2932, %v2930
        %v2985 = vpack.c.b16 %v2933, %v2931
        %v2986 = vpack.c.b16 %v2936, %v2934
        %v2987 = vpack.c.b16 %v2937, %v2935
        %v2988 = vpack.c.b16 %v2940, %v2938
        %v2989 = vpack.c.b16 %v2941, %v2939
        %v2990 = vpack.c.b16 %v2944, %v2942
        %v2991 = vpack.c.b16 %v2945, %v2943
        %v2992 = vpack.c.b16 %v2948, %v2946
        %v2993 = vpack.c.b16 %v2949, %v2947
        %v2994 = vpack.c.b16 %v2952, %v2950
        %v2995 = vpack.c.b16 %v2953, %v2951
        %v2996 = vpack.c.b16 %v2956, %v2954
        %v2997 = vpack.c.b16 %v2957, %v2955
        %v2998 = vpack.c.b16 %v2960, %v2958
        %v2999 = vpack.c.b16 %v2961, %v2959
        %v3000 = vpack.c.b16 %v2964, %v2962
        %v3001 = vpack.c.b16 %v2965, %v2963
        %v3002 = vpack.c.b16 %v2968, %v2966
        %v3003 = vpack.c.b16 %v2969, %v2967
        %v3004 = vpack.c.b16 %v2972, %v2970
        %v3005 = vpack.c.b16 %v2973, %v2971
        %3038 = vmatprep.subr.bf16.mxu0 %v2989
        %3039 = vmatpush1.bf16.msra.mxu0 %v2988
        %3040 = vmatprep.subr.bf16.mxu0 %v2987
        %3041 = vmatpush1.bf16.msra.mxu0 %v2986
        %3042 = vmatprep.subr.bf16.mxu0 %v2985
        %3043 = vmatpush1.bf16.msra.mxu0 %v2984
        %3044 = vmatprep.subr.bf16.mxu0 %v2983
        %3045 = vmatpush1.bf16.msra.mxu0 %v2982
        %3046 = vmatprep.subr.bf16.mxu0 %v2981
        %3047 = vmatpush1.bf16.msra.mxu0 %v2980
        %3048 = vmatprep.subr.bf16.mxu0 %v2979
        %3049 = vmatpush1.bf16.msra.mxu0 %v2978
        %3050 = vmatprep.subr.bf16.mxu0 %v2977
        %3051 = vmatpush1.bf16.msra.mxu0 %v2976
        %3052 = vmatprep.subr.bf16.mxu0 %v2975
        %3053 = vmatpush1.bf16.msra.mxu0 %v2974
        %3054 = vmatprep.subr.bf16.mxu0 %v3005
        %3055 = vmatpush2.bf16.msra.mxu0 %v3004
        %3056 = vmatprep.subr.bf16.mxu0 %v3003
        %3057 = vmatpush2.bf16.msra.mxu0 %v3002
        %3058 = vmatprep.subr.bf16.mxu0 %v3001
        %3059 = vmatpush2.bf16.msra.mxu0 %v3000
        %3060 = vmatprep.subr.bf16.mxu0 %v2999
        %3061 = vmatpush2.bf16.msra.mxu0 %v2998
        %3062 = vmatprep.subr.bf16.mxu0 %v2997
        %3063 = vmatpush2.bf16.msra.mxu0 %v2996
        %3064 = vmatprep.subr.bf16.mxu0 %v2995
        %3065 = vmatpush2.bf16.msra.mxu0 %v2994
        %3066 = vmatprep.subr.bf16.mxu0 %v2993
        %3067 = vmatpush2.bf16.msra.mxu0 %v2992
        %3068 = vmatprep.subr.bf16.mxu0 %v2991
        %3069 = vmatpush2.bf16.msra.mxu0 %v2990
        %3070 = vmatprep.mubr.bf16.mxu0 %v2085
        %3071 = vmatmul.mubr.bf16.gmra.mxu0 %v2084
        %v3072 = vpop.f32.mrf.mxu0
        %v3073 = vadd.f32 0.0, %v3072
        %v3074 = vpop.f32.mrf.mxu0
        %v3075 = vadd.f32 0.0, %v3074
        %v3076 = vpop.f32.mrf.mxu0
        %v3077 = vpop.f32.mrf.mxu0
        %3078 = vdwg.mxu0
        %3079 = vmatprep.subr.bf16.mxu0 %v2606
        %3080 = vmatpush1.bf16.msra.mxu0 %v2605
        %3081 = vmatprep.subr.bf16.mxu0 %v2600
        %3082 = vmatpush1.bf16.msra.mxu0 %v2599
        %3083 = vmatprep.subr.bf16.mxu0 %v2594
        %3084 = vmatpush1.bf16.msra.mxu0 %v2593
        %3085 = vmatprep.subr.bf16.mxu0 %v2588
        %3086 = vmatpush1.bf16.msra.mxu0 %v2587
        %3087 = vmatprep.subr.bf16.mxu0 %v2582
        %3088 = vmatpush1.bf16.msra.mxu0 %v2581
        %3089 = vmatprep.subr.bf16.mxu0 %v2576
        %3090 = vmatpush1.bf16.msra.mxu0 %v2575
        %3091 = vmatprep.subr.bf16.mxu0 %v2570
        %3092 = vmatpush1.bf16.msra.mxu0 %v2569
        %3093 = vmatprep.subr.bf16.mxu0 %v2564
        %3094 = vmatpush1.bf16.msra.mxu0 %v2563
        %3095 = vmatprep.subr.bf16.mxu0 %v2654
        %3096 = vmatpush2.bf16.msra.mxu0 %v2653
        %3097 = vmatprep.subr.bf16.mxu0 %v2648
        %3098 = vmatpush2.bf16.msra.mxu0 %v2647
        %3099 = vmatprep.subr.bf16.mxu0 %v2642
        %3100 = vmatpush2.bf16.msra.mxu0 %v2641
        %3101 = vmatprep.subr.bf16.mxu0 %v2636
        %3102 = vmatpush2.bf16.msra.mxu0 %v2635
        %3103 = vmatprep.subr.bf16.mxu0 %v2630
        %3104 = vmatpush2.bf16.msra.mxu0 %v2629
        %3105 = vmatprep.subr.bf16.mxu0 %v2624
        %3106 = vmatpush2.bf16.msra.mxu0 %v2623
        %3107 = vmatprep.subr.bf16.mxu0 %v2618
        %3108 = vmatpush2.bf16.msra.mxu0 %v2617
        %3109 = vmatprep.subr.bf16.mxu0 %v2612
        %3110 = vmatpush2.bf16.msra.mxu0 %v2611
        %3111 = vmatprep.mubr.bf16.mxu0 %v2085
        %3112 = vmatmul.mubr.bf16.gmra.mxu0 %v2084
        %v3113 = vpop.f32.mrf.mxu0
        %v3114 = vadd.f32 0.0, %v3113
        %v3115 = vpop.f32.mrf.mxu0
        %v3116 = vadd.f32 0.0, %v3115
        %v3117 = vpop.f32.mrf.mxu0
        %v3118 = vpop.f32.mrf.mxu0
        %3119 = vdwg.mxu0
        %3120 = vmatprep.subr.bf16.mxu0 %v2608
        %3121 = vmatpush1.bf16.msra.mxu0 %v2607
        %3122 = vmatprep.subr.bf16.mxu0 %v2602
        %3123 = vmatpush1.bf16.msra.mxu0 %v2601
        %3124 = vmatprep.subr.bf16.mxu0 %v2596
        %3125 = vmatpush1.bf16.msra.mxu0 %v2595
        %3126 = vmatprep.subr.bf16.mxu0 %v2590
        %3127 = vmatpush1.bf16.msra.mxu0 %v2589
        %3128 = vmatprep.subr.bf16.mxu0 %v2584
        %3129 = vmatpush1.bf16.msra.mxu0 %v2583
        %3130 = vmatprep.subr.bf16.mxu0 %v2578
        %3131 = vmatpush1.bf16.msra.mxu0 %v2577
        %3132 = vmatprep.subr.bf16.mxu0 %v2572
        %3133 = vmatpush1.bf16.msra.mxu0 %v2571
        %3134 = vmatprep.subr.bf16.mxu0 %v2566
        %3135 = vmatpush1.bf16.msra.mxu0 %v2565
        %3136 = vmatprep.subr.bf16.mxu0 %v2656
        %3137 = vmatpush2.bf16.msra.mxu0 %v2655
        %3138 = vmatprep.subr.bf16.mxu0 %v2650
        %3139 = vmatpush2.bf16.msra.mxu0 %v2649
        %3140 = vmatprep.subr.bf16.mxu0 %v2644
        %3141 = vmatpush2.bf16.msra.mxu0 %v2643
        %3142 = vmatprep.subr.bf16.mxu0 %v2638
        %3143 = vmatpush2.bf16.msra.mxu0 %v2637
        %3144 = vmatprep.subr.bf16.mxu0 %v2632
        %3145 = vmatpush2.bf16.msra.mxu0 %v2631
        %3146 = vmatprep.subr.bf16.mxu0 %v2626
        %3147 = vmatpush2.bf16.msra.mxu0 %v2625
        %3148 = vmatprep.subr.bf16.mxu0 %v2620
        %3149 = vmatpush2.bf16.msra.mxu0 %v2619
        %3150 = vmatprep.subr.bf16.mxu0 %v2614
        %3151 = vmatpush2.bf16.msra.mxu0 %v2613
        %3152 = vmatprep.mubr.bf16.mxu0 %v2085
        %3153 = vmatmul.mubr.bf16.gmra.mxu0 %v2084
        %v3154 = vpop.f32.mrf.mxu0
        %v3155 = vadd.f32 0.0, %v3154
        %v3156 = vpop.f32.mrf.mxu0
        %v3157 = vadd.f32 0.0, %v3156
        %v3158 = vpop.f32.mrf.mxu0
        %v3159 = vpop.f32.mrf.mxu0
        %3160 = vdwg.mxu0
        %3161 = vmatprep.subr.bf16.mxu0 %v2610
        %3162 = vmatpush1.bf16.msra.mxu0 %v2609
        %3163 = vmatprep.subr.bf16.mxu0 %v2604
        %3164 = vmatpush1.bf16.msra.mxu0 %v2603
        %3165 = vmatprep.subr.bf16.mxu0 %v2598
        %3166 = vmatpush1.bf16.msra.mxu0 %v2597
        %3167 = vmatprep.subr.bf16.mxu0 %v2592
        %3168 = vmatpush1.bf16.msra.mxu0 %v2591
        %3169 = vmatprep.subr.bf16.mxu0 %v2586
        %3170 = vmatpush1.bf16.msra.mxu0 %v2585
        %3171 = vmatprep.subr.bf16.mxu0 %v2580
        %3172 = vmatpush1.bf16.msra.mxu0 %v2579
        %3173 = vmatprep.subr.bf16.mxu0 %v2574
        %3174 = vmatpush1.bf16.msra.mxu0 %v2573
        %3175 = vmatprep.subr.bf16.mxu0 %v2568
        %3176 = vmatpush1.bf16.msra.mxu0 %v2567
        %3177 = vmatprep.subr.bf16.mxu0 %v2658
        %3178 = vmatpush2.bf16.msra.mxu0 %v2657
        %3179 = vmatprep.subr.bf16.mxu0 %v2652
        %3180 = vmatpush2.bf16.msra.mxu0 %v2651
        %3181 = vmatprep.subr.bf16.mxu0 %v2646
        %3182 = vmatpush2.bf16.msra.mxu0 %v2645
        %3183 = vmatprep.subr.bf16.mxu0 %v2640
        %3184 = vmatpush2.bf16.msra.mxu0 %v2639
        %3185 = vmatprep.subr.bf16.mxu0 %v2634
        %3186 = vmatpush2.bf16.msra.mxu0 %v2633
        %3187 = vmatprep.subr.bf16.mxu0 %v2628
        %3188 = vmatpush2.bf16.msra.mxu0 %v2627
        %3189 = vmatprep.subr.bf16.mxu0 %v2622
        %3190 = vmatpush2.bf16.msra.mxu0 %v2621
        %3191 = vmatprep.subr.bf16.mxu0 %v2616
        %3192 = vmatpush2.bf16.msra.mxu0 %v2615
        %3193 = vmatprep.mubr.bf16.mxu0 %v2085
        %3194 = vmatmul.mubr.bf16.gmra.mxu0 %v2084
        %v3195 = vpop.f32.mrf.mxu0
        %v3196 = vadd.f32 0.0, %v3195
        %v3197 = vpop.f32.mrf.mxu0
        %v3198 = vadd.f32 0.0, %v3197
        %v3199 = vpop.f32.mrf.mxu0
        %v3200 = vpop.f32.mrf.mxu0
        %3201 = vdwg.mxu0
        %3202 = vmatprep.subr.bf16.mxu0 %v2989
        %3203 = vmatpush1.bf16.msra.mxu0 %v2988
        %3204 = vmatprep.subr.bf16.mxu0 %v2987
        %3205 = vmatpush1.bf16.msra.mxu0 %v2986
        %3206 = vmatprep.subr.bf16.mxu0 %v2985
        %3207 = vmatpush1.bf16.msra.mxu0 %v2984
        %3208 = vmatprep.subr.bf16.mxu0 %v2983
        %3209 = vmatpush1.bf16.msra.mxu0 %v2982
        %3210 = vmatprep.subr.bf16.mxu0 %v2981
        %3211 = vmatpush1.bf16.msra.mxu0 %v2980
        %3212 = vmatprep.subr.bf16.mxu0 %v2979
        %3213 = vmatpush1.bf16.msra.mxu0 %v2978
        %3214 = vmatprep.subr.bf16.mxu0 %v2977
        %3215 = vmatpush1.bf16.msra.mxu0 %v2976
        %3216 = vmatprep.subr.bf16.mxu0 %v2975
        %3217 = vmatpush1.bf16.msra.mxu0 %v2974
        %3218 = vmatprep.subr.bf16.mxu0 %v3005
        %3219 = vmatpush2.bf16.msra.mxu0 %v3004
        %3220 = vmatprep.subr.bf16.mxu0 %v3003
        %3221 = vmatpush2.bf16.msra.mxu0 %v3002
        %3222 = vmatprep.subr.bf16.mxu0 %v3001
        %3223 = vmatpush2.bf16.msra.mxu0 %v3000
        %3224 = vmatprep.subr.bf16.mxu0 %v2999
        %3225 = vmatpush2.bf16.msra.mxu0 %v2998
        %3226 = vmatprep.subr.bf16.mxu0 %v2997
        %3227 = vmatpush2.bf16.msra.mxu0 %v2996
        %3228 = vmatprep.subr.bf16.mxu0 %v2995
        %3229 = vmatpush2.bf16.msra.mxu0 %v2994
        %3230 = vmatprep.subr.bf16.mxu0 %v2993
        %3231 = vmatpush2.bf16.msra.mxu0 %v2992
        %3232 = vmatprep.subr.bf16.mxu0 %v2991
        %3233 = vmatpush2.bf16.msra.mxu0 %v2990
        %3234 = vmatprep.mubr.bf16.mxu0 %v2095
        %3235 = vmatmul.mubr.bf16.gmra.mxu0 %v2094
        %v3236 = vpop.f32.mrf.mxu0
        %v3237 = vadd.f32 0.0, %v3236
        %v3238 = vpop.f32.mrf.mxu0
        %v3239 = vadd.f32 0.0, %v3238
        %v3240 = vpop.f32.mrf.mxu0
        %v3241 = vpop.f32.mrf.mxu0
        %3242 = vdwg.mxu0
        %3243 = vmatprep.subr.bf16.mxu0 %v2606
        %3244 = vmatpush1.bf16.msra.mxu0 %v2605
        %3245 = vmatprep.subr.bf16.mxu0 %v2600
        %3246 = vmatpush1.bf16.msra.mxu0 %v2599
        %3247 = vmatprep.subr.bf16.mxu0 %v2594
        %3248 = vmatpush1.bf16.msra.mxu0 %v2593
        %3249 = vmatprep.subr.bf16.mxu0 %v2588
        %3250 = vmatpush1.bf16.msra.mxu0 %v2587
        %3251 = vmatprep.subr.bf16.mxu0 %v2582
        %3252 = vmatpush1.bf16.msra.mxu0 %v2581
        %3253 = vmatprep.subr.bf16.mxu0 %v2576
        %3254 = vmatpush1.bf16.msra.mxu0 %v2575
        %3255 = vmatprep.subr.bf16.mxu0 %v2570
        %3256 = vmatpush1.bf16.msra.mxu0 %v2569
        %3257 = vmatprep.subr.bf16.mxu0 %v2564
        %3258 = vmatpush1.bf16.msra.mxu0 %v2563
        %3259 = vmatprep.subr.bf16.mxu0 %v2654
        %3260 = vmatpush2.bf16.msra.mxu0 %v2653
        %3261 = vmatprep.subr.bf16.mxu0 %v2648
        %3262 = vmatpush2.bf16.msra.mxu0 %v2647
        %3263 = vmatprep.subr.bf16.mxu0 %v2642
        %3264 = vmatpush2.bf16.msra.mxu0 %v2641
        %3265 = vmatprep.subr.bf16.mxu0 %v2636
        %3266 = vmatpush2.bf16.msra.mxu0 %v2635
        %3267 = vmatprep.subr.bf16.mxu0 %v2630
        %3268 = vmatpush2.bf16.msra.mxu0 %v2629
        %3269 = vmatprep.subr.bf16.mxu0 %v2624
        %3270 = vmatpush2.bf16.msra.mxu0 %v2623
        %3271 = vmatprep.subr.bf16.mxu0 %v2618
        %3272 = vmatpush2.bf16.msra.mxu0 %v2617
        %3273 = vmatprep.subr.bf16.mxu0 %v2612
        %3274 = vmatpush2.bf16.msra.mxu0 %v2611
        %3275 = vmatprep.mubr.bf16.mxu0 %v2095
        %3276 = vmatmul.mubr.bf16.gmra.mxu0 %v2094
        %v3277 = vpop.f32.mrf.mxu0
        %v3278 = vadd.f32 0.0, %v3277
        %v3279 = vpop.f32.mrf.mxu0
        %v3280 = vadd.f32 0.0, %v3279
        %v3281 = vpop.f32.mrf.mxu0
        %v3282 = vpop.f32.mrf.mxu0
        %3283 = vdwg.mxu0
        %3284 = vmatprep.subr.bf16.mxu0 %v2608
        %3285 = vmatpush1.bf16.msra.mxu0 %v2607
        %3286 = vmatprep.subr.bf16.mxu0 %v2602
        %3287 = vmatpush1.bf16.msra.mxu0 %v2601
        %3288 = vmatprep.subr.bf16.mxu0 %v2596
        %3289 = vmatpush1.bf16.msra.mxu0 %v2595
        %3290 = vmatprep.subr.bf16.mxu0 %v2590
        %3291 = vmatpush1.bf16.msra.mxu0 %v2589
        %3292 = vmatprep.subr.bf16.mxu0 %v2584
        %3293 = vmatpush1.bf16.msra.mxu0 %v2583
        %3294 = vmatprep.subr.bf16.mxu0 %v2578
        %3295 = vmatpush1.bf16.msra.mxu0 %v2577
        %3296 = vmatprep.subr.bf16.mxu0 %v2572
        %3297 = vmatpush1.bf16.msra.mxu0 %v2571
        %3298 = vmatprep.subr.bf16.mxu0 %v2566
        %3299 = vmatpush1.bf16.msra.mxu0 %v2565
        %3300 = vmatprep.subr.bf16.mxu0 %v2656
        %3301 = vmatpush2.bf16.msra.mxu0 %v2655
        %3302 = vmatprep.subr.bf16.mxu0 %v2650
        %3303 = vmatpush2.bf16.msra.mxu0 %v2649
        %3304 = vmatprep.subr.bf16.mxu0 %v2644
        %3305 = vmatpush2.bf16.msra.mxu0 %v2643
        %3306 = vmatprep.subr.bf16.mxu0 %v2638
        %3307 = vmatpush2.bf16.msra.mxu0 %v2637
        %3308 = vmatprep.subr.bf16.mxu0 %v2632
        %3309 = vmatpush2.bf16.msra.mxu0 %v2631
        %3310 = vmatprep.subr.bf16.mxu0 %v2626
        %3311 = vmatpush2.bf16.msra.mxu0 %v2625
        %3312 = vmatprep.subr.bf16.mxu0 %v2620
        %3313 = vmatpush2.bf16.msra.mxu0 %v2619
        %3314 = vmatprep.subr.bf16.mxu0 %v2614
        %3315 = vmatpush2.bf16.msra.mxu0 %v2613
        %3316 = vmatprep.mubr.bf16.mxu0 %v2095
        %3317 = vmatmul.mubr.bf16.gmra.mxu0 %v2094
        %v3318 = vpop.f32.mrf.mxu0
        %v3319 = vadd.f32 0.0, %v3318
        %v3320 = vpop.f32.mrf.mxu0
        %v3321 = vadd.f32 0.0, %v3320
        %v3322 = vpop.f32.mrf.mxu0
        %v3323 = vpop.f32.mrf.mxu0
        %3324 = vdwg.mxu0
        %3325 = vmatprep.subr.bf16.mxu0 %v2610
        %3326 = vmatpush1.bf16.msra.mxu0 %v2609
        %3327 = vmatprep.subr.bf16.mxu0 %v2604
        %3328 = vmatpush1.bf16.msra.mxu0 %v2603
        %3329 = vmatprep.subr.bf16.mxu0 %v2598
        %3330 = vmatpush1.bf16.msra.mxu0 %v2597
        %3331 = vmatprep.subr.bf16.mxu0 %v2592
        %3332 = vmatpush1.bf16.msra.mxu0 %v2591
        %3333 = vmatprep.subr.bf16.mxu0 %v2586
        %3334 = vmatpush1.bf16.msra.mxu0 %v2585
        %3335 = vmatprep.subr.bf16.mxu0 %v2580
        %3336 = vmatpush1.bf16.msra.mxu0 %v2579
        %3337 = vmatprep.subr.bf16.mxu0 %v2574
        %3338 = vmatpush1.bf16.msra.mxu0 %v2573
        %3339 = vmatprep.subr.bf16.mxu0 %v2568
        %3340 = vmatpush1.bf16.msra.mxu0 %v2567
        %3341 = vmatprep.subr.bf16.mxu0 %v2658
        %3342 = vmatpush2.bf16.msra.mxu0 %v2657
        %3343 = vmatprep.subr.bf16.mxu0 %v2652
        %3344 = vmatpush2.bf16.msra.mxu0 %v2651
        %3345 = vmatprep.subr.bf16.mxu0 %v2646
        %3346 = vmatpush2.bf16.msra.mxu0 %v2645
        %3347 = vmatprep.subr.bf16.mxu0 %v2640
        %3348 = vmatpush2.bf16.msra.mxu0 %v2639
        %3349 = vmatprep.subr.bf16.mxu0 %v2634
        %3350 = vmatpush2.bf16.msra.mxu0 %v2633
        %3351 = vmatprep.subr.bf16.mxu0 %v2628
        %3352 = vmatpush2.bf16.msra.mxu0 %v2627
        %3353 = vmatprep.subr.bf16.mxu0 %v2622
        %3354 = vmatpush2.bf16.msra.mxu0 %v2621
        %3355 = vmatprep.subr.bf16.mxu0 %v2616
        %3356 = vmatpush2.bf16.msra.mxu0 %v2615
        %3357 = vmatprep.mubr.bf16.mxu0 %v2095
        %3358 = vmatmul.mubr.bf16.gmra.mxu0 %v2094
        %v3359 = vpop.f32.mrf.mxu0
        %v3360 = vadd.f32 0.0, %v3359
        %v3361 = vpop.f32.mrf.mxu0
        %v3362 = vadd.f32 0.0, %v3361
        %v3363 = vpop.f32.mrf.mxu0
        %v3364 = vpop.f32.mrf.mxu0
        %3365 = vdwg.mxu0
        %3366 = vmatprep.subr.bf16.mxu0 %v2989
        %3367 = vmatpush1.bf16.msra.mxu0 %v2988
        %3368 = vmatprep.subr.bf16.mxu0 %v2987
        %3369 = vmatpush1.bf16.msra.mxu0 %v2986
        %3370 = vmatprep.subr.bf16.mxu0 %v2985
        %3371 = vmatpush1.bf16.msra.mxu0 %v2984
        %3372 = vmatprep.subr.bf16.mxu0 %v2983
        %3373 = vmatpush1.bf16.msra.mxu0 %v2982
        %3374 = vmatprep.subr.bf16.mxu0 %v2981
        %3375 = vmatpush1.bf16.msra.mxu0 %v2980
        %3376 = vmatprep.subr.bf16.mxu0 %v2979
        %3377 = vmatpush1.bf16.msra.mxu0 %v2978
        %3378 = vmatprep.subr.bf16.mxu0 %v2977
        %3379 = vmatpush1.bf16.msra.mxu0 %v2976
        %3380 = vmatprep.subr.bf16.mxu0 %v2975
        %3381 = vmatpush1.bf16.msra.mxu0 %v2974
        %3382 = vmatprep.subr.bf16.mxu0 %v3005
        %3383 = vmatpush2.bf16.msra.mxu0 %v3004
        %3384 = vmatprep.subr.bf16.mxu0 %v3003
        %3385 = vmatpush2.bf16.msra.mxu0 %v3002
        %3386 = vmatprep.subr.bf16.mxu0 %v3001
        %3387 = vmatpush2.bf16.msra.mxu0 %v3000
        %3388 = vmatprep.subr.bf16.mxu0 %v2999
        %3389 = vmatpush2.bf16.msra.mxu0 %v2998
        %3390 = vmatprep.subr.bf16.mxu0 %v2997
        %3391 = vmatpush2.bf16.msra.mxu0 %v2996
        %3392 = vmatprep.subr.bf16.mxu0 %v2995
        %3393 = vmatpush2.bf16.msra.mxu0 %v2994
        %3394 = vmatprep.subr.bf16.mxu0 %v2993
        %3395 = vmatpush2.bf16.msra.mxu0 %v2992
        %3396 = vmatprep.subr.bf16.mxu0 %v2991
        %3397 = vmatpush2.bf16.msra.mxu0 %v2990
        %3398 = vmatprep.mubr.bf16.mxu0 %v2105
        %3399 = vmatmul.mubr.bf16.gmra.mxu0 %v2104
        %v3400 = vpop.f32.mrf.mxu0
        %v3401 = vadd.f32 0.0, %v3400
        %v3402 = vpop.f32.mrf.mxu0
        %v3403 = vadd.f32 0.0, %v3402
        %v3404 = vpop.f32.mrf.mxu0
        %v3405 = vpop.f32.mrf.mxu0
        %3406 = vdwg.mxu0
        %3407 = vmatprep.subr.bf16.mxu0 %v2606
        %3408 = vmatpush1.bf16.msra.mxu0 %v2605
        %3409 = vmatprep.subr.bf16.mxu0 %v2600
        %3410 = vmatpush1.bf16.msra.mxu0 %v2599
        %3411 = vmatprep.subr.bf16.mxu0 %v2594
        %3412 = vmatpush1.bf16.msra.mxu0 %v2593
        %3413 = vmatprep.subr.bf16.mxu0 %v2588
        %3414 = vmatpush1.bf16.msra.mxu0 %v2587
        %3415 = vmatprep.subr.bf16.mxu0 %v2582
        %3416 = vmatpush1.bf16.msra.mxu0 %v2581
        %3417 = vmatprep.subr.bf16.mxu0 %v2576
        %3418 = vmatpush1.bf16.msra.mxu0 %v2575
        %3419 = vmatprep.subr.bf16.mxu0 %v2570
        %3420 = vmatpush1.bf16.msra.mxu0 %v2569
        %3421 = vmatprep.subr.bf16.mxu0 %v2564
        %3422 = vmatpush1.bf16.msra.mxu0 %v2563
        %3423 = vmatprep.subr.bf16.mxu0 %v2654
        %3424 = vmatpush2.bf16.msra.mxu0 %v2653
        %3425 = vmatprep.subr.bf16.mxu0 %v2648
        %3426 = vmatpush2.bf16.msra.mxu0 %v2647
        %3427 = vmatprep.subr.bf16.mxu0 %v2642
        %3428 = vmatpush2.bf16.msra.mxu0 %v2641
        %3429 = vmatprep.subr.bf16.mxu0 %v2636
        %3430 = vmatpush2.bf16.msra.mxu0 %v2635
        %3431 = vmatprep.subr.bf16.mxu0 %v2630
        %3432 = vmatpush2.bf16.msra.mxu0 %v2629
        %3433 = vmatprep.subr.bf16.mxu0 %v2624
        %3434 = vmatpush2.bf16.msra.mxu0 %v2623
        %3435 = vmatprep.subr.bf16.mxu0 %v2618
        %3436 = vmatpush2.bf16.msra.mxu0 %v2617
        %3437 = vmatprep.subr.bf16.mxu0 %v2612
        %3438 = vmatpush2.bf16.msra.mxu0 %v2611
        %3439 = vmatprep.mubr.bf16.mxu0 %v2105
        %3440 = vmatmul.mubr.bf16.gmra.mxu0 %v2104
        %v3441 = vpop.f32.mrf.mxu0
        %v3442 = vadd.f32 0.0, %v3441
        %v3443 = vpop.f32.mrf.mxu0
        %v3444 = vadd.f32 0.0, %v3443
        %v3445 = vpop.f32.mrf.mxu0
        %v3446 = vpop.f32.mrf.mxu0
        %3447 = vdwg.mxu0
        %3448 = vmatprep.subr.bf16.mxu0 %v2608
        %3449 = vmatpush1.bf16.msra.mxu0 %v2607
        %3450 = vmatprep.subr.bf16.mxu0 %v2602
        %3451 = vmatpush1.bf16.msra.mxu0 %v2601
        %3452 = vmatprep.subr.bf16.mxu0 %v2596
        %3453 = vmatpush1.bf16.msra.mxu0 %v2595
        %3454 = vmatprep.subr.bf16.mxu0 %v2590
        %3455 = vmatpush1.bf16.msra.mxu0 %v2589
        %3456 = vmatprep.subr.bf16.mxu0 %v2584
        %3457 = vmatpush1.bf16.msra.mxu0 %v2583
        %3458 = vmatprep.subr.bf16.mxu0 %v2578
        %3459 = vmatpush1.bf16.msra.mxu0 %v2577
        %3460 = vmatprep.subr.bf16.mxu0 %v2572
        %3461 = vmatpush1.bf16.msra.mxu0 %v2571
        %3462 = vmatprep.subr.bf16.mxu0 %v2566
        %3463 = vmatpush1.bf16.msra.mxu0 %v2565
        %3464 = vmatprep.subr.bf16.mxu0 %v2656
        %3465 = vmatpush2.bf16.msra.mxu0 %v2655
        %3466 = vmatprep.subr.bf16.mxu0 %v2650
        %3467 = vmatpush2.bf16.msra.mxu0 %v2649
        %3468 = vmatprep.subr.bf16.mxu0 %v2644
        %3469 = vmatpush2.bf16.msra.mxu0 %v2643
        %3470 = vmatprep.subr.bf16.mxu0 %v2638
        %3471 = vmatpush2.bf16.msra.mxu0 %v2637
        %3472 = vmatprep.subr.bf16.mxu0 %v2632
        %3473 = vmatpush2.bf16.msra.mxu0 %v2631
        %3474 = vmatprep.subr.bf16.mxu0 %v2626
        %3475 = vmatpush2.bf16.msra.mxu0 %v2625
        %3476 = vmatprep.subr.bf16.mxu0 %v2620
        %3477 = vmatpush2.bf16.msra.mxu0 %v2619
        %3478 = vmatprep.subr.bf16.mxu0 %v2614
        %3479 = vmatpush2.bf16.msra.mxu0 %v2613
        %3480 = vmatprep.mubr.bf16.mxu0 %v2105
        %3481 = vmatmul.mubr.bf16.gmra.mxu0 %v2104
        %v3482 = vpop.f32.mrf.mxu0
        %v3483 = vadd.f32 0.0, %v3482
        %v3484 = vpop.f32.mrf.mxu0
        %v3485 = vadd.f32 0.0, %v3484
        %v3486 = vpop.f32.mrf.mxu0
        %v3487 = vpop.f32.mrf.mxu0
        %3488 = vdwg.mxu0
        %3489 = vmatprep.subr.bf16.mxu0 %v2610
        %3490 = vmatpush1.bf16.msra.mxu0 %v2609
        %3491 = vmatprep.subr.bf16.mxu0 %v2604
        %3492 = vmatpush1.bf16.msra.mxu0 %v2603
        %3493 = vmatprep.subr.bf16.mxu0 %v2598
        %3494 = vmatpush1.bf16.msra.mxu0 %v2597
        %3495 = vmatprep.subr.bf16.mxu0 %v2592
        %3496 = vmatpush1.bf16.msra.mxu0 %v2591
        %3497 = vmatprep.subr.bf16.mxu0 %v2586
        %3498 = vmatpush1.bf16.msra.mxu0 %v2585
        %3499 = vmatprep.subr.bf16.mxu0 %v2580
        %3500 = vmatpush1.bf16.msra.mxu0 %v2579
        %3501 = vmatprep.subr.bf16.mxu0 %v2574
        %3502 = vmatpush1.bf16.msra.mxu0 %v2573
        %3503 = vmatprep.subr.bf16.mxu0 %v2568
        %3504 = vmatpush1.bf16.msra.mxu0 %v2567
        %3505 = vmatprep.subr.bf16.mxu0 %v2658
        %3506 = vmatpush2.bf16.msra.mxu0 %v2657
        %3507 = vmatprep.subr.bf16.mxu0 %v2652
        %3508 = vmatpush2.bf16.msra.mxu0 %v2651
        %3509 = vmatprep.subr.bf16.mxu0 %v2646
        %3510 = vmatpush2.bf16.msra.mxu0 %v2645
        %3511 = vmatprep.subr.bf16.mxu0 %v2640
        %3512 = vmatpush2.bf16.msra.mxu0 %v2639
        %3513 = vmatprep.subr.bf16.mxu0 %v2634
        %3514 = vmatpush2.bf16.msra.mxu0 %v2633
        %3515 = vmatprep.subr.bf16.mxu0 %v2628
        %3516 = vmatpush2.bf16.msra.mxu0 %v2627
        %3517 = vmatprep.subr.bf16.mxu0 %v2622
        %3518 = vmatpush2.bf16.msra.mxu0 %v2621
        %3519 = vmatprep.subr.bf16.mxu0 %v2616
        %3520 = vmatpush2.bf16.msra.mxu0 %v2615
        %3521 = vmatprep.mubr.bf16.mxu0 %v2105
        %3522 = vmatmul.mubr.bf16.gmra.mxu0 %v2104
        %v3523 = vpop.f32.mrf.mxu0
        %v3524 = vadd.f32 0.0, %v3523
        %v3525 = vpop.f32.mrf.mxu0
        %v3526 = vadd.f32 0.0, %v3525
        %v3527 = vpop.f32.mrf.mxu0
        %v3528 = vpop.f32.mrf.mxu0
        %3529 = vdwg.mxu0
        %3530 = vmatprep.subr.bf16.mxu0 %v2989
        %3531 = vmatpush1.bf16.msra.mxu0 %v2988
        %3532 = vmatprep.subr.bf16.mxu0 %v2987
        %3533 = vmatpush1.bf16.msra.mxu0 %v2986
        %3534 = vmatprep.subr.bf16.mxu0 %v2985
        %3535 = vmatpush1.bf16.msra.mxu0 %v2984
        %3536 = vmatprep.subr.bf16.mxu0 %v2983
        %3537 = vmatpush1.bf16.msra.mxu0 %v2982
        %3538 = vmatprep.subr.bf16.mxu0 %v2981
        %3539 = vmatpush1.bf16.msra.mxu0 %v2980
        %3540 = vmatprep.subr.bf16.mxu0 %v2979
        %3541 = vmatpush1.bf16.msra.mxu0 %v2978
        %3542 = vmatprep.subr.bf16.mxu0 %v2977
        %3543 = vmatpush1.bf16.msra.mxu0 %v2976
        %3544 = vmatprep.subr.bf16.mxu0 %v2975
        %3545 = vmatpush1.bf16.msra.mxu0 %v2974
        %3546 = vmatprep.subr.bf16.mxu0 %v3005
        %3547 = vmatpush2.bf16.msra.mxu0 %v3004
        %3548 = vmatprep.subr.bf16.mxu0 %v3003
        %3549 = vmatpush2.bf16.msra.mxu0 %v3002
        %3550 = vmatprep.subr.bf16.mxu0 %v3001
        %3551 = vmatpush2.bf16.msra.mxu0 %v3000
        %3552 = vmatprep.subr.bf16.mxu0 %v2999
        %3553 = vmatpush2.bf16.msra.mxu0 %v2998
        %3554 = vmatprep.subr.bf16.mxu0 %v2997
        %3555 = vmatpush2.bf16.msra.mxu0 %v2996
        %3556 = vmatprep.subr.bf16.mxu0 %v2995
        %3557 = vmatpush2.bf16.msra.mxu0 %v2994
        %3558 = vmatprep.subr.bf16.mxu0 %v2993
        %3559 = vmatpush2.bf16.msra.mxu0 %v2992
        %3560 = vmatprep.subr.bf16.mxu0 %v2991
        %3561 = vmatpush2.bf16.msra.mxu0 %v2990
        %3562 = vmatprep.mubr.bf16.mxu0 %v2115
        %3563 = vmatmul.mubr.bf16.gmra.mxu0 %v2114
        %v3564 = vpop.f32.mrf.mxu0
        %v3565 = vadd.f32 0.0, %v3564
        %v3566 = vpop.f32.mrf.mxu0
        %v3567 = vadd.f32 0.0, %v3566
        %v3568 = vpop.f32.mrf.mxu0
        %v3569 = vpop.f32.mrf.mxu0
        %3570 = vdwg.mxu0
        %3571 = vmatprep.subr.bf16.mxu0 %v2606
        %3572 = vmatpush1.bf16.msra.mxu0 %v2605
        %3573 = vmatprep.subr.bf16.mxu0 %v2600
        %3574 = vmatpush1.bf16.msra.mxu0 %v2599
        %3575 = vmatprep.subr.bf16.mxu0 %v2594
        %3576 = vmatpush1.bf16.msra.mxu0 %v2593
        %3577 = vmatprep.subr.bf16.mxu0 %v2588
        %3578 = vmatpush1.bf16.msra.mxu0 %v2587
        %3579 = vmatprep.subr.bf16.mxu0 %v2582
        %3580 = vmatpush1.bf16.msra.mxu0 %v2581
        %3581 = vmatprep.subr.bf16.mxu0 %v2576
        %3582 = vmatpush1.bf16.msra.mxu0 %v2575
        %3583 = vmatprep.subr.bf16.mxu0 %v2570
        %3584 = vmatpush1.bf16.msra.mxu0 %v2569
        %3585 = vmatprep.subr.bf16.mxu0 %v2564
        %3586 = vmatpush1.bf16.msra.mxu0 %v2563
        %3587 = vmatprep.subr.bf16.mxu0 %v2654
        %3588 = vmatpush2.bf16.msra.mxu0 %v2653
        %3589 = vmatprep.subr.bf16.mxu0 %v2648
        %3590 = vmatpush2.bf16.msra.mxu0 %v2647
        %3591 = vmatprep.subr.bf16.mxu0 %v2642
        %3592 = vmatpush2.bf16.msra.mxu0 %v2641
        %3593 = vmatprep.subr.bf16.mxu0 %v2636
        %3594 = vmatpush2.bf16.msra.mxu0 %v2635
        %3595 = vmatprep.subr.bf16.mxu0 %v2630
        %3596 = vmatpush2.bf16.msra.mxu0 %v2629
        %3597 = vmatprep.subr.bf16.mxu0 %v2624
        %3598 = vmatpush2.bf16.msra.mxu0 %v2623
        %3599 = vmatprep.subr.bf16.mxu0 %v2618
        %3600 = vmatpush2.bf16.msra.mxu0 %v2617
        %3601 = vmatprep.subr.bf16.mxu0 %v2612
        %3602 = vmatpush2.bf16.msra.mxu0 %v2611
        %3603 = vmatprep.mubr.bf16.mxu0 %v2115
        %3604 = vmatmul.mubr.bf16.gmra.mxu0 %v2114
        %v3605 = vpop.f32.mrf.mxu0
        %v3606 = vadd.f32 0.0, %v3605
        %v3607 = vpop.f32.mrf.mxu0
        %v3608 = vadd.f32 0.0, %v3607
        %v3609 = vpop.f32.mrf.mxu0
        %v3610 = vpop.f32.mrf.mxu0
        %3611 = vdwg.mxu0
        %3612 = vmatprep.subr.bf16.mxu0 %v2608
        %3613 = vmatpush1.bf16.msra.mxu0 %v2607
        %3614 = vmatprep.subr.bf16.mxu0 %v2602
        %3615 = vmatpush1.bf16.msra.mxu0 %v2601
        %3616 = vmatprep.subr.bf16.mxu0 %v2596
        %3617 = vmatpush1.bf16.msra.mxu0 %v2595
        %3618 = vmatprep.subr.bf16.mxu0 %v2590
        %3619 = vmatpush1.bf16.msra.mxu0 %v2589
        %3620 = vmatprep.subr.bf16.mxu0 %v2584
        %3621 = vmatpush1.bf16.msra.mxu0 %v2583
        %3622 = vmatprep.subr.bf16.mxu0 %v2578
        %3623 = vmatpush1.bf16.msra.mxu0 %v2577
        %3624 = vmatprep.subr.bf16.mxu0 %v2572
        %3625 = vmatpush1.bf16.msra.mxu0 %v2571
        %3626 = vmatprep.subr.bf16.mxu0 %v2566
        %3627 = vmatpush1.bf16.msra.mxu0 %v2565
        %3628 = vmatprep.subr.bf16.mxu0 %v2656
        %3629 = vmatpush2.bf16.msra.mxu0 %v2655
        %3630 = vmatprep.subr.bf16.mxu0 %v2650
        %3631 = vmatpush2.bf16.msra.mxu0 %v2649
        %3632 = vmatprep.subr.bf16.mxu0 %v2644
        %3633 = vmatpush2.bf16.msra.mxu0 %v2643
        %3634 = vmatprep.subr.bf16.mxu0 %v2638
        %3635 = vmatpush2.bf16.msra.mxu0 %v2637
        %3636 = vmatprep.subr.bf16.mxu0 %v2632
        %3637 = vmatpush2.bf16.msra.mxu0 %v2631
        %3638 = vmatprep.subr.bf16.mxu0 %v2626
        %3639 = vmatpush2.bf16.msra.mxu0 %v2625
        %3640 = vmatprep.subr.bf16.mxu0 %v2620
        %3641 = vmatpush2.bf16.msra.mxu0 %v2619
        %3642 = vmatprep.subr.bf16.mxu0 %v2614
        %3643 = vmatpush2.bf16.msra.mxu0 %v2613
        %3644 = vmatprep.mubr.bf16.mxu0 %v2115
        %3645 = vmatmul.mubr.bf16.gmra.mxu0 %v2114
        %v3646 = vpop.f32.mrf.mxu0
        %v3647 = vadd.f32 0.0, %v3646
        %v3648 = vpop.f32.mrf.mxu0
        %v3649 = vadd.f32 0.0, %v3648
        %v3650 = vpop.f32.mrf.mxu0
        %v3651 = vpop.f32.mrf.mxu0
        %3652 = vdwg.mxu0
        %3653 = vmatprep.subr.bf16.mxu0 %v2610
        %3654 = vmatpush1.bf16.msra.mxu0 %v2609
        %3655 = vmatprep.subr.bf16.mxu0 %v2604
        %3656 = vmatpush1.bf16.msra.mxu0 %v2603
        %3657 = vmatprep.subr.bf16.mxu0 %v2598
        %3658 = vmatpush1.bf16.msra.mxu0 %v2597
        %3659 = vmatprep.subr.bf16.mxu0 %v2592
        %3660 = vmatpush1.bf16.msra.mxu0 %v2591
        %3661 = vmatprep.subr.bf16.mxu0 %v2586
        %3662 = vmatpush1.bf16.msra.mxu0 %v2585
        %3663 = vmatprep.subr.bf16.mxu0 %v2580
        %3664 = vmatpush1.bf16.msra.mxu0 %v2579
        %3665 = vmatprep.subr.bf16.mxu0 %v2574
        %3666 = vmatpush1.bf16.msra.mxu0 %v2573
        %3667 = vmatprep.subr.bf16.mxu0 %v2568
        %3668 = vmatpush1.bf16.msra.mxu0 %v2567
        %3669 = vmatprep.subr.bf16.mxu0 %v2658
        %3670 = vmatpush2.bf16.msra.mxu0 %v2657
        %3671 = vmatprep.subr.bf16.mxu0 %v2652
        %3672 = vmatpush2.bf16.msra.mxu0 %v2651
        %3673 = vmatprep.subr.bf16.mxu0 %v2646
        %3674 = vmatpush2.bf16.msra.mxu0 %v2645
        %3675 = vmatprep.subr.bf16.mxu0 %v2640
        %3676 = vmatpush2.bf16.msra.mxu0 %v2639
        %3677 = vmatprep.subr.bf16.mxu0 %v2634
        %3678 = vmatpush2.bf16.msra.mxu0 %v2633
        %3679 = vmatprep.subr.bf16.mxu0 %v2628
        %3680 = vmatpush2.bf16.msra.mxu0 %v2627
        %3681 = vmatprep.subr.bf16.mxu0 %v2622
        %3682 = vmatpush2.bf16.msra.mxu0 %v2621
        %3683 = vmatprep.subr.bf16.mxu0 %v2616
        %3684 = vmatpush2.bf16.msra.mxu0 %v2615
        %3685 = vmatprep.mubr.bf16.mxu0 %v2115
        %3686 = vmatmul.mubr.bf16.gmra.mxu0 %v2114
        %v3687 = vpop.f32.mrf.mxu0
        %v3688 = vadd.f32 0.0, %v3687
        %v3689 = vpop.f32.mrf.mxu0
        %v3690 = vadd.f32 0.0, %v3689
        %v3691 = vpop.f32.mrf.mxu0
        %v3692 = vpop.f32.mrf.mxu0
        %3693 = vdwg.mxu0
        %3694 = vmatprep.subr.bf16.mxu0 %v2989
        %3695 = vmatpush1.bf16.msra.mxu0 %v2988
        %3696 = vmatprep.subr.bf16.mxu0 %v2987
        %3697 = vmatpush1.bf16.msra.mxu0 %v2986
        %3698 = vmatprep.subr.bf16.mxu0 %v2985
        %3699 = vmatpush1.bf16.msra.mxu0 %v2984
        %3700 = vmatprep.subr.bf16.mxu0 %v2983
        %3701 = vmatpush1.bf16.msra.mxu0 %v2982
        %3702 = vmatprep.subr.bf16.mxu0 %v2981
        %3703 = vmatpush1.bf16.msra.mxu0 %v2980
        %3704 = vmatprep.subr.bf16.mxu0 %v2979
        %3705 = vmatpush1.bf16.msra.mxu0 %v2978
        %3706 = vmatprep.subr.bf16.mxu0 %v2977
        %3707 = vmatpush1.bf16.msra.mxu0 %v2976
        %3708 = vmatprep.subr.bf16.mxu0 %v2975
        %3709 = vmatpush1.bf16.msra.mxu0 %v2974
        %3710 = vmatprep.subr.bf16.mxu0 %v3005
        %3711 = vmatpush2.bf16.msra.mxu0 %v3004
        %3712 = vmatprep.subr.bf16.mxu0 %v3003
        %3713 = vmatpush2.bf16.msra.mxu0 %v3002
        %3714 = vmatprep.subr.bf16.mxu0 %v3001
        %3715 = vmatpush2.bf16.msra.mxu0 %v3000
        %3716 = vmatprep.subr.bf16.mxu0 %v2999
        %3717 = vmatpush2.bf16.msra.mxu0 %v2998
        %3718 = vmatprep.subr.bf16.mxu0 %v2997
        %3719 = vmatpush2.bf16.msra.mxu0 %v2996
        %3720 = vmatprep.subr.bf16.mxu0 %v2995
        %3721 = vmatpush2.bf16.msra.mxu0 %v2994
        %3722 = vmatprep.subr.bf16.mxu0 %v2993
        %3723 = vmatpush2.bf16.msra.mxu0 %v2992
        %3724 = vmatprep.subr.bf16.mxu0 %v2991
        %3725 = vmatpush2.bf16.msra.mxu0 %v2990
        %3726 = vmatprep.mubr.bf16.mxu0 %v2125
        %3727 = vmatmul.mubr.bf16.gmra.mxu0 %v2124
        %v3728 = vpop.f32.mrf.mxu0
        %v3729 = vadd.f32 0.0, %v3728
        %v3730 = vpop.f32.mrf.mxu0
        %v3731 = vadd.f32 0.0, %v3730
        %v3732 = vpop.f32.mrf.mxu0
        %v3733 = vpop.f32.mrf.mxu0
        %3734 = vdwg.mxu0
        %3735 = vmatprep.subr.bf16.mxu0 %v2606
        %3736 = vmatpush1.bf16.msra.mxu0 %v2605
        %3737 = vmatprep.subr.bf16.mxu0 %v2600
        %3738 = vmatpush1.bf16.msra.mxu0 %v2599
        %3739 = vmatprep.subr.bf16.mxu0 %v2594
        %3740 = vmatpush1.bf16.msra.mxu0 %v2593
        %3741 = vmatprep.subr.bf16.mxu0 %v2588
        %3742 = vmatpush1.bf16.msra.mxu0 %v2587
        %3743 = vmatprep.subr.bf16.mxu0 %v2582
        %3744 = vmatpush1.bf16.msra.mxu0 %v2581
        %3745 = vmatprep.subr.bf16.mxu0 %v2576
        %3746 = vmatpush1.bf16.msra.mxu0 %v2575
        %3747 = vmatprep.subr.bf16.mxu0 %v2570
        %3748 = vmatpush1.bf16.msra.mxu0 %v2569
        %3749 = vmatprep.subr.bf16.mxu0 %v2564
        %3750 = vmatpush1.bf16.msra.mxu0 %v2563
        %3751 = vmatprep.subr.bf16.mxu0 %v2654
        %3752 = vmatpush2.bf16.msra.mxu0 %v2653
        %3753 = vmatprep.subr.bf16.mxu0 %v2648
        %3754 = vmatpush2.bf16.msra.mxu0 %v2647
        %3755 = vmatprep.subr.bf16.mxu0 %v2642
        %3756 = vmatpush2.bf16.msra.mxu0 %v2641
        %3757 = vmatprep.subr.bf16.mxu0 %v2636
        %3758 = vmatpush2.bf16.msra.mxu0 %v2635
        %3759 = vmatprep.subr.bf16.mxu0 %v2630
        %3760 = vmatpush2.bf16.msra.mxu0 %v2629
        %3761 = vmatprep.subr.bf16.mxu0 %v2624
        %3762 = vmatpush2.bf16.msra.mxu0 %v2623
        %3763 = vmatprep.subr.bf16.mxu0 %v2618
        %3764 = vmatpush2.bf16.msra.mxu0 %v2617
        %3765 = vmatprep.subr.bf16.mxu0 %v2612
        %3766 = vmatpush2.bf16.msra.mxu0 %v2611
        %3767 = vmatprep.mubr.bf16.mxu0 %v2125
        %3768 = vmatmul.mubr.bf16.gmra.mxu0 %v2124
        %v3769 = vpop.f32.mrf.mxu0
        %v3770 = vadd.f32 0.0, %v3769
        %v3771 = vpop.f32.mrf.mxu0
        %v3772 = vadd.f32 0.0, %v3771
        %v3773 = vpop.f32.mrf.mxu0
        %v3774 = vpop.f32.mrf.mxu0
        %3775 = vdwg.mxu0
        %3776 = vmatprep.subr.bf16.mxu0 %v2608
        %3777 = vmatpush1.bf16.msra.mxu0 %v2607
        %3778 = vmatprep.subr.bf16.mxu0 %v2602
        %3779 = vmatpush1.bf16.msra.mxu0 %v2601
        %3780 = vmatprep.subr.bf16.mxu0 %v2596
        %3781 = vmatpush1.bf16.msra.mxu0 %v2595
        %3782 = vmatprep.subr.bf16.mxu0 %v2590
        %3783 = vmatpush1.bf16.msra.mxu0 %v2589
        %3784 = vmatprep.subr.bf16.mxu0 %v2584
        %3785 = vmatpush1.bf16.msra.mxu0 %v2583
        %3786 = vmatprep.subr.bf16.mxu0 %v2578
        %3787 = vmatpush1.bf16.msra.mxu0 %v2577
        %3788 = vmatprep.subr.bf16.mxu0 %v2572
        %3789 = vmatpush1.bf16.msra.mxu0 %v2571
        %3790 = vmatprep.subr.bf16.mxu0 %v2566
        %3791 = vmatpush1.bf16.msra.mxu0 %v2565
        %3792 = vmatprep.subr.bf16.mxu0 %v2656
        %3793 = vmatpush2.bf16.msra.mxu0 %v2655
        %3794 = vmatprep.subr.bf16.mxu0 %v2650
        %3795 = vmatpush2.bf16.msra.mxu0 %v2649
        %3796 = vmatprep.subr.bf16.mxu0 %v2644
        %3797 = vmatpush2.bf16.msra.mxu0 %v2643
        %3798 = vmatprep.subr.bf16.mxu0 %v2638
        %3799 = vmatpush2.bf16.msra.mxu0 %v2637
        %3800 = vmatprep.subr.bf16.mxu0 %v2632
        %3801 = vmatpush2.bf16.msra.mxu0 %v2631
        %3802 = vmatprep.subr.bf16.mxu0 %v2626
        %3803 = vmatpush2.bf16.msra.mxu0 %v2625
        %3804 = vmatprep.subr.bf16.mxu0 %v2620
        %3805 = vmatpush2.bf16.msra.mxu0 %v2619
        %3806 = vmatprep.subr.bf16.mxu0 %v2614
        %3807 = vmatpush2.bf16.msra.mxu0 %v2613
        %3808 = vmatprep.mubr.bf16.mxu0 %v2125
        %3809 = vmatmul.mubr.bf16.gmra.mxu0 %v2124
        %v3810 = vpop.f32.mrf.mxu0
        %v3811 = vadd.f32 0.0, %v3810
        %v3812 = vpop.f32.mrf.mxu0
        %v3813 = vadd.f32 0.0, %v3812
        %v3814 = vpop.f32.mrf.mxu0
        %v3815 = vpop.f32.mrf.mxu0
        %3816 = vdwg.mxu0
        %3817 = vmatprep.subr.bf16.mxu0 %v2610
        %3818 = vmatpush1.bf16.msra.mxu0 %v2609
        %3819 = vmatprep.subr.bf16.mxu0 %v2604
        %3820 = vmatpush1.bf16.msra.mxu0 %v2603
        %3821 = vmatprep.subr.bf16.mxu0 %v2598
        %3822 = vmatpush1.bf16.msra.mxu0 %v2597
        %3823 = vmatprep.subr.bf16.mxu0 %v2592
        %3824 = vmatpush1.bf16.msra.mxu0 %v2591
        %3825 = vmatprep.subr.bf16.mxu0 %v2586
        %3826 = vmatpush1.bf16.msra.mxu0 %v2585
        %3827 = vmatprep.subr.bf16.mxu0 %v2580
        %3828 = vmatpush1.bf16.msra.mxu0 %v2579
        %3829 = vmatprep.subr.bf16.mxu0 %v2574
        %3830 = vmatpush1.bf16.msra.mxu0 %v2573
        %3831 = vmatprep.subr.bf16.mxu0 %v2568
        %3832 = vmatpush1.bf16.msra.mxu0 %v2567
        %3833 = vmatprep.subr.bf16.mxu0 %v2658
        %3834 = vmatpush2.bf16.msra.mxu0 %v2657
        %3835 = vmatprep.subr.bf16.mxu0 %v2652
        %3836 = vmatpush2.bf16.msra.mxu0 %v2651
        %3837 = vmatprep.subr.bf16.mxu0 %v2646
        %3838 = vmatpush2.bf16.msra.mxu0 %v2645
        %3839 = vmatprep.subr.bf16.mxu0 %v2640
        %3840 = vmatpush2.bf16.msra.mxu0 %v2639
        %3841 = vmatprep.subr.bf16.mxu0 %v2634
        %3842 = vmatpush2.bf16.msra.mxu0 %v2633
        %3843 = vmatprep.subr.bf16.mxu0 %v2628
        %3844 = vmatpush2.bf16.msra.mxu0 %v2627
        %3845 = vmatprep.subr.bf16.mxu0 %v2622
        %3846 = vmatpush2.bf16.msra.mxu0 %v2621
        %3847 = vmatprep.subr.bf16.mxu0 %v2616
        %3848 = vmatpush2.bf16.msra.mxu0 %v2615
        %3849 = vmatprep.mubr.bf16.mxu0 %v2125
        %3850 = vmatmul.mubr.bf16.gmra.mxu0 %v2124
        %v3851 = vpop.f32.mrf.mxu0
        %v3852 = vadd.f32 0.0, %v3851
        %v3853 = vpop.f32.mrf.mxu0
        %v3854 = vadd.f32 0.0, %v3853
        %v3855 = vpop.f32.mrf.mxu0
        %v3856 = vpop.f32.mrf.mxu0
        %3857 = vdwg.mxu0
        %3858 = vmatprep.subr.bf16.mxu0 %v2989
        %3859 = vmatpush1.bf16.msra.mxu0 %v2988
        %3860 = vmatprep.subr.bf16.mxu0 %v2987
        %3861 = vmatpush1.bf16.msra.mxu0 %v2986
        %3862 = vmatprep.subr.bf16.mxu0 %v2985
        %3863 = vmatpush1.bf16.msra.mxu0 %v2984
        %3864 = vmatprep.subr.bf16.mxu0 %v2983
        %3865 = vmatpush1.bf16.msra.mxu0 %v2982
        %3866 = vmatprep.subr.bf16.mxu0 %v2981
        %3867 = vmatpush1.bf16.msra.mxu0 %v2980
        %3868 = vmatprep.subr.bf16.mxu0 %v2979
        %3869 = vmatpush1.bf16.msra.mxu0 %v2978
        %3870 = vmatprep.subr.bf16.mxu0 %v2977
        %3871 = vmatpush1.bf16.msra.mxu0 %v2976
        %3872 = vmatprep.subr.bf16.mxu0 %v2975
        %3873 = vmatpush1.bf16.msra.mxu0 %v2974
        %3874 = vmatprep.subr.bf16.mxu0 %v3005
        %3875 = vmatpush2.bf16.msra.mxu0 %v3004
        %3876 = vmatprep.subr.bf16.mxu0 %v3003
        %3877 = vmatpush2.bf16.msra.mxu0 %v3002
        %3878 = vmatprep.subr.bf16.mxu0 %v3001
        %3879 = vmatpush2.bf16.msra.mxu0 %v3000
        %3880 = vmatprep.subr.bf16.mxu0 %v2999
        %3881 = vmatpush2.bf16.msra.mxu0 %v2998
        %3882 = vmatprep.subr.bf16.mxu0 %v2997
        %3883 = vmatpush2.bf16.msra.mxu0 %v2996
        %3884 = vmatprep.subr.bf16.mxu0 %v2995
        %3885 = vmatpush2.bf16.msra.mxu0 %v2994
        %3886 = vmatprep.subr.bf16.mxu0 %v2993
        %3887 = vmatpush2.bf16.msra.mxu0 %v2992
        %3888 = vmatprep.subr.bf16.mxu0 %v2991
        %3889 = vmatpush2.bf16.msra.mxu0 %v2990
        %3890 = vmatprep.mubr.bf16.mxu0 %v2135
        %3891 = vmatmul.mubr.bf16.gmra.mxu0 %v2134
        %v3892 = vpop.f32.mrf.mxu0
        %v3893 = vadd.f32 0.0, %v3892
        %v3894 = vpop.f32.mrf.mxu0
        %v3895 = vadd.f32 0.0, %v3894
        %v3896 = vpop.f32.mrf.mxu0
        %v3897 = vpop.f32.mrf.mxu0
        %3898 = vdwg.mxu0
        %3899 = vmatprep.subr.bf16.mxu0 %v2606
        %3900 = vmatpush1.bf16.msra.mxu0 %v2605
        %3901 = vmatprep.subr.bf16.mxu0 %v2600
        %3902 = vmatpush1.bf16.msra.mxu0 %v2599
        %3903 = vmatprep.subr.bf16.mxu0 %v2594
        %3904 = vmatpush1.bf16.msra.mxu0 %v2593
        %3905 = vmatprep.subr.bf16.mxu0 %v2588
        %3906 = vmatpush1.bf16.msra.mxu0 %v2587
        %3907 = vmatprep.subr.bf16.mxu0 %v2582
        %3908 = vmatpush1.bf16.msra.mxu0 %v2581
        %3909 = vmatprep.subr.bf16.mxu0 %v2576
        %3910 = vmatpush1.bf16.msra.mxu0 %v2575
        %3911 = vmatprep.subr.bf16.mxu0 %v2570
        %3912 = vmatpush1.bf16.msra.mxu0 %v2569
        %3913 = vmatprep.subr.bf16.mxu0 %v2564
        %3914 = vmatpush1.bf16.msra.mxu0 %v2563
        %3915 = vmatprep.subr.bf16.mxu0 %v2654
        %3916 = vmatpush2.bf16.msra.mxu0 %v2653
        %3917 = vmatprep.subr.bf16.mxu0 %v2648
        %3918 = vmatpush2.bf16.msra.mxu0 %v2647
        %3919 = vmatprep.subr.bf16.mxu0 %v2642
        %3920 = vmatpush2.bf16.msra.mxu0 %v2641
        %3921 = vmatprep.subr.bf16.mxu0 %v2636
        %3922 = vmatpush2.bf16.msra.mxu0 %v2635
        %3923 = vmatprep.subr.bf16.mxu0 %v2630
        %3924 = vmatpush2.bf16.msra.mxu0 %v2629
        %3925 = vmatprep.subr.bf16.mxu0 %v2624
        %3926 = vmatpush2.bf16.msra.mxu0 %v2623
        %3927 = vmatprep.subr.bf16.mxu0 %v2618
        %3928 = vmatpush2.bf16.msra.mxu0 %v2617
        %3929 = vmatprep.subr.bf16.mxu0 %v2612
        %3930 = vmatpush2.bf16.msra.mxu0 %v2611
        %3931 = vmatprep.mubr.bf16.mxu0 %v2135
        %3932 = vmatmul.mubr.bf16.gmra.mxu0 %v2134
        %v3933 = vpop.f32.mrf.mxu0
        %v3934 = vadd.f32 0.0, %v3933
        %v3935 = vpop.f32.mrf.mxu0
        %v3936 = vadd.f32 0.0, %v3935
        %v3937 = vpop.f32.mrf.mxu0
        %v3938 = vpop.f32.mrf.mxu0
        %3939 = vdwg.mxu0
        %3940 = vmatprep.subr.bf16.mxu0 %v2608
        %3941 = vmatpush1.bf16.msra.mxu0 %v2607
        %3942 = vmatprep.subr.bf16.mxu0 %v2602
        %3943 = vmatpush1.bf16.msra.mxu0 %v2601
        %3944 = vmatprep.subr.bf16.mxu0 %v2596
        %3945 = vmatpush1.bf16.msra.mxu0 %v2595
        %3946 = vmatprep.subr.bf16.mxu0 %v2590
        %3947 = vmatpush1.bf16.msra.mxu0 %v2589
        %3948 = vmatprep.subr.bf16.mxu0 %v2584
        %3949 = vmatpush1.bf16.msra.mxu0 %v2583
        %3950 = vmatprep.subr.bf16.mxu0 %v2578
        %3951 = vmatpush1.bf16.msra.mxu0 %v2577
        %3952 = vmatprep.subr.bf16.mxu0 %v2572
        %3953 = vmatpush1.bf16.msra.mxu0 %v2571
        %3954 = vmatprep.subr.bf16.mxu0 %v2566
        %3955 = vmatpush1.bf16.msra.mxu0 %v2565
        %3956 = vmatprep.subr.bf16.mxu0 %v2656
        %3957 = vmatpush2.bf16.msra.mxu0 %v2655
        %3958 = vmatprep.subr.bf16.mxu0 %v2650
        %3959 = vmatpush2.bf16.msra.mxu0 %v2649
        %3960 = vmatprep.subr.bf16.mxu0 %v2644
        %3961 = vmatpush2.bf16.msra.mxu0 %v2643
        %3962 = vmatprep.subr.bf16.mxu0 %v2638
        %3963 = vmatpush2.bf16.msra.mxu0 %v2637
        %3964 = vmatprep.subr.bf16.mxu0 %v2632
        %3965 = vmatpush2.bf16.msra.mxu0 %v2631
        %3966 = vmatprep.subr.bf16.mxu0 %v2626
        %3967 = vmatpush2.bf16.msra.mxu0 %v2625
        %3968 = vmatprep.subr.bf16.mxu0 %v2620
        %3969 = vmatpush2.bf16.msra.mxu0 %v2619
        %3970 = vmatprep.subr.bf16.mxu0 %v2614
        %3971 = vmatpush2.bf16.msra.mxu0 %v2613
        %3972 = vmatprep.mubr.bf16.mxu0 %v2135
        %3973 = vmatmul.mubr.bf16.gmra.mxu0 %v2134
        %v3974 = vpop.f32.mrf.mxu0
        %v3975 = vadd.f32 0.0, %v3974
        %v3976 = vpop.f32.mrf.mxu0
        %v3977 = vadd.f32 0.0, %v3976
        %v3978 = vpop.f32.mrf.mxu0
        %v3979 = vpop.f32.mrf.mxu0
        %3980 = vdwg.mxu0
        %3981 = vmatprep.subr.bf16.mxu0 %v2610
        %3982 = vmatpush1.bf16.msra.mxu0 %v2609
        %3983 = vmatprep.subr.bf16.mxu0 %v2604
        %3984 = vmatpush1.bf16.msra.mxu0 %v2603
        %3985 = vmatprep.subr.bf16.mxu0 %v2598
        %3986 = vmatpush1.bf16.msra.mxu0 %v2597
        %3987 = vmatprep.subr.bf16.mxu0 %v2592
        %3988 = vmatpush1.bf16.msra.mxu0 %v2591
        %3989 = vmatprep.subr.bf16.mxu0 %v2586
        %3990 = vmatpush1.bf16.msra.mxu0 %v2585
        %3991 = vmatprep.subr.bf16.mxu0 %v2580
        %3992 = vmatpush1.bf16.msra.mxu0 %v2579
        %3993 = vmatprep.subr.bf16.mxu0 %v2574
        %3994 = vmatpush1.bf16.msra.mxu0 %v2573
        %3995 = vmatprep.subr.bf16.mxu0 %v2568
        %3996 = vmatpush1.bf16.msra.mxu0 %v2567
        %3997 = vmatprep.subr.bf16.mxu0 %v2658
        %3998 = vmatpush2.bf16.msra.mxu0 %v2657
        %3999 = vmatprep.subr.bf16.mxu0 %v2652
        %4000 = vmatpush2.bf16.msra.mxu0 %v2651
        %4001 = vmatprep.subr.bf16.mxu0 %v2646
        %4002 = vmatpush2.bf16.msra.mxu0 %v2645
        %4003 = vmatprep.subr.bf16.mxu0 %v2640
        %4004 = vmatpush2.bf16.msra.mxu0 %v2639
        %4005 = vmatprep.subr.bf16.mxu0 %v2634
        %4006 = vmatpush2.bf16.msra.mxu0 %v2633
        %4007 = vmatprep.subr.bf16.mxu0 %v2628
        %4008 = vmatpush2.bf16.msra.mxu0 %v2627
        %4009 = vmatprep.subr.bf16.mxu0 %v2622
        %4010 = vmatpush2.bf16.msra.mxu0 %v2621
        %4011 = vmatprep.subr.bf16.mxu0 %v2616
        %4012 = vmatpush2.bf16.msra.mxu0 %v2615
        %4013 = vmatprep.mubr.bf16.mxu0 %v2135
        %4014 = vmatmul.mubr.bf16.gmra.mxu0 %v2134
        %v4015 = vpop.f32.mrf.mxu0
        %v4016 = vadd.f32 0.0, %v4015
        %v4017 = vpop.f32.mrf.mxu0
        %v4018 = vadd.f32 0.0, %v4017
        %v4019 = vpop.f32.mrf.mxu0
        %v4020 = vpop.f32.mrf.mxu0
        %4021 = vdwg.mxu0
        %4022 = vmatprep.subr.bf16.mxu0 %v2989
        %4023 = vmatpush1.bf16.msra.mxu0 %v2988
        %4024 = vmatprep.subr.bf16.mxu0 %v2987
        %4025 = vmatpush1.bf16.msra.mxu0 %v2986
        %4026 = vmatprep.subr.bf16.mxu0 %v2985
        %4027 = vmatpush1.bf16.msra.mxu0 %v2984
        %4028 = vmatprep.subr.bf16.mxu0 %v2983
        %4029 = vmatpush1.bf16.msra.mxu0 %v2982
        %4030 = vmatprep.subr.bf16.mxu0 %v2981
        %4031 = vmatpush1.bf16.msra.mxu0 %v2980
        %4032 = vmatprep.subr.bf16.mxu0 %v2979
        %4033 = vmatpush1.bf16.msra.mxu0 %v2978
        %4034 = vmatprep.subr.bf16.mxu0 %v2977
        %4035 = vmatpush1.bf16.msra.mxu0 %v2976
        %4036 = vmatprep.subr.bf16.mxu0 %v2975
        %4037 = vmatpush1.bf16.msra.mxu0 %v2974
        %4038 = vmatprep.subr.bf16.mxu0 %v3005
        %4039 = vmatpush2.bf16.msra.mxu0 %v3004
        %4040 = vmatprep.subr.bf16.mxu0 %v3003
        %4041 = vmatpush2.bf16.msra.mxu0 %v3002
        %4042 = vmatprep.subr.bf16.mxu0 %v3001
        %4043 = vmatpush2.bf16.msra.mxu0 %v3000
        %4044 = vmatprep.subr.bf16.mxu0 %v2999
        %4045 = vmatpush2.bf16.msra.mxu0 %v2998
        %4046 = vmatprep.subr.bf16.mxu0 %v2997
        %4047 = vmatpush2.bf16.msra.mxu0 %v2996
        %4048 = vmatprep.subr.bf16.mxu0 %v2995
        %4049 = vmatpush2.bf16.msra.mxu0 %v2994
        %4050 = vmatprep.subr.bf16.mxu0 %v2993
        %4051 = vmatpush2.bf16.msra.mxu0 %v2992
        %4052 = vmatprep.subr.bf16.mxu0 %v2991
        %4053 = vmatpush2.bf16.msra.mxu0 %v2990
        %4054 = vmatprep.mubr.bf16.mxu0 %v2145
        %4055 = vmatmul.mubr.bf16.gmra.mxu0 %v2144
        %v4056 = vpop.f32.mrf.mxu0
        %v4057 = vadd.f32 0.0, %v4056
        %v4058 = vpop.f32.mrf.mxu0
        %v4059 = vadd.f32 0.0, %v4058
        %v4060 = vpop.f32.mrf.mxu0
        %v4061 = vpop.f32.mrf.mxu0
        %4062 = vdwg.mxu0
        %4063 = vmatprep.subr.bf16.mxu0 %v2606
        %4064 = vmatpush1.bf16.msra.mxu0 %v2605
        %4065 = vmatprep.subr.bf16.mxu0 %v2600
        %4066 = vmatpush1.bf16.msra.mxu0 %v2599
        %4067 = vmatprep.subr.bf16.mxu0 %v2594
        %4068 = vmatpush1.bf16.msra.mxu0 %v2593
        %4069 = vmatprep.subr.bf16.mxu0 %v2588
        %4070 = vmatpush1.bf16.msra.mxu0 %v2587
        %4071 = vmatprep.subr.bf16.mxu0 %v2582
        %4072 = vmatpush1.bf16.msra.mxu0 %v2581
        %4073 = vmatprep.subr.bf16.mxu0 %v2576
        %4074 = vmatpush1.bf16.msra.mxu0 %v2575
        %4075 = vmatprep.subr.bf16.mxu0 %v2570
        %4076 = vmatpush1.bf16.msra.mxu0 %v2569
        %4077 = vmatprep.subr.bf16.mxu0 %v2564
        %4078 = vmatpush1.bf16.msra.mxu0 %v2563
        %4079 = vmatprep.subr.bf16.mxu0 %v2654
        %4080 = vmatpush2.bf16.msra.mxu0 %v2653
        %4081 = vmatprep.subr.bf16.mxu0 %v2648
        %4082 = vmatpush2.bf16.msra.mxu0 %v2647
        %4083 = vmatprep.subr.bf16.mxu0 %v2642
        %4084 = vmatpush2.bf16.msra.mxu0 %v2641
        %4085 = vmatprep.subr.bf16.mxu0 %v2636
        %4086 = vmatpush2.bf16.msra.mxu0 %v2635
        %4087 = vmatprep.subr.bf16.mxu0 %v2630
        %4088 = vmatpush2.bf16.msra.mxu0 %v2629
        %4089 = vmatprep.subr.bf16.mxu0 %v2624
        %4090 = vmatpush2.bf16.msra.mxu0 %v2623
        %4091 = vmatprep.subr.bf16.mxu0 %v2618
        %4092 = vmatpush2.bf16.msra.mxu0 %v2617
        %4093 = vmatprep.subr.bf16.mxu0 %v2612
        %4094 = vmatpush2.bf16.msra.mxu0 %v2611
        %4095 = vmatprep.mubr.bf16.mxu0 %v2145
        %4096 = vmatmul.mubr.bf16.gmra.mxu0 %v2144
        %v4097 = vpop.f32.mrf.mxu0
        %v4098 = vadd.f32 0.0, %v4097
        %v4099 = vpop.f32.mrf.mxu0
        %v4100 = vadd.f32 0.0, %v4099
        %v4101 = vpop.f32.mrf.mxu0
        %v4102 = vpop.f32.mrf.mxu0
        %4103 = vdwg.mxu0
        %4104 = vmatprep.subr.bf16.mxu0 %v2608
        %4105 = vmatpush1.bf16.msra.mxu0 %v2607
        %4106 = vmatprep.subr.bf16.mxu0 %v2602
        %4107 = vmatpush1.bf16.msra.mxu0 %v2601
        %4108 = vmatprep.subr.bf16.mxu0 %v2596
        %4109 = vmatpush1.bf16.msra.mxu0 %v2595
        %4110 = vmatprep.subr.bf16.mxu0 %v2590
        %4111 = vmatpush1.bf16.msra.mxu0 %v2589
        %4112 = vmatprep.subr.bf16.mxu0 %v2584
        %4113 = vmatpush1.bf16.msra.mxu0 %v2583
        %4114 = vmatprep.subr.bf16.mxu0 %v2578
        %4115 = vmatpush1.bf16.msra.mxu0 %v2577
        %4116 = vmatprep.subr.bf16.mxu0 %v2572
        %4117 = vmatpush1.bf16.msra.mxu0 %v2571
        %4118 = vmatprep.subr.bf16.mxu0 %v2566
        %4119 = vmatpush1.bf16.msra.mxu0 %v2565
        %4120 = vmatprep.subr.bf16.mxu0 %v2656
        %4121 = vmatpush2.bf16.msra.mxu0 %v2655
        %4122 = vmatprep.subr.bf16.mxu0 %v2650
        %4123 = vmatpush2.bf16.msra.mxu0 %v2649
        %4124 = vmatprep.subr.bf16.mxu0 %v2644
        %4125 = vmatpush2.bf16.msra.mxu0 %v2643
        %4126 = vmatprep.subr.bf16.mxu0 %v2638
        %4127 = vmatpush2.bf16.msra.mxu0 %v2637
        %4128 = vmatprep.subr.bf16.mxu0 %v2632
        %4129 = vmatpush2.bf16.msra.mxu0 %v2631
        %4130 = vmatprep.subr.bf16.mxu0 %v2626
        %4131 = vmatpush2.bf16.msra.mxu0 %v2625
        %4132 = vmatprep.subr.bf16.mxu0 %v2620
        %4133 = vmatpush2.bf16.msra.mxu0 %v2619
        %4134 = vmatprep.subr.bf16.mxu0 %v2614
        %4135 = vmatpush2.bf16.msra.mxu0 %v2613
        %4136 = vmatprep.mubr.bf16.mxu0 %v2145
        %4137 = vmatmul.mubr.bf16.gmra.mxu0 %v2144
        %v4138 = vpop.f32.mrf.mxu0
        %v4139 = vadd.f32 0.0, %v4138
        %v4140 = vpop.f32.mrf.mxu0
        %v4141 = vadd.f32 0.0, %v4140
        %v4142 = vpop.f32.mrf.mxu0
        %v4143 = vpop.f32.mrf.mxu0
        %4144 = vdwg.mxu0
        %v4145 = vadd.f32 %v2831, %v3073
        %v4146 = vadd.f32 %v2833, %v3075
        %v4147 = vadd.f32 %v3114, %v2872
        %v4148 = vadd.f32 %v3116, %v2874
        %v4149 = vadd.f32 %v3155, %v3237
        %v4150 = vadd.f32 %v3157, %v3239
        %v4151 = vadd.f32 %v3278, %v3196
        %v4152 = vadd.f32 %v3280, %v3198
        %v4153 = vadd.f32 %v3319, %v3401
        %v4154 = vadd.f32 %v3321, %v3403
        %v4155 = vadd.f32 %v3442, %v3360
        %v4156 = vadd.f32 %v3444, %v3362
        %v4157 = vadd.f32 %v3483, %v3565
        %v4158 = vadd.f32 %v3485, %v3567
        %v4159 = vadd.f32 %v3606, %v3524
        %v4160 = vadd.f32 %v3608, %v3526
        %v4161 = vadd.f32 %v3647, %v3729
        %v4162 = vadd.f32 %v3649, %v3731
        %v4163 = vadd.f32 %v3770, %v3688
        %v4164 = vadd.f32 %v3772, %v3690
        %v4165 = vadd.f32 %v3811, %v3893
        %v4166 = vadd.f32 %v3813, %v3895
        %v4167 = vadd.f32 %v3934, %v3852
        %v4168 = vadd.f32 %v3936, %v3854
        %v4169 = vadd.f32 %v3975, %v4057
        %v4170 = vadd.f32 %v3977, %v4059
        %v4171 = vadd.f32 %v4098, %v4016
        %v4172 = vadd.f32 %v4100, %v4018
        %v4174 = vlaneseq
        %v4175 = vshrl.u32 %v4174, 7
        %v4176 = vsub.s32 0, %v4175
        %v4177 = vrot.slane %v2146, %v4176
        %v4178 = vlaneseq
        %v4179 = vshrl.u32 %v4178, 7
        %v4180 = vsub.s32 1, %v4179
        %v4181 = vrot.slane %v2146, %v4180
        %v4184 = vadd.f32 %v2790, %v4177
        %v4185 = vadd.f32 %v2792, %v4181
        %vm4186 = vcmp.ge.f32.partialorder %v4184, 0.0
        %vm4187 = vcmp.ge.f32.partialorder %v4185, 0.0
        %v4188 = vmul.f32 %v4184, 0.2
        %v4189 = vmul.f32 %v4185, 0.2
        %v4190 = vsel %vm4186, %v4184, %v4188
        %v4191 = vsel %vm4187, %v4185, %v4189
        %v4192 = vpack.c.bf16 %v4190, %v4190
        %v4193 = vpack.c.bf16 %v4191, %v4191
        %v4194 = vadd.f32 %v4145, %v4177
        %v4195 = vadd.f32 %v4146, %v4181
        %vm4196 = vcmp.ge.f32.partialorder %v4194, 0.0
        %vm4197 = vcmp.ge.f32.partialorder %v4195, 0.0
        %v4198 = vmul.f32 %v4194, 0.2
        %v4199 = vmul.f32 %v4195, 0.2
        %v4200 = vsel %vm4196, %v4194, %v4198
        %v4201 = vsel %vm4197, %v4195, %v4199
        %v4202 = vpack.c.bf16 %v4200, %v4200
        %v4203 = vpack.c.bf16 %v4201, %v4201
        %v4204 = vadd.f32 %v4147, %v4177
        %v4205 = vadd.f32 %v4148, %v4181
        %vm4206 = vcmp.ge.f32.partialorder %v4204, 0.0
        %vm4207 = vcmp.ge.f32.partialorder %v4205, 0.0
        %v4208 = vmul.f32 %v4204, 0.2
        %v4209 = vmul.f32 %v4205, 0.2
        %v4210 = vsel %vm4206, %v4204, %v4208
        %v4211 = vsel %vm4207, %v4205, %v4209
        %v4212 = vpack.c.bf16 %v4210, %v4210
        %v4213 = vpack.c.bf16 %v4211, %v4211
        %v4214 = vadd.f32 %v4149, %v4177
        %v4215 = vadd.f32 %v4150, %v4181
        %vm4216 = vcmp.ge.f32.partialorder %v4214, 0.0
        %vm4217 = vcmp.ge.f32.partialorder %v4215, 0.0
        %v4218 = vmul.f32 %v4214, 0.2
        %v4219 = vmul.f32 %v4215, 0.2
        %v4220 = vsel %vm4216, %v4214, %v4218
        %v4221 = vsel %vm4217, %v4215, %v4219
        %v4222 = vpack.c.bf16 %v4220, %v4220
        %v4223 = vpack.c.bf16 %v4221, %v4221
        %v4224 = vadd.f32 %v4151, %v4177
        %v4225 = vadd.f32 %v4152, %v4181
        %vm4226 = vcmp.ge.f32.partialorder %v4224, 0.0
        %vm4227 = vcmp.ge.f32.partialorder %v4225, 0.0
        %v4228 = vmul.f32 %v4224, 0.2
        %v4229 = vmul.f32 %v4225, 0.2
        %v4230 = vsel %vm4226, %v4224, %v4228
        %v4231 = vsel %vm4227, %v4225, %v4229
        %v4232 = vpack.c.bf16 %v4230, %v4230
        %v4233 = vpack.c.bf16 %v4231, %v4231
        %v4234 = vadd.f32 %v4153, %v4177
        %v4235 = vadd.f32 %v4154, %v4181
        %vm4236 = vcmp.ge.f32.partialorder %v4234, 0.0
        %vm4237 = vcmp.ge.f32.partialorder %v4235, 0.0
        %v4238 = vmul.f32 %v4234, 0.2
        %v4239 = vmul.f32 %v4235, 0.2
        %v4240 = vsel %vm4236, %v4234, %v4238
        %v4241 = vsel %vm4237, %v4235, %v4239
        %v4242 = vpack.c.bf16 %v4240, %v4240
        %v4243 = vpack.c.bf16 %v4241, %v4241
        %v4244 = vadd.f32 %v4155, %v4177
        %v4245 = vadd.f32 %v4156, %v4181
        %vm4246 = vcmp.ge.f32.partialorder %v4244, 0.0
        %vm4247 = vcmp.ge.f32.partialorder %v4245, 0.0
        %v4248 = vmul.f32 %v4244, 0.2
        %v4249 = vmul.f32 %v4245, 0.2
        %v4250 = vsel %vm4246, %v4244, %v4248
        %v4251 = vsel %vm4247, %v4245, %v4249
        %v4252 = vpack.c.bf16 %v4250, %v4250
        %v4253 = vpack.c.bf16 %v4251, %v4251
        %v4254 = vadd.f32 %v4157, %v4177
        %v4255 = vadd.f32 %v4158, %v4181
        %vm4256 = vcmp.ge.f32.partialorder %v4254, 0.0
        %vm4257 = vcmp.ge.f32.partialorder %v4255, 0.0
        %v4258 = vmul.f32 %v4254, 0.2
        %v4259 = vmul.f32 %v4255, 0.2
        %v4260 = vsel %vm4256, %v4254, %v4258
        %v4261 = vsel %vm4257, %v4255, %v4259
        %v4262 = vpack.c.bf16 %v4260, %v4260
        %v4263 = vpack.c.bf16 %v4261, %v4261
        %v4264 = vadd.f32 %v4159, %v4177
        %v4265 = vadd.f32 %v4160, %v4181
        %vm4266 = vcmp.ge.f32.partialorder %v4264, 0.0
        %vm4267 = vcmp.ge.f32.partialorder %v4265, 0.0
        %v4268 = vmul.f32 %v4264, 0.2
        %v4269 = vmul.f32 %v4265, 0.2
        %v4270 = vsel %vm4266, %v4264, %v4268
        %v4271 = vsel %vm4267, %v4265, %v4269
        %v4272 = vpack.c.bf16 %v4270, %v4270
        %v4273 = vpack.c.bf16 %v4271, %v4271
        %v4274 = vadd.f32 %v4161, %v4177
        %v4275 = vadd.f32 %v4162, %v4181
        %vm4276 = vcmp.ge.f32.partialorder %v4274, 0.0
        %vm4277 = vcmp.ge.f32.partialorder %v4275, 0.0
        %v4278 = vmul.f32 %v4274, 0.2
        %v4279 = vmul.f32 %v4275, 0.2
        %v4280 = vsel %vm4276, %v4274, %v4278
        %v4281 = vsel %vm4277, %v4275, %v4279
        %v4282 = vpack.c.bf16 %v4280, %v4280
        %v4283 = vpack.c.bf16 %v4281, %v4281
        %v4284 = vadd.f32 %v4163, %v4177
        %v4285 = vadd.f32 %v4164, %v4181
        %vm4286 = vcmp.ge.f32.partialorder %v4284, 0.0
        %vm4287 = vcmp.ge.f32.partialorder %v4285, 0.0
        %v4288 = vmul.f32 %v4284, 0.2
        %v4289 = vmul.f32 %v4285, 0.2
        %v4290 = vsel %vm4286, %v4284, %v4288
        %v4291 = vsel %vm4287, %v4285, %v4289
        %v4292 = vpack.c.bf16 %v4290, %v4290
        %v4293 = vpack.c.bf16 %v4291, %v4291
        %v4294 = vadd.f32 %v4165, %v4177
        %v4295 = vadd.f32 %v4166, %v4181
        %vm4296 = vcmp.ge.f32.partialorder %v4294, 0.0
        %vm4297 = vcmp.ge.f32.partialorder %v4295, 0.0
        %v4298 = vmul.f32 %v4294, 0.2
        %v4299 = vmul.f32 %v4295, 0.2
        %v4300 = vsel %vm4296, %v4294, %v4298
        %v4301 = vsel %vm4297, %v4295, %v4299
        %v4302 = vpack.c.bf16 %v4300, %v4300
        %v4303 = vpack.c.bf16 %v4301, %v4301
        %v4304 = vadd.f32 %v4167, %v4177
        %v4305 = vadd.f32 %v4168, %v4181
        %vm4306 = vcmp.ge.f32.partialorder %v4304, 0.0
        %vm4307 = vcmp.ge.f32.partialorder %v4305, 0.0
        %v4308 = vmul.f32 %v4304, 0.2
        %v4309 = vmul.f32 %v4305, 0.2
        %v4310 = vsel %vm4306, %v4304, %v4308
        %v4311 = vsel %vm4307, %v4305, %v4309
        %v4312 = vpack.c.bf16 %v4310, %v4310
        %v4313 = vpack.c.bf16 %v4311, %v4311
        %v4314 = vadd.f32 %v4169, %v4177
        %v4315 = vadd.f32 %v4170, %v4181
        %vm4316 = vcmp.ge.f32.partialorder %v4314, 0.0
        %vm4317 = vcmp.ge.f32.partialorder %v4315, 0.0
        %v4318 = vmul.f32 %v4314, 0.2
        %v4319 = vmul.f32 %v4315, 0.2
        %v4320 = vsel %vm4316, %v4314, %v4318
        %v4321 = vsel %vm4317, %v4315, %v4319
        %v4322 = vpack.c.bf16 %v4320, %v4320
        %v4323 = vpack.c.bf16 %v4321, %v4321
        %v4324 = vadd.f32 %v4171, %v4177
        %v4325 = vadd.f32 %v4172, %v4181
        %vm4326 = vcmp.ge.f32.partialorder %v4324, 0.0
        %vm4327 = vcmp.ge.f32.partialorder %v4325, 0.0
        %v4328 = vmul.f32 %v4324, 0.2
        %v4329 = vmul.f32 %v4325, 0.2
        %v4330 = vsel %vm4326, %v4324, %v4328
        %v4331 = vsel %vm4327, %v4325, %v4329
        %v4332 = vpack.c.bf16 %v4330, %v4330
        %v4333 = vpack.c.bf16 %v4331, %v4331
        %v4334 = vadd.f32 %v4139, %v4177
        %v4335 = vadd.f32 %v4141, %v4181
        %vm4336 = vcmp.ge.f32.partialorder %v4334, 0.0
        %vm4337 = vcmp.ge.f32.partialorder %v4335, 0.0
        %v4338 = vmul.f32 %v4334, 0.2
        %v4339 = vmul.f32 %v4335, 0.2
        %v4340 = vsel %vm4336, %v4334, %v4338
        %v4341 = vsel %vm4337, %v4335, %v4339
        %v4342 = vpack.c.bf16 %v4340, %v4340
        %v4343 = vpack.c.bf16 %v4341, %v4341
        %v4344 = vld [vmem:[#allocation9] sm:$0xf]
        %v4345 = vld [vmem:[#allocation9 + $0x4] sm:$0xf]
        %v4346 = vld [vmem:[#allocation9 + $0x8] sm:$0xf]
        %v4347 = vld [vmem:[#allocation9 + $0xc] sm:$0xf]
        %v4348 = vld [vmem:[#allocation9 + $0x10] sm:$0xf]
        %v4349 = vld [vmem:[#allocation9 + $0x14] sm:$0xf]
        %v4350 = vld [vmem:[#allocation9 + $0x18] sm:$0xf]
        %v4351 = vld [vmem:[#allocation9 + $0x1c] sm:$0xf]
        %v4352 = vld [vmem:[#allocation9 + $0x20] sm:$0xf]
        %v4353 = vld [vmem:[#allocation9 + $0x24] sm:$0xf]
        %v4354 = vld [vmem:[#allocation9 + $0x28] sm:$0xf]
        %v4355 = vld [vmem:[#allocation9 + $0x2c] sm:$0xf]
        %v4356 = vld [vmem:[#allocation9 + $0x30] sm:$0xf]
        %v4357 = vld [vmem:[#allocation9 + $0x34] sm:$0xf]
        %v4358 = vld [vmem:[#allocation9 + $0x38] sm:$0xf]
        %v4359 = vld [vmem:[#allocation9 + $0x3c] sm:$0xf]
        %v4360 = vld [vmem:[#allocation9 + $0x40] sm:$0xf]
        %v4361 = vld [vmem:[#allocation9 + $0x44] sm:$0xf]
        %v4362 = vld [vmem:[#allocation9 + $0x48] sm:$0xf]
        %v4363 = vld [vmem:[#allocation9 + $0x4c] sm:$0xf]
        %v4364 = vld [vmem:[#allocation9 + $0x50] sm:$0xf]
        %v4365 = vld [vmem:[#allocation9 + $0x54] sm:$0xf]
        %v4366 = vld [vmem:[#allocation9 + $0x58] sm:$0xf]
        %v4367 = vld [vmem:[#allocation9 + $0x5c] sm:$0xf]
        %v4368 = vld [vmem:[#allocation9 + $0x60] sm:$0xf]
        %v4369 = vld [vmem:[#allocation9 + $0x64] sm:$0xf]
        %v4370 = vld [vmem:[#allocation9 + $0x68] sm:$0xf]
        %v4371 = vld [vmem:[#allocation9 + $0x6c] sm:$0xf]
        %v4372 = vld [vmem:[#allocation9 + $0x70] sm:$0xf]
        %v4373 = vld [vmem:[#allocation9 + $0x74] sm:$0xf]
        %v4374 = vld [vmem:[#allocation9 + $0x78] sm:$0xf]
        %v4375 = vld [vmem:[#allocation9 + $0x7c] sm:$0xf]
        %v4408 = vunpack.c.l.b16 %v4344
        %v4409 = vunpack.c.l.b16 %v4345
        %v4410 = vunpack.c.l.b16 %v4346
        %v4411 = vunpack.c.l.b16 %v4347
        %v4412 = vunpack.c.l.b16 %v4348
        %v4413 = vunpack.c.l.b16 %v4349
        %v4414 = vunpack.c.l.b16 %v4350
        %v4415 = vunpack.c.l.b16 %v4351
        %v4416 = vunpack.c.l.b16 %v4352
        %v4417 = vunpack.c.l.b16 %v4353
        %v4418 = vunpack.c.l.b16 %v4354
        %v4419 = vunpack.c.l.b16 %v4355
        %v4420 = vunpack.c.l.b16 %v4356
        %v4421 = vunpack.c.l.b16 %v4357
        %v4422 = vunpack.c.l.b16 %v4358
        %v4423 = vunpack.c.l.b16 %v4359
        %v4424 = vunpack.c.l.b16 %v4360
        %v4425 = vunpack.c.l.b16 %v4361
        %v4426 = vunpack.c.l.b16 %v4362
        %v4427 = vunpack.c.l.b16 %v4363
        %v4428 = vunpack.c.l.b16 %v4364
        %v4429 = vunpack.c.l.b16 %v4365
        %v4430 = vunpack.c.l.b16 %v4366
        %v4431 = vunpack.c.l.b16 %v4367
        %v4432 = vunpack.c.l.b16 %v4368
        %v4433 = vunpack.c.l.b16 %v4369
        %v4434 = vunpack.c.l.b16 %v4370
        %v4435 = vunpack.c.l.b16 %v4371
        %v4436 = vunpack.c.l.b16 %v4372
        %v4437 = vunpack.c.l.b16 %v4373
        %v4438 = vunpack.c.l.b16 %v4374
        %v4439 = vunpack.c.l.b16 %v4375
        %v4440 = vpack.c.b16 %v4409, %v4408
        %v4441 = vpack.c.b16 %v4411, %v4410
        %v4442 = vpack.c.b16 %v4413, %v4412
        %v4443 = vpack.c.b16 %v4415, %v4414
        %v4444 = vpack.c.b16 %v4417, %v4416
        %v4445 = vpack.c.b16 %v4419, %v4418
        %v4446 = vpack.c.b16 %v4421, %v4420
        %v4447 = vpack.c.b16 %v4423, %v4422
        %v4448 = vpack.c.b16 %v4425, %v4424
        %v4449 = vpack.c.b16 %v4427, %v4426
        %v4450 = vpack.c.b16 %v4429, %v4428
        %v4451 = vpack.c.b16 %v4431, %v4430
        %v4452 = vpack.c.b16 %v4433, %v4432
        %v4453 = vpack.c.b16 %v4435, %v4434
        %v4454 = vpack.c.b16 %v4437, %v4436
        %v4455 = vpack.c.b16 %v4439, %v4438
        %4472 = vmatprep.subr.bf16.mxu0 0
        %4473 = vmatpush1.bf16.msra.mxu0 %v4447
        %4474 = vmatprep.subr.bf16.mxu0 0
        %4475 = vmatpush1.bf16.msra.mxu0 %v4446
        %4476 = vmatprep.subr.bf16.mxu0 0
        %4477 = vmatpush1.bf16.msra.mxu0 %v4445
        %4478 = vmatprep.subr.bf16.mxu0 0
        %4479 = vmatpush1.bf16.msra.mxu0 %v4444
        %4480 = vmatprep.subr.bf16.mxu0 0
        %4481 = vmatpush1.bf16.msra.mxu0 %v4443
        %4482 = vmatprep.subr.bf16.mxu0 0
        %4483 = vmatpush1.bf16.msra.mxu0 %v4442
        %4484 = vmatprep.subr.bf16.mxu0 0
        %4485 = vmatpush1.bf16.msra.mxu0 %v4441
        %4486 = vmatprep.subr.bf16.mxu0 0
        %4487 = vmatpush1.bf16.msra.mxu0 %v4440
        %4488 = vmatprep.subr.bf16.mxu0 0
        %4489 = vmatpush2.bf16.msra.mxu0 %v4455
        %4490 = vmatprep.subr.bf16.mxu0 0
        %4491 = vmatpush2.bf16.msra.mxu0 %v4454
        %4492 = vmatprep.subr.bf16.mxu0 0
        %4493 = vmatpush2.bf16.msra.mxu0 %v4453
        %4494 = vmatprep.subr.bf16.mxu0 0
        %4495 = vmatpush2.bf16.msra.mxu0 %v4452
        %4496 = vmatprep.subr.bf16.mxu0 0
        %4497 = vmatpush2.bf16.msra.mxu0 %v4451
        %4498 = vmatprep.subr.bf16.mxu0 0
        %4499 = vmatpush2.bf16.msra.mxu0 %v4450
        %4500 = vmatprep.subr.bf16.mxu0 0
        %4501 = vmatpush2.bf16.msra.mxu0 %v4449
        %4502 = vmatprep.subr.bf16.mxu0 0
        %4503 = vmatpush2.bf16.msra.mxu0 %v4448
        %4504 = vmatprep.mubr.bf16.mxu0 %v4193
        %4505 = vmatmul.mubr.bf16.gmra.mxu0 %v4192
        %v4506 = vpop.f32.mrf.mxu0
        %v4507 = vadd.f32 0.0, %v4506
        %v4508 = vpop.f32.mrf.mxu0
        %v4509 = vpop.f32.mrf.mxu0
        %v4510 = vpop.f32.mrf.mxu0
        %4511 = vdwg.mxu0
        %4512 = vmatprep.subr.bf16.mxu0 0
        %4513 = vmatpush1.bf16.msra.mxu0 %v4447
        %4514 = vmatprep.subr.bf16.mxu0 0
        %4515 = vmatpush1.bf16.msra.mxu0 %v4446
        %4516 = vmatprep.subr.bf16.mxu0 0
        %4517 = vmatpush1.bf16.msra.mxu0 %v4445
        %4518 = vmatprep.subr.bf16.mxu0 0
        %4519 = vmatpush1.bf16.msra.mxu0 %v4444
        %4520 = vmatprep.subr.bf16.mxu0 0
        %4521 = vmatpush1.bf16.msra.mxu0 %v4443
        %4522 = vmatprep.subr.bf16.mxu0 0
        %4523 = vmatpush1.bf16.msra.mxu0 %v4442
        %4524 = vmatprep.subr.bf16.mxu0 0
        %4525 = vmatpush1.bf16.msra.mxu0 %v4441
        %4526 = vmatprep.subr.bf16.mxu0 0
        %4527 = vmatpush1.bf16.msra.mxu0 %v4440
        %4528 = vmatprep.subr.bf16.mxu0 0
        %4529 = vmatpush2.bf16.msra.mxu0 %v4455
        %4530 = vmatprep.subr.bf16.mxu0 0
        %4531 = vmatpush2.bf16.msra.mxu0 %v4454
        %4532 = vmatprep.subr.bf16.mxu0 0
        %4533 = vmatpush2.bf16.msra.mxu0 %v4453
        %4534 = vmatprep.subr.bf16.mxu0 0
        %4535 = vmatpush2.bf16.msra.mxu0 %v4452
        %4536 = vmatprep.subr.bf16.mxu0 0
        %4537 = vmatpush2.bf16.msra.mxu0 %v4451
        %4538 = vmatprep.subr.bf16.mxu0 0
        %4539 = vmatpush2.bf16.msra.mxu0 %v4450
        %4540 = vmatprep.subr.bf16.mxu0 0
        %4541 = vmatpush2.bf16.msra.mxu0 %v4449
        %4542 = vmatprep.subr.bf16.mxu0 0
        %4543 = vmatpush2.bf16.msra.mxu0 %v4448
        %4544 = vmatprep.mubr.bf16.mxu0 %v4203
        %4545 = vmatmul.mubr.bf16.gmra.mxu0 %v4202
        %v4546 = vpop.f32.mrf.mxu0
        %v4547 = vadd.f32 0.0, %v4546
        %v4548 = vpop.f32.mrf.mxu0
        %v4549 = vpop.f32.mrf.mxu0
        %v4550 = vpop.f32.mrf.mxu0
        %4551 = vdwg.mxu0
        %4552 = vmatprep.subr.bf16.mxu0 0
        %4553 = vmatpush1.bf16.msra.mxu0 %v4447
        %4554 = vmatprep.subr.bf16.mxu0 0
        %4555 = vmatpush1.bf16.msra.mxu0 %v4446
        %4556 = vmatprep.subr.bf16.mxu0 0
        %4557 = vmatpush1.bf16.msra.mxu0 %v4445
        %4558 = vmatprep.subr.bf16.mxu0 0
        %4559 = vmatpush1.bf16.msra.mxu0 %v4444
        %4560 = vmatprep.subr.bf16.mxu0 0
        %4561 = vmatpush1.bf16.msra.mxu0 %v4443
        %4562 = vmatprep.subr.bf16.mxu0 0
        %4563 = vmatpush1.bf16.msra.mxu0 %v4442
        %4564 = vmatprep.subr.bf16.mxu0 0
        %4565 = vmatpush1.bf16.msra.mxu0 %v4441
        %4566 = vmatprep.subr.bf16.mxu0 0
        %4567 = vmatpush1.bf16.msra.mxu0 %v4440
        %4568 = vmatprep.subr.bf16.mxu0 0
        %4569 = vmatpush2.bf16.msra.mxu0 %v4455
        %4570 = vmatprep.subr.bf16.mxu0 0
        %4571 = vmatpush2.bf16.msra.mxu0 %v4454
        %4572 = vmatprep.subr.bf16.mxu0 0
        %4573 = vmatpush2.bf16.msra.mxu0 %v4453
        %4574 = vmatprep.subr.bf16.mxu0 0
        %4575 = vmatpush2.bf16.msra.mxu0 %v4452
        %4576 = vmatprep.subr.bf16.mxu0 0
        %4577 = vmatpush2.bf16.msra.mxu0 %v4451
        %4578 = vmatprep.subr.bf16.mxu0 0
        %4579 = vmatpush2.bf16.msra.mxu0 %v4450
        %4580 = vmatprep.subr.bf16.mxu0 0
        %4581 = vmatpush2.bf16.msra.mxu0 %v4449
        %4582 = vmatprep.subr.bf16.mxu0 0
        %4583 = vmatpush2.bf16.msra.mxu0 %v4448
        %4584 = vmatprep.mubr.bf16.mxu0 %v4213
        %4585 = vmatmul.mubr.bf16.gmra.mxu0 %v4212
        %v4586 = vpop.f32.mrf.mxu0
        %v4587 = vadd.f32 0.0, %v4586
        %v4588 = vpop.f32.mrf.mxu0
        %v4589 = vpop.f32.mrf.mxu0
        %v4590 = vpop.f32.mrf.mxu0
        %4591 = vdwg.mxu0
        %4592 = vmatprep.subr.bf16.mxu0 0
        %4593 = vmatpush1.bf16.msra.mxu0 %v4447
        %4594 = vmatprep.subr.bf16.mxu0 0
        %4595 = vmatpush1.bf16.msra.mxu0 %v4446
        %4596 = vmatprep.subr.bf16.mxu0 0
        %4597 = vmatpush1.bf16.msra.mxu0 %v4445
        %4598 = vmatprep.subr.bf16.mxu0 0
        %4599 = vmatpush1.bf16.msra.mxu0 %v4444
        %4600 = vmatprep.subr.bf16.mxu0 0
        %4601 = vmatpush1.bf16.msra.mxu0 %v4443
        %4602 = vmatprep.subr.bf16.mxu0 0
        %4603 = vmatpush1.bf16.msra.mxu0 %v4442
        %4604 = vmatprep.subr.bf16.mxu0 0
        %4605 = vmatpush1.bf16.msra.mxu0 %v4441
        %4606 = vmatprep.subr.bf16.mxu0 0
        %4607 = vmatpush1.bf16.msra.mxu0 %v4440
        %4608 = vmatprep.subr.bf16.mxu0 0
        %4609 = vmatpush2.bf16.msra.mxu0 %v4455
        %4610 = vmatprep.subr.bf16.mxu0 0
        %4611 = vmatpush2.bf16.msra.mxu0 %v4454
        %4612 = vmatprep.subr.bf16.mxu0 0
        %4613 = vmatpush2.bf16.msra.mxu0 %v4453
        %4614 = vmatprep.subr.bf16.mxu0 0
        %4615 = vmatpush2.bf16.msra.mxu0 %v4452
        %4616 = vmatprep.subr.bf16.mxu0 0
        %4617 = vmatpush2.bf16.msra.mxu0 %v4451
        %4618 = vmatprep.subr.bf16.mxu0 0
        %4619 = vmatpush2.bf16.msra.mxu0 %v4450
        %4620 = vmatprep.subr.bf16.mxu0 0
        %4621 = vmatpush2.bf16.msra.mxu0 %v4449
        %4622 = vmatprep.subr.bf16.mxu0 0
        %4623 = vmatpush2.bf16.msra.mxu0 %v4448
        %4624 = vmatprep.mubr.bf16.mxu0 %v4223
        %4625 = vmatmul.mubr.bf16.gmra.mxu0 %v4222
        %v4626 = vpop.f32.mrf.mxu0
        %v4627 = vadd.f32 0.0, %v4626
        %v4628 = vpop.f32.mrf.mxu0
        %v4629 = vpop.f32.mrf.mxu0
        %v4630 = vpop.f32.mrf.mxu0
        %4631 = vdwg.mxu0
        %4632 = vmatprep.subr.bf16.mxu0 0
        %4633 = vmatpush1.bf16.msra.mxu0 %v4447
        %4634 = vmatprep.subr.bf16.mxu0 0
        %4635 = vmatpush1.bf16.msra.mxu0 %v4446
        %4636 = vmatprep.subr.bf16.mxu0 0
        %4637 = vmatpush1.bf16.msra.mxu0 %v4445
        %4638 = vmatprep.subr.bf16.mxu0 0
        %4639 = vmatpush1.bf16.msra.mxu0 %v4444
        %4640 = vmatprep.subr.bf16.mxu0 0
        %4641 = vmatpush1.bf16.msra.mxu0 %v4443
        %4642 = vmatprep.subr.bf16.mxu0 0
        %4643 = vmatpush1.bf16.msra.mxu0 %v4442
        %4644 = vmatprep.subr.bf16.mxu0 0
        %4645 = vmatpush1.bf16.msra.mxu0 %v4441
        %4646 = vmatprep.subr.bf16.mxu0 0
        %4647 = vmatpush1.bf16.msra.mxu0 %v4440
        %4648 = vmatprep.subr.bf16.mxu0 0
        %4649 = vmatpush2.bf16.msra.mxu0 %v4455
        %4650 = vmatprep.subr.bf16.mxu0 0
        %4651 = vmatpush2.bf16.msra.mxu0 %v4454
        %4652 = vmatprep.subr.bf16.mxu0 0
        %4653 = vmatpush2.bf16.msra.mxu0 %v4453
        %4654 = vmatprep.subr.bf16.mxu0 0
        %4655 = vmatpush2.bf16.msra.mxu0 %v4452
        %4656 = vmatprep.subr.bf16.mxu0 0
        %4657 = vmatpush2.bf16.msra.mxu0 %v4451
        %4658 = vmatprep.subr.bf16.mxu0 0
        %4659 = vmatpush2.bf16.msra.mxu0 %v4450
        %4660 = vmatprep.subr.bf16.mxu0 0
        %4661 = vmatpush2.bf16.msra.mxu0 %v4449
        %4662 = vmatprep.subr.bf16.mxu0 0
        %4663 = vmatpush2.bf16.msra.mxu0 %v4448
        %4664 = vmatprep.mubr.bf16.mxu0 %v4233
        %4665 = vmatmul.mubr.bf16.gmra.mxu0 %v4232
        %v4666 = vpop.f32.mrf.mxu0
        %v4667 = vadd.f32 0.0, %v4666
        %v4668 = vpop.f32.mrf.mxu0
        %v4669 = vpop.f32.mrf.mxu0
        %v4670 = vpop.f32.mrf.mxu0
        %4671 = vdwg.mxu0
        %4672 = vmatprep.subr.bf16.mxu0 0
        %4673 = vmatpush1.bf16.msra.mxu0 %v4447
        %4674 = vmatprep.subr.bf16.mxu0 0
        %4675 = vmatpush1.bf16.msra.mxu0 %v4446
        %4676 = vmatprep.subr.bf16.mxu0 0
        %4677 = vmatpush1.bf16.msra.mxu0 %v4445
        %4678 = vmatprep.subr.bf16.mxu0 0
        %4679 = vmatpush1.bf16.msra.mxu0 %v4444
        %4680 = vmatprep.subr.bf16.mxu0 0
        %4681 = vmatpush1.bf16.msra.mxu0 %v4443
        %4682 = vmatprep.subr.bf16.mxu0 0
        %4683 = vmatpush1.bf16.msra.mxu0 %v4442
        %4684 = vmatprep.subr.bf16.mxu0 0
        %4685 = vmatpush1.bf16.msra.mxu0 %v4441
        %4686 = vmatprep.subr.bf16.mxu0 0
        %4687 = vmatpush1.bf16.msra.mxu0 %v4440
        %4688 = vmatprep.subr.bf16.mxu0 0
        %4689 = vmatpush2.bf16.msra.mxu0 %v4455
        %4690 = vmatprep.subr.bf16.mxu0 0
        %4691 = vmatpush2.bf16.msra.mxu0 %v4454
        %4692 = vmatprep.subr.bf16.mxu0 0
        %4693 = vmatpush2.bf16.msra.mxu0 %v4453
        %4694 = vmatprep.subr.bf16.mxu0 0
        %4695 = vmatpush2.bf16.msra.mxu0 %v4452
        %4696 = vmatprep.subr.bf16.mxu0 0
        %4697 = vmatpush2.bf16.msra.mxu0 %v4451
        %4698 = vmatprep.subr.bf16.mxu0 0
        %4699 = vmatpush2.bf16.msra.mxu0 %v4450
        %4700 = vmatprep.subr.bf16.mxu0 0
        %4701 = vmatpush2.bf16.msra.mxu0 %v4449
        %4702 = vmatprep.subr.bf16.mxu0 0
        %4703 = vmatpush2.bf16.msra.mxu0 %v4448
        %4704 = vmatprep.mubr.bf16.mxu0 %v4243
        %4705 = vmatmul.mubr.bf16.gmra.mxu0 %v4242
        %v4706 = vpop.f32.mrf.mxu0
        %v4707 = vadd.f32 0.0, %v4706
        %v4708 = vpop.f32.mrf.mxu0
        %v4709 = vpop.f32.mrf.mxu0
        %v4710 = vpop.f32.mrf.mxu0
        %4711 = vdwg.mxu0
        %4712 = vmatprep.subr.bf16.mxu0 0
        %4713 = vmatpush1.bf16.msra.mxu0 %v4447
        %4714 = vmatprep.subr.bf16.mxu0 0
        %4715 = vmatpush1.bf16.msra.mxu0 %v4446
        %4716 = vmatprep.subr.bf16.mxu0 0
        %4717 = vmatpush1.bf16.msra.mxu0 %v4445
        %4718 = vmatprep.subr.bf16.mxu0 0
        %4719 = vmatpush1.bf16.msra.mxu0 %v4444
        %4720 = vmatprep.subr.bf16.mxu0 0
        %4721 = vmatpush1.bf16.msra.mxu0 %v4443
        %4722 = vmatprep.subr.bf16.mxu0 0
        %4723 = vmatpush1.bf16.msra.mxu0 %v4442
        %4724 = vmatprep.subr.bf16.mxu0 0
        %4725 = vmatpush1.bf16.msra.mxu0 %v4441
        %4726 = vmatprep.subr.bf16.mxu0 0
        %4727 = vmatpush1.bf16.msra.mxu0 %v4440
        %4728 = vmatprep.subr.bf16.mxu0 0
        %4729 = vmatpush2.bf16.msra.mxu0 %v4455
        %4730 = vmatprep.subr.bf16.mxu0 0
        %4731 = vmatpush2.bf16.msra.mxu0 %v4454
        %4732 = vmatprep.subr.bf16.mxu0 0
        %4733 = vmatpush2.bf16.msra.mxu0 %v4453
        %4734 = vmatprep.subr.bf16.mxu0 0
        %4735 = vmatpush2.bf16.msra.mxu0 %v4452
        %4736 = vmatprep.subr.bf16.mxu0 0
        %4737 = vmatpush2.bf16.msra.mxu0 %v4451
        %4738 = vmatprep.subr.bf16.mxu0 0
        %4739 = vmatpush2.bf16.msra.mxu0 %v4450
        %4740 = vmatprep.subr.bf16.mxu0 0
        %4741 = vmatpush2.bf16.msra.mxu0 %v4449
        %4742 = vmatprep.subr.bf16.mxu0 0
        %4743 = vmatpush2.bf16.msra.mxu0 %v4448
        %4744 = vmatprep.mubr.bf16.mxu0 %v4253
        %4745 = vmatmul.mubr.bf16.gmra.mxu0 %v4252
        %v4746 = vpop.f32.mrf.mxu0
        %v4747 = vadd.f32 0.0, %v4746
        %v4748 = vpop.f32.mrf.mxu0
        %v4749 = vpop.f32.mrf.mxu0
        %v4750 = vpop.f32.mrf.mxu0
        %4751 = vdwg.mxu0
        %4752 = vmatprep.subr.bf16.mxu0 0
        %4753 = vmatpush1.bf16.msra.mxu0 %v4447
        %4754 = vmatprep.subr.bf16.mxu0 0
        %4755 = vmatpush1.bf16.msra.mxu0 %v4446
        %4756 = vmatprep.subr.bf16.mxu0 0
        %4757 = vmatpush1.bf16.msra.mxu0 %v4445
        %4758 = vmatprep.subr.bf16.mxu0 0
        %4759 = vmatpush1.bf16.msra.mxu0 %v4444
        %4760 = vmatprep.subr.bf16.mxu0 0
        %4761 = vmatpush1.bf16.msra.mxu0 %v4443
        %4762 = vmatprep.subr.bf16.mxu0 0
        %4763 = vmatpush1.bf16.msra.mxu0 %v4442
        %4764 = vmatprep.subr.bf16.mxu0 0
        %4765 = vmatpush1.bf16.msra.mxu0 %v4441
        %4766 = vmatprep.subr.bf16.mxu0 0
        %4767 = vmatpush1.bf16.msra.mxu0 %v4440
        %4768 = vmatprep.subr.bf16.mxu0 0
        %4769 = vmatpush2.bf16.msra.mxu0 %v4455
        %4770 = vmatprep.subr.bf16.mxu0 0
        %4771 = vmatpush2.bf16.msra.mxu0 %v4454
        %4772 = vmatprep.subr.bf16.mxu0 0
        %4773 = vmatpush2.bf16.msra.mxu0 %v4453
        %4774 = vmatprep.subr.bf16.mxu0 0
        %4775 = vmatpush2.bf16.msra.mxu0 %v4452
        %4776 = vmatprep.subr.bf16.mxu0 0
        %4777 = vmatpush2.bf16.msra.mxu0 %v4451
        %4778 = vmatprep.subr.bf16.mxu0 0
        %4779 = vmatpush2.bf16.msra.mxu0 %v4450
        %4780 = vmatprep.subr.bf16.mxu0 0
        %4781 = vmatpush2.bf16.msra.mxu0 %v4449
        %4782 = vmatprep.subr.bf16.mxu0 0
        %4783 = vmatpush2.bf16.msra.mxu0 %v4448
        %4784 = vmatprep.mubr.bf16.mxu0 %v4263
        %4785 = vmatmul.mubr.bf16.gmra.mxu0 %v4262
        %v4786 = vpop.f32.mrf.mxu0
        %v4787 = vadd.f32 0.0, %v4786
        %v4788 = vpop.f32.mrf.mxu0
        %v4789 = vpop.f32.mrf.mxu0
        %v4790 = vpop.f32.mrf.mxu0
        %4791 = vdwg.mxu0
        %4792 = vmatprep.subr.bf16.mxu0 0
        %4793 = vmatpush1.bf16.msra.mxu0 %v4447
        %4794 = vmatprep.subr.bf16.mxu0 0
        %4795 = vmatpush1.bf16.msra.mxu0 %v4446
        %4796 = vmatprep.subr.bf16.mxu0 0
        %4797 = vmatpush1.bf16.msra.mxu0 %v4445
        %4798 = vmatprep.subr.bf16.mxu0 0
        %4799 = vmatpush1.bf16.msra.mxu0 %v4444
        %4800 = vmatprep.subr.bf16.mxu0 0
        %4801 = vmatpush1.bf16.msra.mxu0 %v4443
        %4802 = vmatprep.subr.bf16.mxu0 0
        %4803 = vmatpush1.bf16.msra.mxu0 %v4442
        %4804 = vmatprep.subr.bf16.mxu0 0
        %4805 = vmatpush1.bf16.msra.mxu0 %v4441
        %4806 = vmatprep.subr.bf16.mxu0 0
        %4807 = vmatpush1.bf16.msra.mxu0 %v4440
        %4808 = vmatprep.subr.bf16.mxu0 0
        %4809 = vmatpush2.bf16.msra.mxu0 %v4455
        %4810 = vmatprep.subr.bf16.mxu0 0
        %4811 = vmatpush2.bf16.msra.mxu0 %v4454
        %4812 = vmatprep.subr.bf16.mxu0 0
        %4813 = vmatpush2.bf16.msra.mxu0 %v4453
        %4814 = vmatprep.subr.bf16.mxu0 0
        %4815 = vmatpush2.bf16.msra.mxu0 %v4452
        %4816 = vmatprep.subr.bf16.mxu0 0
        %4817 = vmatpush2.bf16.msra.mxu0 %v4451
        %4818 = vmatprep.subr.bf16.mxu0 0
        %4819 = vmatpush2.bf16.msra.mxu0 %v4450
        %4820 = vmatprep.subr.bf16.mxu0 0
        %4821 = vmatpush2.bf16.msra.mxu0 %v4449
        %4822 = vmatprep.subr.bf16.mxu0 0
        %4823 = vmatpush2.bf16.msra.mxu0 %v4448
        %4824 = vmatprep.mubr.bf16.mxu0 %v4273
        %4825 = vmatmul.mubr.bf16.gmra.mxu0 %v4272
        %v4826 = vpop.f32.mrf.mxu0
        %v4827 = vadd.f32 0.0, %v4826
        %v4828 = vpop.f32.mrf.mxu0
        %v4829 = vpop.f32.mrf.mxu0
        %v4830 = vpop.f32.mrf.mxu0
        %4831 = vdwg.mxu0
        %4832 = vmatprep.subr.bf16.mxu0 0
        %4833 = vmatpush1.bf16.msra.mxu0 %v4447
        %4834 = vmatprep.subr.bf16.mxu0 0
        %4835 = vmatpush1.bf16.msra.mxu0 %v4446
        %4836 = vmatprep.subr.bf16.mxu0 0
        %4837 = vmatpush1.bf16.msra.mxu0 %v4445
        %4838 = vmatprep.subr.bf16.mxu0 0
        %4839 = vmatpush1.bf16.msra.mxu0 %v4444
        %4840 = vmatprep.subr.bf16.mxu0 0
        %4841 = vmatpush1.bf16.msra.mxu0 %v4443
        %4842 = vmatprep.subr.bf16.mxu0 0
        %4843 = vmatpush1.bf16.msra.mxu0 %v4442
        %4844 = vmatprep.subr.bf16.mxu0 0
        %4845 = vmatpush1.bf16.msra.mxu0 %v4441
        %4846 = vmatprep.subr.bf16.mxu0 0
        %4847 = vmatpush1.bf16.msra.mxu0 %v4440
        %4848 = vmatprep.subr.bf16.mxu0 0
        %4849 = vmatpush2.bf16.msra.mxu0 %v4455
        %4850 = vmatprep.subr.bf16.mxu0 0
        %4851 = vmatpush2.bf16.msra.mxu0 %v4454
        %4852 = vmatprep.subr.bf16.mxu0 0
        %4853 = vmatpush2.bf16.msra.mxu0 %v4453
        %4854 = vmatprep.subr.bf16.mxu0 0
        %4855 = vmatpush2.bf16.msra.mxu0 %v4452
        %4856 = vmatprep.subr.bf16.mxu0 0
        %4857 = vmatpush2.bf16.msra.mxu0 %v4451
        %4858 = vmatprep.subr.bf16.mxu0 0
        %4859 = vmatpush2.bf16.msra.mxu0 %v4450
        %4860 = vmatprep.subr.bf16.mxu0 0
        %4861 = vmatpush2.bf16.msra.mxu0 %v4449
        %4862 = vmatprep.subr.bf16.mxu0 0
        %4863 = vmatpush2.bf16.msra.mxu0 %v4448
        %4864 = vmatprep.mubr.bf16.mxu0 %v4283
        %4865 = vmatmul.mubr.bf16.gmra.mxu0 %v4282
        %v4866 = vpop.f32.mrf.mxu0
        %v4867 = vadd.f32 0.0, %v4866
        %v4868 = vpop.f32.mrf.mxu0
        %v4869 = vpop.f32.mrf.mxu0
        %v4870 = vpop.f32.mrf.mxu0
        %4871 = vdwg.mxu0
        %4872 = vmatprep.subr.bf16.mxu0 0
        %4873 = vmatpush1.bf16.msra.mxu0 %v4447
        %4874 = vmatprep.subr.bf16.mxu0 0
        %4875 = vmatpush1.bf16.msra.mxu0 %v4446
        %4876 = vmatprep.subr.bf16.mxu0 0
        %4877 = vmatpush1.bf16.msra.mxu0 %v4445
        %4878 = vmatprep.subr.bf16.mxu0 0
        %4879 = vmatpush1.bf16.msra.mxu0 %v4444
        %4880 = vmatprep.subr.bf16.mxu0 0
        %4881 = vmatpush1.bf16.msra.mxu0 %v4443
        %4882 = vmatprep.subr.bf16.mxu0 0
        %4883 = vmatpush1.bf16.msra.mxu0 %v4442
        %4884 = vmatprep.subr.bf16.mxu0 0
        %4885 = vmatpush1.bf16.msra.mxu0 %v4441
        %4886 = vmatprep.subr.bf16.mxu0 0
        %4887 = vmatpush1.bf16.msra.mxu0 %v4440
        %4888 = vmatprep.subr.bf16.mxu0 0
        %4889 = vmatpush2.bf16.msra.mxu0 %v4455
        %4890 = vmatprep.subr.bf16.mxu0 0
        %4891 = vmatpush2.bf16.msra.mxu0 %v4454
        %4892 = vmatprep.subr.bf16.mxu0 0
        %4893 = vmatpush2.bf16.msra.mxu0 %v4453
        %4894 = vmatprep.subr.bf16.mxu0 0
        %4895 = vmatpush2.bf16.msra.mxu0 %v4452
        %4896 = vmatprep.subr.bf16.mxu0 0
        %4897 = vmatpush2.bf16.msra.mxu0 %v4451
        %4898 = vmatprep.subr.bf16.mxu0 0
        %4899 = vmatpush2.bf16.msra.mxu0 %v4450
        %4900 = vmatprep.subr.bf16.mxu0 0
        %4901 = vmatpush2.bf16.msra.mxu0 %v4449
        %4902 = vmatprep.subr.bf16.mxu0 0
        %4903 = vmatpush2.bf16.msra.mxu0 %v4448
        %4904 = vmatprep.mubr.bf16.mxu0 %v4293
        %4905 = vmatmul.mubr.bf16.gmra.mxu0 %v4292
        %v4906 = vpop.f32.mrf.mxu0
        %v4907 = vadd.f32 0.0, %v4906
        %v4908 = vpop.f32.mrf.mxu0
        %v4909 = vpop.f32.mrf.mxu0
        %v4910 = vpop.f32.mrf.mxu0
        %4911 = vdwg.mxu0
        %4912 = vmatprep.subr.bf16.mxu0 0
        %4913 = vmatpush1.bf16.msra.mxu0 %v4447
        %4914 = vmatprep.subr.bf16.mxu0 0
        %4915 = vmatpush1.bf16.msra.mxu0 %v4446
        %4916 = vmatprep.subr.bf16.mxu0 0
        %4917 = vmatpush1.bf16.msra.mxu0 %v4445
        %4918 = vmatprep.subr.bf16.mxu0 0
        %4919 = vmatpush1.bf16.msra.mxu0 %v4444
        %4920 = vmatprep.subr.bf16.mxu0 0
        %4921 = vmatpush1.bf16.msra.mxu0 %v4443
        %4922 = vmatprep.subr.bf16.mxu0 0
        %4923 = vmatpush1.bf16.msra.mxu0 %v4442
        %4924 = vmatprep.subr.bf16.mxu0 0
        %4925 = vmatpush1.bf16.msra.mxu0 %v4441
        %4926 = vmatprep.subr.bf16.mxu0 0
        %4927 = vmatpush1.bf16.msra.mxu0 %v4440
        %4928 = vmatprep.subr.bf16.mxu0 0
        %4929 = vmatpush2.bf16.msra.mxu0 %v4455
        %4930 = vmatprep.subr.bf16.mxu0 0
        %4931 = vmatpush2.bf16.msra.mxu0 %v4454
        %4932 = vmatprep.subr.bf16.mxu0 0
        %4933 = vmatpush2.bf16.msra.mxu0 %v4453
        %4934 = vmatprep.subr.bf16.mxu0 0
        %4935 = vmatpush2.bf16.msra.mxu0 %v4452
        %4936 = vmatprep.subr.bf16.mxu0 0
        %4937 = vmatpush2.bf16.msra.mxu0 %v4451
        %4938 = vmatprep.subr.bf16.mxu0 0
        %4939 = vmatpush2.bf16.msra.mxu0 %v4450
        %4940 = vmatprep.subr.bf16.mxu0 0
        %4941 = vmatpush2.bf16.msra.mxu0 %v4449
        %4942 = vmatprep.subr.bf16.mxu0 0
        %4943 = vmatpush2.bf16.msra.mxu0 %v4448
        %4944 = vmatprep.mubr.bf16.mxu0 %v4303
        %4945 = vmatmul.mubr.bf16.gmra.mxu0 %v4302
        %v4946 = vpop.f32.mrf.mxu0
        %v4947 = vadd.f32 0.0, %v4946
        %v4948 = vpop.f32.mrf.mxu0
        %v4949 = vpop.f32.mrf.mxu0
        %v4950 = vpop.f32.mrf.mxu0
        %4951 = vdwg.mxu0
        %4952 = vmatprep.subr.bf16.mxu0 0
        %4953 = vmatpush1.bf16.msra.mxu0 %v4447
        %4954 = vmatprep.subr.bf16.mxu0 0
        %4955 = vmatpush1.bf16.msra.mxu0 %v4446
        %4956 = vmatprep.subr.bf16.mxu0 0
        %4957 = vmatpush1.bf16.msra.mxu0 %v4445
        %4958 = vmatprep.subr.bf16.mxu0 0
        %4959 = vmatpush1.bf16.msra.mxu0 %v4444
        %4960 = vmatprep.subr.bf16.mxu0 0
        %4961 = vmatpush1.bf16.msra.mxu0 %v4443
        %4962 = vmatprep.subr.bf16.mxu0 0
        %4963 = vmatpush1.bf16.msra.mxu0 %v4442
        %4964 = vmatprep.subr.bf16.mxu0 0
        %4965 = vmatpush1.bf16.msra.mxu0 %v4441
        %4966 = vmatprep.subr.bf16.mxu0 0
        %4967 = vmatpush1.bf16.msra.mxu0 %v4440
        %4968 = vmatprep.subr.bf16.mxu0 0
        %4969 = vmatpush2.bf16.msra.mxu0 %v4455
        %4970 = vmatprep.subr.bf16.mxu0 0
        %4971 = vmatpush2.bf16.msra.mxu0 %v4454
        %4972 = vmatprep.subr.bf16.mxu0 0
        %4973 = vmatpush2.bf16.msra.mxu0 %v4453
        %4974 = vmatprep.subr.bf16.mxu0 0
        %4975 = vmatpush2.bf16.msra.mxu0 %v4452
        %4976 = vmatprep.subr.bf16.mxu0 0
        %4977 = vmatpush2.bf16.msra.mxu0 %v4451
        %4978 = vmatprep.subr.bf16.mxu0 0
        %4979 = vmatpush2.bf16.msra.mxu0 %v4450
        %4980 = vmatprep.subr.bf16.mxu0 0
        %4981 = vmatpush2.bf16.msra.mxu0 %v4449
        %4982 = vmatprep.subr.bf16.mxu0 0
        %4983 = vmatpush2.bf16.msra.mxu0 %v4448
        %4984 = vmatprep.mubr.bf16.mxu0 %v4313
        %4985 = vmatmul.mubr.bf16.gmra.mxu0 %v4312
        %v4986 = vpop.f32.mrf.mxu0
        %v4987 = vadd.f32 0.0, %v4986
        %v4988 = vpop.f32.mrf.mxu0
        %v4989 = vpop.f32.mrf.mxu0
        %v4990 = vpop.f32.mrf.mxu0
        %4991 = vdwg.mxu0
        %4992 = vmatprep.subr.bf16.mxu0 0
        %4993 = vmatpush1.bf16.msra.mxu0 %v4447
        %4994 = vmatprep.subr.bf16.mxu0 0
        %4995 = vmatpush1.bf16.msra.mxu0 %v4446
        %4996 = vmatprep.subr.bf16.mxu0 0
        %4997 = vmatpush1.bf16.msra.mxu0 %v4445
        %4998 = vmatprep.subr.bf16.mxu0 0
        %4999 = vmatpush1.bf16.msra.mxu0 %v4444
        %5000 = vmatprep.subr.bf16.mxu0 0
        %5001 = vmatpush1.bf16.msra.mxu0 %v4443
        %5002 = vmatprep.subr.bf16.mxu0 0
        %5003 = vmatpush1.bf16.msra.mxu0 %v4442
        %5004 = vmatprep.subr.bf16.mxu0 0
        %5005 = vmatpush1.bf16.msra.mxu0 %v4441
        %5006 = vmatprep.subr.bf16.mxu0 0
        %5007 = vmatpush1.bf16.msra.mxu0 %v4440
        %5008 = vmatprep.subr.bf16.mxu0 0
        %5009 = vmatpush2.bf16.msra.mxu0 %v4455
        %5010 = vmatprep.subr.bf16.mxu0 0
        %5011 = vmatpush2.bf16.msra.mxu0 %v4454
        %5012 = vmatprep.subr.bf16.mxu0 0
        %5013 = vmatpush2.bf16.msra.mxu0 %v4453
        %5014 = vmatprep.subr.bf16.mxu0 0
        %5015 = vmatpush2.bf16.msra.mxu0 %v4452
        %5016 = vmatprep.subr.bf16.mxu0 0
        %5017 = vmatpush2.bf16.msra.mxu0 %v4451
        %5018 = vmatprep.subr.bf16.mxu0 0
        %5019 = vmatpush2.bf16.msra.mxu0 %v4450
        %5020 = vmatprep.subr.bf16.mxu0 0
        %5021 = vmatpush2.bf16.msra.mxu0 %v4449
        %5022 = vmatprep.subr.bf16.mxu0 0
        %5023 = vmatpush2.bf16.msra.mxu0 %v4448
        %5024 = vmatprep.mubr.bf16.mxu0 %v4323
        %5025 = vmatmul.mubr.bf16.gmra.mxu0 %v4322
        %v5026 = vpop.f32.mrf.mxu0
        %v5027 = vadd.f32 0.0, %v5026
        %v5028 = vpop.f32.mrf.mxu0
        %v5029 = vpop.f32.mrf.mxu0
        %v5030 = vpop.f32.mrf.mxu0
        %5031 = vdwg.mxu0
        %5032 = vmatprep.subr.bf16.mxu0 0
        %5033 = vmatpush1.bf16.msra.mxu0 %v4447
        %5034 = vmatprep.subr.bf16.mxu0 0
        %5035 = vmatpush1.bf16.msra.mxu0 %v4446
        %5036 = vmatprep.subr.bf16.mxu0 0
        %5037 = vmatpush1.bf16.msra.mxu0 %v4445
        %5038 = vmatprep.subr.bf16.mxu0 0
        %5039 = vmatpush1.bf16.msra.mxu0 %v4444
        %5040 = vmatprep.subr.bf16.mxu0 0
        %5041 = vmatpush1.bf16.msra.mxu0 %v4443
        %5042 = vmatprep.subr.bf16.mxu0 0
        %5043 = vmatpush1.bf16.msra.mxu0 %v4442
        %5044 = vmatprep.subr.bf16.mxu0 0
        %5045 = vmatpush1.bf16.msra.mxu0 %v4441
        %5046 = vmatprep.subr.bf16.mxu0 0
        %5047 = vmatpush1.bf16.msra.mxu0 %v4440
        %5048 = vmatprep.subr.bf16.mxu0 0
        %5049 = vmatpush2.bf16.msra.mxu0 %v4455
        %5050 = vmatprep.subr.bf16.mxu0 0
        %5051 = vmatpush2.bf16.msra.mxu0 %v4454
        %5052 = vmatprep.subr.bf16.mxu0 0
        %5053 = vmatpush2.bf16.msra.mxu0 %v4453
        %5054 = vmatprep.subr.bf16.mxu0 0
        %5055 = vmatpush2.bf16.msra.mxu0 %v4452
        %5056 = vmatprep.subr.bf16.mxu0 0
        %5057 = vmatpush2.bf16.msra.mxu0 %v4451
        %5058 = vmatprep.subr.bf16.mxu0 0
        %5059 = vmatpush2.bf16.msra.mxu0 %v4450
        %5060 = vmatprep.subr.bf16.mxu0 0
        %5061 = vmatpush2.bf16.msra.mxu0 %v4449
        %5062 = vmatprep.subr.bf16.mxu0 0
        %5063 = vmatpush2.bf16.msra.mxu0 %v4448
        %5064 = vmatprep.mubr.bf16.mxu0 %v4333
        %5065 = vmatmul.mubr.bf16.gmra.mxu0 %v4332
        %v5066 = vpop.f32.mrf.mxu0
        %v5067 = vadd.f32 0.0, %v5066
        %v5068 = vpop.f32.mrf.mxu0
        %v5069 = vpop.f32.mrf.mxu0
        %v5070 = vpop.f32.mrf.mxu0
        %5071 = vdwg.mxu0
        %5072 = vmatprep.subr.bf16.mxu0 0
        %5073 = vmatpush1.bf16.msra.mxu0 %v4447
        %5074 = vmatprep.subr.bf16.mxu0 0
        %5075 = vmatpush1.bf16.msra.mxu0 %v4446
        %5076 = vmatprep.subr.bf16.mxu0 0
        %5077 = vmatpush1.bf16.msra.mxu0 %v4445
        %5078 = vmatprep.subr.bf16.mxu0 0
        %5079 = vmatpush1.bf16.msra.mxu0 %v4444
        %5080 = vmatprep.subr.bf16.mxu0 0
        %5081 = vmatpush1.bf16.msra.mxu0 %v4443
        %5082 = vmatprep.subr.bf16.mxu0 0
        %5083 = vmatpush1.bf16.msra.mxu0 %v4442
        %5084 = vmatprep.subr.bf16.mxu0 0
        %5085 = vmatpush1.bf16.msra.mxu0 %v4441
        %5086 = vmatprep.subr.bf16.mxu0 0
        %5087 = vmatpush1.bf16.msra.mxu0 %v4440
        %5088 = vmatprep.subr.bf16.mxu0 0
        %5089 = vmatpush2.bf16.msra.mxu0 %v4455
        %5090 = vmatprep.subr.bf16.mxu0 0
        %5091 = vmatpush2.bf16.msra.mxu0 %v4454
        %5092 = vmatprep.subr.bf16.mxu0 0
        %5093 = vmatpush2.bf16.msra.mxu0 %v4453
        %5094 = vmatprep.subr.bf16.mxu0 0
        %5095 = vmatpush2.bf16.msra.mxu0 %v4452
        %5096 = vmatprep.subr.bf16.mxu0 0
        %5097 = vmatpush2.bf16.msra.mxu0 %v4451
        %5098 = vmatprep.subr.bf16.mxu0 0
        %5099 = vmatpush2.bf16.msra.mxu0 %v4450
        %5100 = vmatprep.subr.bf16.mxu0 0
        %5101 = vmatpush2.bf16.msra.mxu0 %v4449
        %5102 = vmatprep.subr.bf16.mxu0 0
        %5103 = vmatpush2.bf16.msra.mxu0 %v4448
        %5104 = vmatprep.mubr.bf16.mxu0 %v4343
        %5105 = vmatmul.mubr.bf16.gmra.mxu0 %v4342
        %v5106 = vpop.f32.mrf.mxu0
        %v5107 = vadd.f32 0.0, %v5106
        %v5108 = vpop.f32.mrf.mxu0
        %v5109 = vpop.f32.mrf.mxu0
        %v5110 = vpop.f32.mrf.mxu0
        %5111 = vdwg.mxu0
        %5113 = vrot.lane.b32.xlu0 %v4547, 64
        %v5114 = vpop.permute.xlu0 %5113
        %v5116 = vadd.f32 %v4507, %v5114
        %5118 = vrot.lane.b32.xlu0 %v4507, 64
        %v5119 = vpop.permute.xlu0 %5118
        %v5121 = vadd.f32 %v4547, %v5119
        %5123 = vrot.lane.b32.xlu0 %v4587, 64
        %v5124 = vpop.permute.xlu0 %5123
        %v5126 = vadd.f32 %v4547, %v5124
        %v5127 = vadd.f32 %v4587, %v5114
        %5129 = vrot.lane.b32.xlu0 %v4627, 64
        %v5130 = vpop.permute.xlu0 %5129
        %v5132 = vadd.f32 %v4587, %v5130
        %v5133 = vadd.f32 %v4627, %v5124
        %5135 = vrot.lane.b32.xlu0 %v4667, 64
        %v5136 = vpop.permute.xlu0 %5135
        %v5138 = vadd.f32 %v4627, %v5136
        %v5139 = vadd.f32 %v4667, %v5130
        %5141 = vrot.lane.b32.xlu0 %v4707, 64
        %v5142 = vpop.permute.xlu0 %5141
        %v5144 = vadd.f32 %v4667, %v5142
        %v5145 = vadd.f32 %v4707, %v5136
        %5147 = vrot.lane.b32.xlu0 %v4747, 64
        %v5148 = vpop.permute.xlu0 %5147
        %v5150 = vadd.f32 %v4707, %v5148
        %v5151 = vadd.f32 %v4747, %v5142
        %5153 = vrot.lane.b32.xlu0 %v4787, 64
        %v5154 = vpop.permute.xlu0 %5153
        %v5156 = vadd.f32 %v4747, %v5154
        %v5157 = vadd.f32 %v4787, %v5148
        %5159 = vrot.lane.b32.xlu0 %v4827, 64
        %v5160 = vpop.permute.xlu0 %5159
        %v5162 = vadd.f32 %v4787, %v5160
        %v5163 = vadd.f32 %v4827, %v5154
        %5165 = vrot.lane.b32.xlu0 %v4867, 64
        %v5166 = vpop.permute.xlu0 %5165
        %v5168 = vadd.f32 %v4827, %v5166
        %v5169 = vadd.f32 %v4867, %v5160
        %5171 = vrot.lane.b32.xlu0 %v4907, 64
        %v5172 = vpop.permute.xlu0 %5171
        %v5174 = vadd.f32 %v4867, %v5172
        %v5175 = vadd.f32 %v4907, %v5166
        %5177 = vrot.lane.b32.xlu0 %v4947, 64
        %v5178 = vpop.permute.xlu0 %5177
        %v5180 = vadd.f32 %v4907, %v5178
        %v5181 = vadd.f32 %v4947, %v5172
        %5183 = vrot.lane.b32.xlu0 %v4987, 64
        %v5184 = vpop.permute.xlu0 %5183
        %v5186 = vadd.f32 %v4947, %v5184
        %v5187 = vadd.f32 %v4987, %v5178
        %5189 = vrot.lane.b32.xlu0 %v5027, 64
        %v5190 = vpop.permute.xlu0 %5189
        %v5192 = vadd.f32 %v4987, %v5190
        %v5193 = vadd.f32 %v5027, %v5184
        %5195 = vrot.lane.b32.xlu0 %v5067, 64
        %v5196 = vpop.permute.xlu0 %5195
        %v5198 = vadd.f32 %v5027, %v5196
        %v5199 = vadd.f32 %v5067, %v5190
        %5201 = vrot.lane.b32.xlu0 %v5107, 64
        %v5202 = vpop.permute.xlu0 %5201
        %v5204 = vadd.f32 %v5067, %v5202
        %v5205 = vadd.f32 %v5107, %v5196
        %5206 = vrot.lane.b32.xlu0 %v4507, 96
        %v5207 = vpop.permute.xlu0 %5206
        %5210 = vrot.lane.b32.xlu0 %v5116, 96
        %v5211 = vpop.permute.xlu0 %5210
        %5214 = vrot.lane.b32.xlu0 %v5121, 32
        %v5215 = vpop.permute.xlu0 %5214
        %5218 = vrot.lane.b32.xlu0 %v5126, 32
        %v5219 = vpop.permute.xlu0 %5218
        %5222 = vrot.lane.b32.xlu0 %v5127, 96
        %v5223 = vpop.permute.xlu0 %5222
        %5226 = vrot.lane.b32.xlu0 %v5132, 96
        %v5227 = vpop.permute.xlu0 %5226
        %5230 = vrot.lane.b32.xlu0 %v5133, 32
        %v5231 = vpop.permute.xlu0 %5230
        %5234 = vrot.lane.b32.xlu0 %v5138, 32
        %v5235 = vpop.permute.xlu0 %5234
        %5238 = vrot.lane.b32.xlu0 %v5139, 96
        %v5239 = vpop.permute.xlu0 %5238
        %5242 = vrot.lane.b32.xlu0 %v5144, 96
        %v5243 = vpop.permute.xlu0 %5242
        %5246 = vrot.lane.b32.xlu0 %v5145, 32
        %v5247 = vpop.permute.xlu0 %5246
        %5250 = vrot.lane.b32.xlu0 %v5150, 32
        %v5251 = vpop.permute.xlu0 %5250
        %5254 = vrot.lane.b32.xlu0 %v5151, 96
        %v5255 = vpop.permute.xlu0 %5254
        %5258 = vrot.lane.b32.xlu0 %v5156, 96
        %v5259 = vpop.permute.xlu0 %5258
        %5262 = vrot.lane.b32.xlu0 %v5157, 32
        %v5263 = vpop.permute.xlu0 %5262
        %5266 = vrot.lane.b32.xlu0 %v5162, 32
        %v5267 = vpop.permute.xlu0 %5266
        %v5269 = vsel %vm480, %v5207, %v5211
        %vm5270 = vcmask 523264
        %v5271 = vsel %vm5270, %v5269, %v5215
        %vm5272 = vcmask 785408
        %v5273 = vsel %vm5272, %v5271, %v5219
        %v5274 = vsel %vm480, %v5223, %v5227
        %v5275 = vsel %vm5270, %v5274, %v5231
        %v5276 = vsel %vm5272, %v5275, %v5235
        %v5277 = vsel %vm480, %v5239, %v5243
        %v5278 = vsel %vm5270, %v5277, %v5247
        %v5279 = vsel %vm5272, %v5278, %v5251
        %v5280 = vsel %vm480, %v5255, %v5259
        %v5281 = vsel %vm5270, %v5280, %v5263
        %v5282 = vsel %vm5272, %v5281, %v5267
        %5284 = vrot.lane.b32.xlu0 %v5163, 96
        %v5285 = vpop.permute.xlu0 %5284
        %5288 = vrot.lane.b32.xlu0 %v5168, 96
        %v5289 = vpop.permute.xlu0 %5288
        %5292 = vrot.lane.b32.xlu0 %v5169, 32
        %v5293 = vpop.permute.xlu0 %5292
        %5296 = vrot.lane.b32.xlu0 %v5174, 32
        %v5297 = vpop.permute.xlu0 %5296
        %5300 = vrot.lane.b32.xlu0 %v5175, 96
        %v5301 = vpop.permute.xlu0 %5300
        %5304 = vrot.lane.b32.xlu0 %v5180, 96
        %v5305 = vpop.permute.xlu0 %5304
        %5308 = vrot.lane.b32.xlu0 %v5181, 32
        %v5309 = vpop.permute.xlu0 %5308
        %5312 = vrot.lane.b32.xlu0 %v5186, 32
        %v5313 = vpop.permute.xlu0 %5312
        %5316 = vrot.lane.b32.xlu0 %v5187, 96
        %v5317 = vpop.permute.xlu0 %5316
        %5320 = vrot.lane.b32.xlu0 %v5192, 96
        %v5321 = vpop.permute.xlu0 %5320
        %5324 = vrot.lane.b32.xlu0 %v5193, 32
        %v5325 = vpop.permute.xlu0 %5324
        %5328 = vrot.lane.b32.xlu0 %v5198, 32
        %v5329 = vpop.permute.xlu0 %5328
        %5332 = vrot.lane.b32.xlu0 %v5199, 96
        %v5333 = vpop.permute.xlu0 %5332
        %5336 = vrot.lane.b32.xlu0 %v5204, 96
        %v5337 = vpop.permute.xlu0 %5336
        %5340 = vrot.lane.b32.xlu0 %v5205, 32
        %v5341 = vpop.permute.xlu0 %5340
        %5343 = vrot.lane.b32.xlu0 %v5107, 32
        %v5344 = vpop.permute.xlu0 %5343
        %v5346 = vsel %vm480, %v5285, %v5289
        %v5347 = vsel %vm5270, %v5346, %v5293
        %v5348 = vsel %vm5272, %v5347, %v5297
        %v5349 = vsel %vm480, %v5301, %v5305
        %v5350 = vsel %vm5270, %v5349, %v5309
        %v5351 = vsel %vm5272, %v5350, %v5313
        %v5352 = vsel %vm480, %v5317, %v5321
        %v5353 = vsel %vm5270, %v5352, %v5325
        %v5354 = vsel %vm5272, %v5353, %v5329
        %v5355 = vsel %vm480, %v5333, %v5337
        %v5356 = vsel %vm5270, %v5355, %v5341
        %v5357 = vsel %vm5272, %v5356, %v5344
        %v5358 = vtanh.pop %v5273
        %v5359 = vtanh.pop %v5276
        %v5360 = vtanh.pop %v5279
        %v5361 = vtanh.pop %v5282
        %v5362 = vtanh.pop %v5348
        %v5363 = vtanh.pop %v5351
        %v5364 = vtanh.pop %v5354
        %v5365 = vtanh.pop %v5357
        %5366 = vst [vmem:[%s380] sm:$0xff] %v5358
        %5367 = vst [vmem:[%s380 + $0x8] sm:$0xff] %v5359
        %5368 = vst [vmem:[%s380 + $0x10] sm:$0xff] %v5360
        %5369 = vst [vmem:[%s380 + $0x18] sm:$0xff] %v5361
        %5370 = vst [vmem:[%s380 + $0x20] sm:$0xff] %v5362
        %5371 = vst [vmem:[%s380 + $0x28] sm:$0xff] %v5363
        %5372 = vst [vmem:[%s380 + $0x30] sm:$0xff] %v5364
        %5373 = vst [vmem:[%s380 + $0x38] sm:$0xff] %v5365
        %p5374 = scmp.lt.s32.totalorder %s24, 1
        %s5375 = scalar_select %p5374, %s24, 1
        %s5376 = smul.addr %s5375, 8
        %s5377 = smul.addr %s5376, 8
        %s5378 = scalar_lea.vmem %s8, %s5377
        // Predicated region
        $region73: #{generator_forward.1} parent=51 // pred_check
          %p5379 = pneg %p215
        $region74: #{generator_forward.1} parent=51 // pred_check_branch
          %5381 = sbr.rel (%p5379) target = $region76
        $region75: #{generator_forward.1} parent=51 // pred_region
          _
        $region76: #{generator_forward.1} parent=51 // pred_fallthru
          _
      $region52: #{generator_forward.1} parent=5 // pred_fallthru
        _
      %p5382 = scmp.le.s32.totalorder 2, %s19
      // Predicated region
      $region77: #{generator_forward.1} parent=5 // pred_check
        %p5383 = pneg %p5382
      $region78: #{generator_forward.1} parent=5 // pred_check_branch
        %5385 = sbr.rel (%p5383) target = $region80
      $region79: #{generator_forward.1} parent=5 // pred_region
        %s5386 = ssub.s32 %s19, 2
        // Predicated region
        $region81: #{generator_forward.1} parent=79 // pred_check
          %p5387 = pneg %p221
        $region82: #{generator_forward.1} parent=79 // pred_check_branch
          %5389 = sbr.rel (%p5387) target = $region84
        $region83: #{generator_forward.1} parent=79 // pred_region
          %p5390 = scmp.lt.s32.totalorder %s25, 1
          %s5391 = scalar_select %p5390, %s25, 1
          %s5392 = smul.addr %s5391, 8
          %s5393 = smul.addr %s5392, 8
          %s5394 = scalar_lea.vmem %s8, %s5393
        $region84: #{generator_forward.1} parent=79 // pred_fallthru
          _
      $region80: #{generator_forward.1} parent=5 // pred_fallthru
        _
    $region6: #{generator_forward.1} parent=1 // loop_footer
      %s23 = sadd.s32 1, %s19
    $region7: #{generator_forward.1} parent=1 // loop_footer_branch
      %18 = sbr.rel target = $region3
    $region8: #{generator_forward.1} parent=1 // loop_exit
      _
    %5395 = vsyncpa [#allocation3], 1
    %s5396 = scalar_lea.sflag [#allocation3], 1
    %5397 = vsyncpa %s5396, 1
    %5398 = vsyncpa [#allocation5], 1
    %5399 = vsyncpa [#allocation8], 1

</llo_original>
